<compile_context>
chip_gen: v5e
topology: v5e:2x2
jax: 0.10.0
libtpu: 0.0.40
codegen_flags: <defaults>
</compile_context>

<pallas_src>
import jax
import jax.numpy as jnp
from jax.experimental import pallas as pl
from jax.experimental.pallas import tpu as pltpu

MapX = 16
MapY = 16
IN_DIM = MapX * MapY * 27   # 6912
H1 = 512
H2 = 32
OUT = 7
TK = 3456                   # 6912 = 2 * 3456, multiple of 128

assert IN_DIM % TK == 0, "K tiling must divide IN_DIM exactly"


def _produce_net_kernel(x_ref, w1_ref, b1_ref, w2_ref, b2_ref, w3_ref, b3_ref,
                        out_ref, acc_ref):
    k = pl.program_id(0)

    # Initialise the fc1 accumulator with the broadcast bias (saves the
    # epilogue add).
    @pl.when(k == 0)
    def _():
        acc_ref[...] = jnp.broadcast_to(b1_ref[...], acc_ref.shape)

    # fc1 partial accumulation over K tiles. x tile is cast to bf16 (tiny),
    # w1 tile arrives as bf16 from HBM; accumulation stays f32.
    acc_ref[...] += jnp.dot(x_ref[...].astype(jnp.bfloat16), w1_ref[...],
                            preferred_element_type=jnp.float32)

    # fc2 / out are tiny; fuse them into the final K step.
    @pl.when(k == pl.num_programs(0) - 1)
    def _():
        h1 = jnp.maximum(acc_ref[...], 0.0)                         # relu(fc1)
        h2 = jnp.dot(h1, w2_ref[...], preferred_element_type=jnp.float32)
        h2 = jnp.maximum(h2 + b2_ref[...], 0.0)                     # relu(fc2)
        y = jnp.dot(h2, w3_ref[...], preferred_element_type=jnp.float32)
        out_ref[...] = (y + b3_ref[...]).astype(out_ref.dtype)      # out


def produce_net_forward(x, w1, b1, w2, b2, w3, b3):
    """x: (B, IN_DIM) f32.  w* already transposed to (in, out), f32."""
    B = x.shape[0]
    n_k = IN_DIM // TK

    # Stream the big fc1 weight in bf16 (halves HBM bytes; kernel is BW-bound).
    w1_bf16 = w1.astype(jnp.bfloat16)

    flops = 2 * B * (IN_DIM * H1 + H1 * H2 + H2 * OUT)
    bytes_accessed = (
        w1_bf16.size * 2            # bf16 fc1 weight stream
        + x.size * 4                # x
        + (b1.size + w2.size + b2.size + w3.size + b3.size) * 4
        + B * OUT * 4)              # output

    return pl.pallas_call(
        _produce_net_kernel,
        out_shape=jax.ShapeDtypeStruct((B, OUT), jnp.float32),
        grid_spec=pltpu.PrefetchScalarGridSpec(
            num_scalar_prefetch=0,
            grid=(n_k,),
            in_specs=[
                pl.BlockSpec((B, TK),   lambda k: (0, k)),   # x tile (f32)
                pl.BlockSpec((TK, H1),  lambda k: (k, 0)),   # w1 tile (bf16)
                pl.BlockSpec((1, H1),   lambda k: (0, 0)),   # b1
                pl.BlockSpec((H1, H2),  lambda k: (0, 0)),   # w2
                pl.BlockSpec((1, H2),   lambda k: (0, 0)),   # b2
                pl.BlockSpec((H2, OUT), lambda k: (0, 0)),   # w3
                pl.BlockSpec((1, OUT),  lambda k: (0, 0)),   # b3
            ],
            out_specs=pl.BlockSpec((B, OUT), lambda k: (0, 0)),
            scratch_shapes=[pltpu.VMEM((B, H1), jnp.float32)],
        ),
        compiler_params=pltpu.CompilerParams(
            dimension_semantics=("arbitrary",),
            vmem_limit_bytes=32 * 1024 * 1024),
        cost_estimate=pl.CostEstimate(
            flops=flops, transcendentals=0, bytes_accessed=bytes_accessed),
    )(x, w1_bf16, b1, w2, b2, w3, b3)


def init_params(key):
    """Deterministic params matching nn.Linear shapes / init semantics.

    PyTorch: weight ~ N(0, 0.1) (per module init), bias ~ U(-1/sqrt(fan_in), +).
    Weights are created as (out, in) and transposed for the kernel.
    """
    ks = jax.random.split(key, 6)

    def linear(kw, kb, fan_in, fan_out):
        w = 0.1 * jax.random.normal(kw, (fan_out, fan_in), jnp.float32)
        bound = 1.0 / jnp.sqrt(float(fan_in))
        b = jax.random.uniform(kb, (fan_out,), jnp.float32, -bound, bound)
        return w.T, b.reshape(1, fan_out)

    w1, b1 = linear(ks[0], ks[1], IN_DIM, H1)
    w2, b2 = linear(ks[2], ks[3], H1, H2)
    w3, b3 = linear(ks[4], ks[5], H2, OUT)
    return w1, b1, w2, b2, w3, b3


def reference_forward(x, w1, b1, w2, b2, w3, b3):
    """Pure-JAX reference using the same bf16 fc1 quantization as the kernel
    (bf16 inputs, f32 accumulation), so only K-split summation order differs."""
    w1_bf16 = w1.astype(jnp.bfloat16)
    h1 = jnp.dot(x.astype(jnp.bfloat16), w1_bf16,
                 preferred_element_type=jnp.float32) + b1
    h1 = jnp.maximum(h1, 0.0)
    h2 = jnp.dot(h1, w2, preferred_element_type=jnp.float32) + b2
    h2 = jnp.maximum(h2, 0.0)
    return jnp.dot(h2, w3, preferred_element_type=jnp.float32) + b3


if __name__ == "__main__":
    key = jax.random.PRNGKey(0)
    k_x, k_p = jax.random.split(key)
    B = 2
    x = jax.random.normal(k_x, (B, IN_DIM), jnp.float32)
    params = init_params(k_p)

    out = produce_net_forward(x, *params)
    out = jax.block_until_ready(out)

    ref = reference_forward(x, *params)
    assert out.shape == (B, OUT)
    assert jnp.allclose(out, ref, atol=2e-3, rtol=2e-3)
    print("KERNEL_OK")
</pallas_src>

<mosaic_0001>
module attributes {stable_mosaic.version = 11 : i64} {
  func.func @_produce_net_kernel(%arg0: i32, %arg1: memref<2x3456xf32, #tpu.memory_space<vmem>>, %arg2: memref<3456x512xbf16, #tpu.memory_space<vmem>>, %arg3: memref<1x512xf32, #tpu.memory_space<vmem>>, %arg4: memref<512x32xf32, #tpu.memory_space<vmem>>, %arg5: memref<1x32xf32, #tpu.memory_space<vmem>>, %arg6: memref<32x7xf32, #tpu.memory_space<vmem>>, %arg7: memref<1x7xf32, #tpu.memory_space<vmem>>, %arg8: memref<2x7xf32, #tpu.memory_space<vmem>>, %arg9: memref<2x512xf32, #tpu.memory_space<vmem>>) attributes {dimension_semantics = [#tpu.dimension_semantics<arbitrary>], iteration_bounds = array<i64: 2>, scalar_prefetch = 0 : i64, scratch_operands = 1 : i64, tpu.core_type = #tpu.core_type<tc>, window_params = [{transform_indices = @transform_0, window_bounds = array<i64: 2, 3456>}, {transform_indices = @transform_1, window_bounds = array<i64: 3456, 512>}, {pipeline_mode = #tpu.pipeline_mode<synchronous>, transform_indices = @transform_2, window_bounds = array<i64: 1, 512>}, {pipeline_mode = #tpu.pipeline_mode<synchronous>, transform_indices = @transform_3, window_bounds = array<i64: 512, 32>}, {pipeline_mode = #tpu.pipeline_mode<synchronous>, transform_indices = @transform_4, window_bounds = array<i64: 1, 32>}, {pipeline_mode = #tpu.pipeline_mode<synchronous>, transform_indices = @transform_5, window_bounds = array<i64: 32, 7>}, {pipeline_mode = #tpu.pipeline_mode<synchronous>, transform_indices = @transform_6, window_bounds = array<i64: 1, 7>}, {pipeline_mode = #tpu.pipeline_mode<synchronous>, transform_indices = @transform_7, window_bounds = array<i64: 2, 7>}]} {
    %c0_i32 = arith.constant 0 : i32
    %0 = arith.cmpi eq, %arg0, %c0_i32 : i32
    %1 = arith.extui %0 : i1 to i32
    %c0_i32_0 = arith.constant 0 : i32
    %2 = arith.cmpi ne, %1, %c0_i32_0 : i32
    scf.if %2 {
      %c0_9 = arith.constant 0 : index
      %c0_10 = arith.constant 0 : index
      %13 = vector.load %arg3[%c0_9, %c0_10] : memref<1x512xf32, #tpu.memory_space<vmem>>, vector<1x512xf32>
      %14 = vector.shape_cast %13 : vector<1x512xf32> to vector<1x512xf32>
      %15 = vector.broadcast %14 : vector<1x512xf32> to vector<2x512xf32>
      %c0_11 = arith.constant 0 : index
      %c0_12 = arith.constant 0 : index
      %16 = vector.load %arg9[%c0_11, %c0_12] : memref<2x512xf32, #tpu.memory_space<vmem>>, vector<2x512xf32>
      tpu.vector_store %arg9[%c0_11, %c0_12], %15 {strides = array<i32>} : memref<2x512xf32, #tpu.memory_space<vmem>>, vector<2x512xf32>,
    } else {
    }
    %c0 = arith.constant 0 : index
    %c0_1 = arith.constant 0 : index
    %3 = vector.load %arg9[%c0, %c0_1] : memref<2x512xf32, #tpu.memory_space<vmem>>, vector<2x512xf32>
    %c0_2 = arith.constant 0 : index
    %c0_3 = arith.constant 0 : index
    %4 = vector.load %arg1[%c0_2, %c0_3] : memref<2x3456xf32, #tpu.memory_space<vmem>>, vector<2x3456xf32>
    %5 = arith.truncf %4 : vector<2x3456xf32> to vector<2x3456xbf16>
    %c0_4 = arith.constant 0 : index
    %c0_5 = arith.constant 0 : index
    %6 = vector.load %arg2[%c0_4, %c0_5] : memref<3456x512xbf16, #tpu.memory_space<vmem>>, vector<3456x512xbf16>
    %cst = arith.constant dense<0.000000e+00> : vector<2x512xf32>
    %7 = tpu.matmul %5, %6, %cst {dimension_numbers = #tpu.dot_dimension_numbers<[1], [0], [0], [1], [0, 0, 1, 1], [], []>} : vector<2x3456xbf16>, vector<3456x512xbf16>, vector<2x512xf32> -> vector<2x512xf32>
    %8 = arith.addf %3, %7 : vector<2x512xf32>
    %c0_6 = arith.constant 0 : index
    %c0_7 = arith.constant 0 : index
    %9 = vector.load %arg9[%c0_6, %c0_7] : memref<2x512xf32, #tpu.memory_space<vmem>>, vector<2x512xf32>
    tpu.vector_store %arg9[%c0_6, %c0_7], %8 {strides = array<i32>} : memref<2x512xf32, #tpu.memory_space<vmem>>, vector<2x512xf32>,
    %c1_i32 = arith.constant 1 : i32
    %10 = arith.cmpi eq, %arg0, %c1_i32 : i32
    %11 = arith.extui %10 : i1 to i32
    %c0_i32_8 = arith.constant 0 : i32
    %12 = arith.cmpi ne, %11, %c0_i32_8 : i32
    scf.if %12 {
      %c0_9 = arith.constant 0 : index
      %c0_10 = arith.constant 0 : index
      %13 = vector.load %arg9[%c0_9, %c0_10] : memref<2x512xf32, #tpu.memory_space<vmem>>, vector<2x512xf32>
      %cst_11 = arith.constant 0.000000e+00 : f32
      %14 = vector.broadcast %cst_11 : f32 to vector<2x512xf32>
      %15 = arith.maximumf %13, %14 : vector<2x512xf32>
      %c0_12 = arith.constant 0 : index
      %c0_13 = arith.constant 0 : index
      %16 = vector.load %arg4[%c0_12, %c0_13] : memref<512x32xf32, #tpu.memory_space<vmem>>, vector<512x32xf32>
      %cst_14 = arith.constant dense<0.000000e+00> : vector<2x32xf32>
      %17 = tpu.matmul %15, %16, %cst_14 {dimension_numbers = #tpu.dot_dimension_numbers<[1], [0], [0], [1], [0, 0, 1, 1], [], []>} : vector<2x512xf32>, vector<512x32xf32>, vector<2x32xf32> -> vector<2x32xf32>
      %c0_15 = arith.constant 0 : index
      %c0_16 = arith.constant 0 : index
      %18 = vector.load %arg5[%c0_15, %c0_16] : memref<1x32xf32, #tpu.memory_space<vmem>>, vector<1x32xf32>
      %19 = vector.broadcast %18 : vector<1x32xf32> to vector<2x32xf32>
      %20 = arith.addf %17, %19 : vector<2x32xf32>
      %cst_17 = arith.constant 0.000000e+00 : f32
      %21 = vector.broadcast %cst_17 : f32 to vector<2x32xf32>
      %22 = arith.maximumf %20, %21 : vector<2x32xf32>
      %c0_18 = arith.constant 0 : index
      %c0_19 = arith.constant 0 : index
      %23 = vector.load %arg6[%c0_18, %c0_19] : memref<32x7xf32, #tpu.memory_space<vmem>>, vector<32x7xf32>
      %cst_20 = arith.constant dense<0.000000e+00> : vector<2x7xf32>
      %24 = tpu.matmul %22, %23, %cst_20 {dimension_numbers = #tpu.dot_dimension_numbers<[1], [0], [0], [1], [0, 0, 1, 1], [], []>} : vector<2x32xf32>, vector<32x7xf32>, vector<2x7xf32> -> vector<2x7xf32>
      %c0_21 = arith.constant 0 : index
      %c0_22 = arith.constant 0 : index
      %25 = vector.load %arg7[%c0_21, %c0_22] : memref<1x7xf32, #tpu.memory_space<vmem>>, vector<1x7xf32>
      %26 = vector.broadcast %25 : vector<1x7xf32> to vector<2x7xf32>
      %27 = arith.addf %24, %26 : vector<2x7xf32>
      %c0_23 = arith.constant 0 : index
      %c0_24 = arith.constant 0 : index
      %28 = vector.load %arg8[%c0_23, %c0_24] : memref<2x7xf32, #tpu.memory_space<vmem>>, vector<2x7xf32>
      tpu.vector_store %arg8[%c0_23, %c0_24], %27 {strides = array<i32>} : memref<2x7xf32, #tpu.memory_space<vmem>>, vector<2x7xf32>,
    } else {
    }
    return
  }
  func.func @transform_0(%arg0: i32) -> (i32, i32) {
    %c0_i32 = arith.constant 0 : i32
    %c0_i32_0 = arith.constant 0 : i32
    return %c0_i32, %arg0 : i32, i32
  }
  func.func @transform_1(%arg0: i32) -> (i32, i32) {
    %c0_i32 = arith.constant 0 : i32
    %c0_i32_0 = arith.constant 0 : i32
    return %arg0, %c0_i32 : i32, i32
  }
  func.func @transform_2(%arg0: i32) -> (i32, i32) {
    %c0_i32 = arith.constant 0 : i32
    %c0_i32_0 = arith.constant 0 : i32
    %c0_i32_1 = arith.constant 0 : i32
    return %c0_i32, %c0_i32_0 : i32, i32
  }
  func.func @transform_3(%arg0: i32) -> (i32, i32) {
    %c0_i32 = arith.constant 0 : i32
    %c0_i32_0 = arith.constant 0 : i32
    %c0_i32_1 = arith.constant 0 : i32
    return %c0_i32, %c0_i32_0 : i32, i32
  }
  func.func @transform_4(%arg0: i32) -> (i32, i32) {
    %c0_i32 = arith.constant 0 : i32
    %c0_i32_0 = arith.constant 0 : i32
    %c0_i32_1 = arith.constant 0 : i32
    return %c0_i32, %c0_i32_0 : i32, i32
  }
  func.func @transform_5(%arg0: i32) -> (i32, i32) {
    %c0_i32 = arith.constant 0 : i32
    %c0_i32_0 = arith.constant 0 : i32
    %c0_i32_1 = arith.constant 0 : i32
    return %c0_i32, %c0_i32_0 : i32, i32
  }
  func.func @transform_6(%arg0: i32) -> (i32, i32) {
    %c0_i32 = arith.constant 0 : i32
    %c0_i32_0 = arith.constant 0 : i32
    %c0_i32_1 = arith.constant 0 : i32
    return %c0_i32, %c0_i32_0 : i32, i32
  }
  func.func @transform_7(%arg0: i32) -> (i32, i32) {
    %c0_i32 = arith.constant 0 : i32
    %c0_i32_0 = arith.constant 0 : i32
    %c0_i32_1 = arith.constant 0 : i32
    return %c0_i32, %c0_i32_0 : i32, i32
  }
}

</mosaic_0001>

<llo_original>
// kernel: tpu_custom_call.1
$region0: #{tpu_custom_call.1}
  #allocation0 [shape = 'u32[]', space=smem, size = 0x4, offset = 0x4, fixed_abs, tag = 'smem constant byte address 0x4 - core index']
  #allocation1 [shape = 'u32[72,128]{1,0:T(1,128)}', space=vmem, size = 0x9000, scoped, tag = 'internal scratch']
  #allocation2 [shape = 'f32[2,512]{1,0:T(2,128)}', space=vmem, size = 0x1000, scoped, tag = 'scratch operand']
  %s0 = inlined_call_operand.hbm [shape: f32[2,6912], index: 0, kind: input, shape index: {}]
  %s1 = inlined_call_operand.hbm [shape: bf16[6912,512], index: 1, kind: input, shape index: {}]
  %s2 = inlined_call_operand.hbm [shape: f32[1,512], index: 2, kind: input, shape index: {}]
  %s3 = inlined_call_operand.vmem [shape: f32[512,32], index: 3, kind: input, shape index: {}]
  %s4 = inlined_call_operand.hbm [shape: f32[1,32], index: 4, kind: input, shape index: {}]
  %s5 = inlined_call_operand.vmem [shape: f32[32,7], index: 5, kind: input, shape index: {}]
  %s6 = inlined_call_operand.hbm [shape: f32[1,7], index: 6, kind: input, shape index: {}]
  %s7 = inlined_call_operand.hbm [shape: f32[2,7], index: 7, kind: output, shape index: {}]
  %s8 = sld [smem:[#allocation0]]
  $region89: #{tpu_custom_call.1} parent=0
    _
  %s10 = ssub.s32 1, %s8
  %s11 = scalar_select 0, %s10, %s8
  $region1: #{tpu_custom_call.1} parent=0
    #allocation3 [shape = 'u8[55296]{0}', space=vmem, size = 0xd800, scoped, tag = 'input window, operand 0']
    #allocation4 [shape = 's32[2]{0}', space=sflag, size = 0x8, scoped, tag = 'scoped memory for tpu_custom_call.1']
    #allocation5 [shape = 's32[2]{0}', space=sflag, size = 0x8, scoped, tag = 'scoped memory for tpu_custom_call.1']
    #allocation6 [shape = 'u8[7077888]{0}', space=vmem, size = 0x6c0000, scoped, tag = 'input window, operand 1']
    #allocation7 [shape = 's32[2]{0}', space=sflag, size = 0x8, scoped, tag = 'scoped memory for tpu_custom_call.1']
    #allocation8 [shape = 'u8[2048]{0}', space=vmem, size = 0x800, scoped, tag = 'input window, operand 2, single buffered']
    #allocation9 [shape = 'u8[512]{0}', space=vmem, size = 0x400, scoped, tag = 'input window, operand 4, single buffered']
    #allocation10 [shape = 's32[1]{0}', space=sflag, size = 0x4, scoped, tag = 'scoped memory for tpu_custom_call.1']
    #allocation11 [shape = 'u8[512]{0}', space=vmem, size = 0x400, scoped, tag = 'input window, operand 6, single buffered']
    #allocation12 [shape = 'u8[1024]{0}', space=vmem, size = 0x400, scoped, tag = 'output window, operand 0, single buffered']
    %12 = vsyncpa [#allocation4], 0
    %s13 = scalar_lea.sflag [#allocation4], 1
    %14 = vsyncpa %s13, 0
    %15 = vsyncpa [#allocation7], 0
    %s16 = scalar_lea.sflag [#allocation7], 1
    %17 = vsyncpa %s16, 0
    %18 = vsyncpa [#allocation10], 0
    %19 = vsyncpa [#allocation5], 0
    loop: start=0, step=1, limit=4
    $region2: #{tpu_custom_call.1} parent=1 // loop_pre_header
      _
    $region3: #{tpu_custom_call.1} parent=1 // loop_header
      %s21 = sphi 0, %s25
      %p22 = scmp.ge.s32.totalorder %s21, 4
      %s31 = sphi 0, %s33
      %s34 = sphi 0, %s31
      %s35 = sphi 0, %s34
      %s51 = sphi 0, %s35
      %s57 = sphi 0, %s59
      %s60 = sphi 0, %s57
      %s61 = sphi 0, %s60
      %s77 = sphi 0, %s61
      %s81 = sphi 0, %s81
      %s83 = sphi 0, %s81
      %s84 = sphi 0, %s83
      %s98 = sphi 0, %s84
      %s102 = sphi 0, %s102
      %s104 = sphi 0, %s102
      %s105 = sphi 0, %s104
      %s119 = sphi 0, %s105
      %s123 = sphi 0, %s123
      %s125 = sphi 0, %s123
      %s126 = sphi 0, %s125
      %s140 = sphi 0, %s126
      %s144 = sphi 0, %s144
      %s146 = sphi 0, %s144
      %s147 = sphi 0, %s146
      %s161 = sphi 0, %s147
      %s165 = sphi 0, %s165
      %s167 = sphi 0, %s165
      %s168 = sphi 0, %s167
      %s182 = sphi 0, %s168
      %s186 = sphi 0, %s186
      %s188 = sphi 0, %s186
      %s189 = sphi 0, %s188
      %s203 = sphi 0, %s189
    $region4: #{tpu_custom_call.1} parent=1 // loop_header_branch
      %24 = sbr.rel (%p22) target = $region8
    $region5: #{tpu_custom_call.1} parent=1 // loop_body
      %s26 = ssub.s32 %s21, 1
      %s27 = ssub.s32 %s21, 2
      %s28 = sadd.s32 %s21, 1
      %s29 = ssub.s32 %s21, %s28
      %p30 = scmp.eq.s32.totalorder %s29, 0
      %s32 = sadd.s32 %s31, 1
      %s33 = scalar_select %p30, %s31, %s32
      %p36 = pneg %p30
      %p37 = scmp.eq.s32.totalorder %s21, 1
      %p38 = por %p36, %p37
      %p39 = scmp.ne.s32.totalorder %s31, %s34
      %p40 = scmp.eq.s32.totalorder %s21, 0
      %p41 = por %p39, %p40
      %p42 = scmp.ne.s32.totalorder %s31, %s34
      %p43 = scmp.eq.s32.totalorder %s26, 1
      %p44 = por %p42, %p43
      %p45 = scmp.ne.s32.totalorder %s34, %s35
      %p46 = scmp.eq.s32.totalorder %s26, 0
      %p47 = por %p45, %p46
      %p48 = scmp.ne.s32.totalorder %s34, %s35
      %p49 = scmp.eq.s32.totalorder %s27, 1
      %p50 = por %p48, %p49
      %p52 = scmp.ne.s32.totalorder %s35, %s51
      %p53 = scmp.eq.s32.totalorder %s27, 0
      %p54 = por %p52, %p53
      %s55 = ssub.s32 %s21, %s28
      %p56 = scmp.eq.s32.totalorder %s55, 0
      %s58 = sadd.s32 %s57, 1
      %s59 = scalar_select %p56, %s57, %s58
      %p62 = pneg %p56
      %p63 = scmp.eq.s32.totalorder %s21, 1
      %p64 = por %p62, %p63
      %p65 = scmp.ne.s32.totalorder %s57, %s60
      %p66 = scmp.eq.s32.totalorder %s21, 0
      %p67 = por %p65, %p66
      %p68 = scmp.ne.s32.totalorder %s57, %s60
      %p69 = scmp.eq.s32.totalorder %s26, 1
      %p70 = por %p68, %p69
      %p71 = scmp.ne.s32.totalorder %s60, %s61
      %p72 = scmp.eq.s32.totalorder %s26, 0
      %p73 = por %p71, %p72
      %p74 = scmp.ne.s32.totalorder %s60, %s61
      %p75 = scmp.eq.s32.totalorder %s27, 1
      %p76 = por %p74, %p75
      %p78 = scmp.ne.s32.totalorder %s61, %s77
      %p79 = scmp.eq.s32.totalorder %s27, 0
      %p80 = por %p78, %p79
      %s82 = sadd.s32 %s81, 1
      %p85 = scmp.eq.s32.totalorder %s21, 1
      %p86 = scmp.ne.s32.totalorder %s81, %s83
      %p87 = scmp.eq.s32.totalorder %s21, 0
      %p88 = por %p86, %p87
      %p89 = scmp.ne.s32.totalorder %s81, %s83
      %p90 = scmp.eq.s32.totalorder %s26, 1
      %p91 = por %p89, %p90
      %p92 = scmp.ne.s32.totalorder %s83, %s84
      %p93 = scmp.eq.s32.totalorder %s26, 0
      %p94 = por %p92, %p93
      %p95 = scmp.ne.s32.totalorder %s83, %s84
      %p96 = scmp.eq.s32.totalorder %s27, 1
      %p97 = por %p95, %p96
      %p99 = scmp.ne.s32.totalorder %s84, %s98
      %p100 = scmp.eq.s32.totalorder %s27, 0
      %p101 = por %p99, %p100
      %s103 = sadd.s32 %s102, 1
      %p106 = scmp.eq.s32.totalorder %s21, 1
      %p107 = scmp.ne.s32.totalorder %s102, %s104
      %p108 = scmp.eq.s32.totalorder %s21, 0
      %p109 = por %p107, %p108
      %p110 = scmp.ne.s32.totalorder %s102, %s104
      %p111 = scmp.eq.s32.totalorder %s26, 1
      %p112 = por %p110, %p111
      %p113 = scmp.ne.s32.totalorder %s104, %s105
      %p114 = scmp.eq.s32.totalorder %s26, 0
      %p115 = por %p113, %p114
      %p116 = scmp.ne.s32.totalorder %s104, %s105
      %p117 = scmp.eq.s32.totalorder %s27, 1
      %p118 = por %p116, %p117
      %p120 = scmp.ne.s32.totalorder %s105, %s119
      %p121 = scmp.eq.s32.totalorder %s27, 0
      %p122 = por %p120, %p121
      %s124 = sadd.s32 %s123, 1
      %p127 = scmp.eq.s32.totalorder %s21, 1
      %p128 = scmp.ne.s32.totalorder %s123, %s125
      %p129 = scmp.eq.s32.totalorder %s21, 0
      %p130 = por %p128, %p129
      %p131 = scmp.ne.s32.totalorder %s123, %s125
      %p132 = scmp.eq.s32.totalorder %s26, 1
      %p133 = por %p131, %p132
      %p134 = scmp.ne.s32.totalorder %s125, %s126
      %p135 = scmp.eq.s32.totalorder %s26, 0
      %p136 = por %p134, %p135
      %p137 = scmp.ne.s32.totalorder %s125, %s126
      %p138 = scmp.eq.s32.totalorder %s27, 1
      %p139 = por %p137, %p138
      %p141 = scmp.ne.s32.totalorder %s126, %s140
      %p142 = scmp.eq.s32.totalorder %s27, 0
      %p143 = por %p141, %p142
      %s145 = sadd.s32 %s144, 1
      %p148 = scmp.eq.s32.totalorder %s21, 1
      %p149 = scmp.ne.s32.totalorder %s144, %s146
      %p150 = scmp.eq.s32.totalorder %s21, 0
      %p151 = por %p149, %p150
      %p152 = scmp.ne.s32.totalorder %s144, %s146
      %p153 = scmp.eq.s32.totalorder %s26, 1
      %p154 = por %p152, %p153
      %p155 = scmp.ne.s32.totalorder %s146, %s147
      %p156 = scmp.eq.s32.totalorder %s26, 0
      %p157 = por %p155, %p156
      %p158 = scmp.ne.s32.totalorder %s146, %s147
      %p159 = scmp.eq.s32.totalorder %s27, 1
      %p160 = por %p158, %p159
      %p162 = scmp.ne.s32.totalorder %s147, %s161
      %p163 = scmp.eq.s32.totalorder %s27, 0
      %p164 = por %p162, %p163
      %s166 = sadd.s32 %s165, 1
      %p169 = scmp.eq.s32.totalorder %s21, 1
      %p170 = scmp.ne.s32.totalorder %s165, %s167
      %p171 = scmp.eq.s32.totalorder %s21, 0
      %p172 = por %p170, %p171
      %p173 = scmp.ne.s32.totalorder %s165, %s167
      %p174 = scmp.eq.s32.totalorder %s26, 1
      %p175 = por %p173, %p174
      %p176 = scmp.ne.s32.totalorder %s167, %s168
      %p177 = scmp.eq.s32.totalorder %s26, 0
      %p178 = por %p176, %p177
      %p179 = scmp.ne.s32.totalorder %s167, %s168
      %p180 = scmp.eq.s32.totalorder %s27, 1
      %p181 = por %p179, %p180
      %p183 = scmp.ne.s32.totalorder %s168, %s182
      %p184 = scmp.eq.s32.totalorder %s27, 0
      %p185 = por %p183, %p184
      %s187 = sadd.s32 %s186, 1
      %p190 = scmp.eq.s32.totalorder %s21, 1
      %p191 = scmp.ne.s32.totalorder %s186, %s188
      %p192 = scmp.eq.s32.totalorder %s21, 0
      %p193 = por %p191, %p192
      %p194 = scmp.ne.s32.totalorder %s186, %s188
      %p195 = scmp.eq.s32.totalorder %s26, 1
      %p196 = por %p194, %p195
      %p197 = scmp.ne.s32.totalorder %s188, %s189
      %p198 = scmp.eq.s32.totalorder %s26, 0
      %p199 = por %p197, %p198
      %p200 = scmp.ne.s32.totalorder %s188, %s189
      %p201 = scmp.eq.s32.totalorder %s27, 1
      %p202 = por %p200, %p201
      %p204 = scmp.ne.s32.totalorder %s189, %s203
      %p205 = scmp.eq.s32.totalorder %s27, 0
      %p206 = por %p204, %p205
      %p207 = scmp.le.s32.totalorder 1, %s21
      %p208 = scmp.lt.s32.totalorder %s21, 3
      %p209 = pnand %p207, %p208
      %p210 = pneg %p209
      // Predicated region
      $region9: #{tpu_custom_call.1} parent=5 // pred_check
        _
      $region10: #{tpu_custom_call.1} parent=5 // pred_check_branch
        %212 = sbr.rel (%p209) target = $region12
      $region11: #{tpu_custom_call.1} parent=5 // pred_region
        %s213 = ssub.s32 %s21, 1
        // Predicated region
        $region13: #{tpu_custom_call.1} parent=11 // pred_check
          %p214 = pneg %p94
        $region14: #{tpu_custom_call.1} parent=11 // pred_check_branch
          %216 = sbr.rel (%p214) target = $region16
        $region15: #{tpu_custom_call.1} parent=11 // pred_region
          %218 = vsyncadd [#allocation7], 0
          %s220 = sshll.u32 %s2, 4
          %s221 = int_to_ptr.hbm [resolvable:$true] %s220
          %s222 = sshll.u32 [#allocation8], 4
          %s223 = int_to_ptr.vmem [resolvable:$true] %s222
          %225 = dma.hbm_to_vmem [thread:$0]  %s221, 64, %s223, [#allocation7]
        $region16: #{tpu_custom_call.1} parent=11 // pred_fallthru
          _
        // Predicated region
        $region17: #{tpu_custom_call.1} parent=11 // pred_check
          %p226 = pneg %p115
        $region18: #{tpu_custom_call.1} parent=11 // pred_check_branch
          %228 = sbr.rel (%p226) target = $region20
        $region19: #{tpu_custom_call.1} parent=11 // pred_region
          _
        $region20: #{tpu_custom_call.1} parent=11 // pred_fallthru
          _
        // Predicated region
        $region21: #{tpu_custom_call.1} parent=11 // pred_check
          %p229 = pneg %p136
        $region22: #{tpu_custom_call.1} parent=11 // pred_check_branch
          %231 = sbr.rel (%p229) target = $region24
        $region23: #{tpu_custom_call.1} parent=11 // pred_region
          %233 = vsyncadd [#allocation10], 0
          %s235 = sshll.u32 %s4, 4
          %s236 = int_to_ptr.hbm [resolvable:$true] %s235
          %s237 = sshll.u32 [#allocation9], 4
          %s238 = int_to_ptr.vmem [resolvable:$true] %s237
          %240 = dma.hbm_to_vmem [thread:$0]  %s236, 16, %s238, [#allocation10]
        $region24: #{tpu_custom_call.1} parent=11 // pred_fallthru
          _
        // Predicated region
        $region25: #{tpu_custom_call.1} parent=11 // pred_check
          %p241 = pneg %p157
        $region26: #{tpu_custom_call.1} parent=11 // pred_check_branch
          %243 = sbr.rel (%p241) target = $region28
        $region27: #{tpu_custom_call.1} parent=11 // pred_region
          _
        $region28: #{tpu_custom_call.1} parent=11 // pred_fallthru
          _
        // Predicated region
        $region29: #{tpu_custom_call.1} parent=11 // pred_check
          %p244 = pneg %p178
        $region30: #{tpu_custom_call.1} parent=11 // pred_check_branch
          %246 = sbr.rel (%p244) target = $region32
        $region31: #{tpu_custom_call.1} parent=11 // pred_region
          %248 = vsyncadd [#allocation10], 0
          %s250 = sshll.u32 %s6, 4
          %s251 = int_to_ptr.hbm [resolvable:$true] %s250
          %s252 = sshll.u32 [#allocation11], 4
          %s253 = int_to_ptr.vmem [resolvable:$true] %s252
          %255 = dma.hbm_to_vmem [thread:$0]  %s251, 16, %s253, [#allocation10]
        $region32: #{tpu_custom_call.1} parent=11 // pred_fallthru
          _
      $region12: #{tpu_custom_call.1} parent=5 // pred_fallthru
        _
      %p256 = scmp.lt.s32.totalorder %s21, 2
      // Predicated region
      $region33: #{tpu_custom_call.1} parent=5 // pred_check
        %p257 = pneg %p256
      $region34: #{tpu_custom_call.1} parent=5 // pred_check_branch
        %259 = sbr.rel (%p257) target = $region36
      $region35: #{tpu_custom_call.1} parent=5 // pred_region
        // Predicated region
        $region37: #{tpu_custom_call.1} parent=35 // pred_check
          %p260 = pneg %p41
        $region38: #{tpu_custom_call.1} parent=35 // pred_check_branch
          %262 = sbr.rel (%p260) target = $region40
        $region39: #{tpu_custom_call.1} parent=35 // pred_region
          %s263 = sand.u32 %s31, 1
          %s264 = scalar_lea.sflag [#allocation4], %s263
          %s265 = sand.u32 %s31, 1
          %s266 = smul.addr %s265, 54
          %s267 = scalar_lea.vmem [#allocation3], %s266
          %s268 = smul.u32 27, %s21
          %270 = vsyncadd %s264, 0
          %s271 = smul.addr %s268, 2
          %s272 = scalar_lea.hbm %s0, %s271
          %s274 = sshll.u32 %s272, 4
          %s275 = int_to_ptr.hbm [resolvable:$true] %s274
          %s276 = sshll.u32 %s267, 4
          %s277 = int_to_ptr.vmem [resolvable:$true] %s276
          %279 = dma.hbm_to_vmem [thread:$0]  %s275, 864, %s277, %s264
        $region40: #{tpu_custom_call.1} parent=35 // pred_fallthru
          _
        // Predicated region
        $region41: #{tpu_custom_call.1} parent=35 // pred_check
          %p280 = pneg %p67
        $region42: #{tpu_custom_call.1} parent=35 // pred_check_branch
          %282 = sbr.rel (%p280) target = $region44
        $region43: #{tpu_custom_call.1} parent=35 // pred_region
          %s283 = sand.u32 %s21, 1
          %s284 = scalar_lea.sflag [#allocation7], %s283
          %s285 = sand.u32 %s57, 1
          %s286 = smul.addr %s285, 6912
          %s287 = scalar_lea.vmem [#allocation6], %s286
          %s288 = smul.u32 432, %s21
          %290 = vsyncadd %s284, 0
          %s291 = smul.addr %s288, 4
          %s292 = smul.addr %s291, 4
          %s293 = scalar_lea.hbm %s1, %s292
          %s294 = sshll.u32 %s293, 4
          %s295 = int_to_ptr.hbm [resolvable:$true] %s294
          %s296 = sshll.u32 %s287, 4
          %s297 = int_to_ptr.vmem [resolvable:$true] %s296
          %302 = dma.hbm_to_vmem [thread:$0]  %s295, 110592, %s297, %s284, 256, 256, 16
        $region44: #{tpu_custom_call.1} parent=35 // pred_fallthru
          _
      $region36: #{tpu_custom_call.1} parent=5 // pred_fallthru
        _
      %p303 = scmp.le.s32.totalorder 1, %s21
      %p304 = scmp.lt.s32.totalorder %s21, 3
      %p305 = pnand %p303, %p304
      %p306 = pneg %p305
      // Predicated region
      $region45: #{tpu_custom_call.1} parent=5 // pred_check
        _
      $region46: #{tpu_custom_call.1} parent=5 // pred_check_branch
        %308 = sbr.rel (%p305) target = $region48
      $region47: #{tpu_custom_call.1} parent=5 // pred_region
        %s309 = ssub.s32 %s21, 1
        %s310 = sand.u32 %s34, 1
        %s311 = scalar_lea.sflag [#allocation4], %s310
        %s312 = sand.u32 %s34, 1
        %s313 = smul.addr %s312, 54
        %s314 = scalar_lea.vmem [#allocation3], %s313
        // Predicated region
        $region49: #{tpu_custom_call.1} parent=47 // pred_check
          %p315 = pneg %p47
        $region50: #{tpu_custom_call.1} parent=47 // pred_check_branch
          %317 = sbr.rel (%p315) target = $region52
        $region51: #{tpu_custom_call.1} parent=47 // pred_region
          %319 = dma.done %s311, 864
        $region52: #{tpu_custom_call.1} parent=47 // pred_fallthru
          _
        %s320 = sand.u32 %s26, 1
        %s321 = scalar_lea.sflag [#allocation7], %s320
        %s322 = sand.u32 %s60, 1
        %s323 = smul.addr %s322, 6912
        %s324 = scalar_lea.vmem [#allocation6], %s323
        // Predicated region
        $region53: #{tpu_custom_call.1} parent=47 // pred_check
          %p325 = pneg %p73
        $region54: #{tpu_custom_call.1} parent=47 // pred_check_branch
          %327 = sbr.rel (%p325) target = $region56
        $region55: #{tpu_custom_call.1} parent=47 // pred_region
          %329 = dma.done %s321, 110592
        $region56: #{tpu_custom_call.1} parent=47 // pred_fallthru
          _
        // Predicated region
        $region57: #{tpu_custom_call.1} parent=47 // pred_check
          %p330 = pneg %p94
        $region58: #{tpu_custom_call.1} parent=47 // pred_check_branch
          %332 = sbr.rel (%p330) target = $region60
        $region59: #{tpu_custom_call.1} parent=47 // pred_region
          %334 = dma.done [#allocation7], 64
        $region60: #{tpu_custom_call.1} parent=47 // pred_fallthru
          _
        // Predicated region
        $region61: #{tpu_custom_call.1} parent=47 // pred_check
          %p335 = pneg %p136
        $region62: #{tpu_custom_call.1} parent=47 // pred_check_branch
          %337 = sbr.rel (%p335) target = $region64
        $region63: #{tpu_custom_call.1} parent=47 // pred_region
          %339 = dma.done [#allocation10], 16
        $region64: #{tpu_custom_call.1} parent=47 // pred_fallthru
          _
        // Predicated region
        $region65: #{tpu_custom_call.1} parent=47 // pred_check
          %p340 = pneg %p178
        $region66: #{tpu_custom_call.1} parent=47 // pred_check_branch
          %342 = sbr.rel (%p340) target = $region68
        $region67: #{tpu_custom_call.1} parent=47 // pred_region
          %344 = dma.done [#allocation10], 16
        $region68: #{tpu_custom_call.1} parent=47 // pred_fallthru
          _
        %s345 = sand.u32 %s34, 1
        %s346 = scalar_lea.sflag [#allocation4], %s345
        %s347 = sand.u32 %s34, 1
        %s348 = smul.addr %s347, 54
        %s349 = scalar_lea.vmem [#allocation3], %s348
        %p350 = pneg %p47
        %p351 = pneg %p44
        %s352 = sand.u32 %s26, 1
        %s353 = scalar_lea.sflag [#allocation7], %s352
        %s354 = sand.u32 %s60, 1
        %s355 = smul.addr %s354, 6912
        %s356 = scalar_lea.vmem [#allocation6], %s355
        %p357 = pneg %p73
        %p358 = pneg %p70
        %p359 = pneg %p94
        %p360 = pneg %p91
        %p361 = pneg %p115
        %p362 = pneg %p112
        %p363 = pneg %p136
        %p364 = pneg %p133
        %p365 = pneg %p157
        %p366 = pneg %p154
        %p367 = pneg %p178
        %p368 = pneg %p175
        %p369 = pneg %p199
        %p370 = pneg %p196
        %s371 = smul.u32 27, %s26
        %s372 = smul.u32 432, %s26
        %p373 = scmp.eq.s32.totalorder %s26, 0
        // Predicated region
        $region69: #{tpu_custom_call.1} parent=47 // pred_check
          %p374 = pneg %p373
        $region70: #{tpu_custom_call.1} parent=47 // pred_check_branch
          %376 = sbr.rel (%p374) target = $region72
        $region71: #{tpu_custom_call.1} parent=47 // pred_region
          %v377 = vld [vmem:[#allocation8] sm:$0xf]
          %v379 = vperm.slane %v377, 0
          %v380 = vperm.slane %v377, 1
          %v381 = vperm.slane %v377, 2
          %v382 = vperm.slane %v377, 3
          %v383 = vrot.slane %v380, 6
          %v384 = vrot.slane %v381, 4
          %v385 = vrot.slane %v382, 2
          %vm386 = vcmask 1041408
          %v387 = vsel %vm386, %v379, %v383
          %vm388 = vcmask 1045508
          %v389 = vsel %vm388, %v384, %v385
          %vm390 = vcmask 1043456
          %v391 = vsel %vm390, %v387, %v389
          %393 = vst [vmem:[#allocation2] sm:$0xff] %v391
        $region72: #{tpu_custom_call.1} parent=47 // pred_fallthru
          _
        %v394 = vld [vmem:[#allocation2] sm:$0xff]
        %v395 = vld [vmem:[%s314] sm:$0xff]
        %v396 = vld [vmem:[%s314 + $0x8] sm:$0xff]
        %v397 = vld [vmem:[%s314 + $0x10] sm:$0xff]
        %v398 = vld [vmem:[%s314 + $0x18] sm:$0xff]
        %v399 = vld [vmem:[%s314 + $0x20] sm:$0xff]
        %v400 = vld [vmem:[%s314 + $0x28] sm:$0xff]
        %v401 = vld [vmem:[%s314 + $0x30] sm:$0x3f]
        %409 = vst [vmem:[#allocation1] ss:$4 sm:$0xff] %v395
        %s410 = scalar_lea.vmem [#allocation1], 32
        %411 = vst [vmem:[%s410] ss:$4 sm:$0xff] %v396
        %v412 = vld.sshfl [vmem:[#allocation1] sm:$0xff pattern:$0x73625140]
        %v413 = vld.sshfl [vmem:[#allocation1 + $0x8] sm:$0xff pattern:$0x73625140]
        %v414 = vld.sshfl [vmem:[#allocation1 + $0x10] sm:$0xff pattern:$0x73625140]
        %v415 = vld.sshfl [vmem:[#allocation1 + $0x18] sm:$0xff pattern:$0x73625140]
        %v416 = vld.sshfl [vmem:[#allocation1 + $0x20] sm:$0xff pattern:$0x73625140]
        %v417 = vld.sshfl [vmem:[#allocation1 + $0x28] sm:$0xff pattern:$0x73625140]
        %v418 = vld.sshfl [vmem:[#allocation1 + $0x30] sm:$0xff pattern:$0x73625140]
        %v419 = vld.sshfl [vmem:[#allocation1 + $0x38] sm:$0xff pattern:$0x73625140]
        %420 = vst [vmem:[#allocation1] ss:$4 sm:$0xff] %v397
        %421 = vst [vmem:[%s410] ss:$4 sm:$0xff] %v398
        %v422 = vld.sshfl [vmem:[#allocation1] sm:$0xff pattern:$0x73625140]
        %v423 = vld.sshfl [vmem:[#allocation1 + $0x8] sm:$0xff pattern:$0x73625140]
        %v424 = vld.sshfl [vmem:[#allocation1 + $0x10] sm:$0xff pattern:$0x73625140]
        %v425 = vld.sshfl [vmem:[#allocation1 + $0x18] sm:$0xff pattern:$0x73625140]
        %v426 = vld.sshfl [vmem:[#allocation1 + $0x20] sm:$0xff pattern:$0x73625140]
        %v427 = vld.sshfl [vmem:[#allocation1 + $0x28] sm:$0xff pattern:$0x73625140]
        %v428 = vld.sshfl [vmem:[#allocation1 + $0x30] sm:$0xff pattern:$0x73625140]
        %v429 = vld.sshfl [vmem:[#allocation1 + $0x38] sm:$0xff pattern:$0x73625140]
        %430 = vst [vmem:[#allocation1] ss:$4 sm:$0xff] %v399
        %431 = vst [vmem:[%s410] ss:$4 sm:$0xff] %v400
        %v432 = vld.sshfl [vmem:[#allocation1] sm:$0xff pattern:$0x73625140]
        %v433 = vld.sshfl [vmem:[#allocation1 + $0x8] sm:$0xff pattern:$0x73625140]
        %v434 = vld.sshfl [vmem:[#allocation1 + $0x10] sm:$0xff pattern:$0x73625140]
        %v435 = vld.sshfl [vmem:[#allocation1 + $0x18] sm:$0xff pattern:$0x73625140]
        %v436 = vld.sshfl [vmem:[#allocation1 + $0x20] sm:$0xff pattern:$0x73625140]
        %v437 = vld.sshfl [vmem:[#allocation1 + $0x28] sm:$0xff pattern:$0x73625140]
        %v438 = vld.sshfl [vmem:[#allocation1 + $0x30] sm:$0xff pattern:$0x73625140]
        %v439 = vld.sshfl [vmem:[#allocation1 + $0x38] sm:$0xff pattern:$0x73625140]
        %440 = vst [vmem:[#allocation1] ss:$4 sm:$0xff] %v401
        %v441 = vld.sshfl [vmem:[#allocation1] sm:$0xff pattern:$0x73625140]
        %v442 = vld.sshfl [vmem:[#allocation1 + $0x8] sm:$0xff pattern:$0x73625140]
        %v443 = vld.sshfl [vmem:[#allocation1 + $0x10] sm:$0xff pattern:$0x73625140]
        %v471 = vpack.c.bf16 %v412, %v412
        %v472 = vpack.c.bf16 %v413, %v413
        %v473 = vpack.c.bf16 %v414, %v414
        %v474 = vpack.c.bf16 %v415, %v415
        %v475 = vpack.c.bf16 %v416, %v416
        %v476 = vpack.c.bf16 %v417, %v417
        %v477 = vpack.c.bf16 %v418, %v418
        %v478 = vpack.c.bf16 %v419, %v419
        %v479 = vpack.c.bf16 %v422, %v422
        %v480 = vpack.c.bf16 %v423, %v423
        %v481 = vpack.c.bf16 %v424, %v424
        %v482 = vpack.c.bf16 %v425, %v425
        %v483 = vpack.c.bf16 %v426, %v426
        %v484 = vpack.c.bf16 %v427, %v427
        %v485 = vpack.c.bf16 %v428, %v428
        %v486 = vpack.c.bf16 %v429, %v429
        %v487 = vpack.c.bf16 %v432, %v432
        %v488 = vpack.c.bf16 %v433, %v433
        %v489 = vpack.c.bf16 %v434, %v434
        %v490 = vpack.c.bf16 %v435, %v435
        %v491 = vpack.c.bf16 %v436, %v436
        %v492 = vpack.c.bf16 %v437, %v437
        %v493 = vpack.c.bf16 %v438, %v438
        %v494 = vpack.c.bf16 %v439, %v439
        %v495 = vpack.c.bf16 %v441, %v441
        %v496 = vpack.c.bf16 %v442, %v442
        %v497 = vpack.c.bf16 %v443, %v443
        %v498 = vld [vmem:[%s324] sm:$0xff]
        %v499 = vld [vmem:[%s324 + $0x8] sm:$0xff]
        %v500 = vld [vmem:[%s324 + $0x10] sm:$0xff]
        %v501 = vld [vmem:[%s324 + $0x18] sm:$0xff]
        %v502 = vld [vmem:[%s324 + $0x20] sm:$0xff]
        %v503 = vld [vmem:[%s324 + $0x28] sm:$0xff]
        %v504 = vld [vmem:[%s324 + $0x30] sm:$0xff]
        %v505 = vld [vmem:[%s324 + $0x38] sm:$0xff]
        %v506 = vld [vmem:[%s324 + $0x40] sm:$0xff]
        %v507 = vld [vmem:[%s324 + $0x48] sm:$0xff]
        %v508 = vld [vmem:[%s324 + $0x50] sm:$0xff]
        %v509 = vld [vmem:[%s324 + $0x58] sm:$0xff]
        %v510 = vld [vmem:[%s324 + $0x60] sm:$0xff]
        %v511 = vld [vmem:[%s324 + $0x68] sm:$0xff]
        %v512 = vld [vmem:[%s324 + $0x70] sm:$0xff]
        %v513 = vld [vmem:[%s324 + $0x78] sm:$0xff]
        %v514 = vld [vmem:[%s324 + $0x80] sm:$0xff]
        %v515 = vld [vmem:[%s324 + $0x88] sm:$0xff]
        %v516 = vld [vmem:[%s324 + $0x90] sm:$0xff]
        %v517 = vld [vmem:[%s324 + $0x98] sm:$0xff]
        %v518 = vld [vmem:[%s324 + $0xa0] sm:$0xff]
        %v519 = vld [vmem:[%s324 + $0xa8] sm:$0xff]
        %v520 = vld [vmem:[%s324 + $0xb0] sm:$0xff]
        %v521 = vld [vmem:[%s324 + $0xb8] sm:$0xff]
        %v522 = vld [vmem:[%s324 + $0xc0] sm:$0xff]
        %v523 = vld [vmem:[%s324 + $0xc8] sm:$0xff]
        %v524 = vld [vmem:[%s324 + $0xd0] sm:$0xff]
        %v525 = vld [vmem:[%s324 + $0xd8] sm:$0xff]
        %v526 = vld [vmem:[%s324 + $0xe0] sm:$0xff]
        %v527 = vld [vmem:[%s324 + $0xe8] sm:$0xff]
        %v528 = vld [vmem:[%s324 + $0xf0] sm:$0xff]
        %v529 = vld [vmem:[%s324 + $0xf8] sm:$0xff]
        %v530 = vld [vmem:[%s324 + $0x100] sm:$0xff]
        %v531 = vld [vmem:[%s324 + $0x108] sm:$0xff]
        %v532 = vld [vmem:[%s324 + $0x110] sm:$0xff]
        %v533 = vld [vmem:[%s324 + $0x118] sm:$0xff]
        %v534 = vld [vmem:[%s324 + $0x120] sm:$0xff]
        %v535 = vld [vmem:[%s324 + $0x128] sm:$0xff]
        %v536 = vld [vmem:[%s324 + $0x130] sm:$0xff]
        %v537 = vld [vmem:[%s324 + $0x138] sm:$0xff]
        %v538 = vld [vmem:[%s324 + $0x140] sm:$0xff]
        %v539 = vld [vmem:[%s324 + $0x148] sm:$0xff]
        %v540 = vld [vmem:[%s324 + $0x150] sm:$0xff]
        %v541 = vld [vmem:[%s324 + $0x158] sm:$0xff]
        %v542 = vld [vmem:[%s324 + $0x160] sm:$0xff]
        %v543 = vld [vmem:[%s324 + $0x168] sm:$0xff]
        %v544 = vld [vmem:[%s324 + $0x170] sm:$0xff]
        %v545 = vld [vmem:[%s324 + $0x178] sm:$0xff]
        %v546 = vld [vmem:[%s324 + $0x180] sm:$0xff]
        %v547 = vld [vmem:[%s324 + $0x188] sm:$0xff]
        %v548 = vld [vmem:[%s324 + $0x190] sm:$0xff]
        %v549 = vld [vmem:[%s324 + $0x198] sm:$0xff]
        %v550 = vld [vmem:[%s324 + $0x1a0] sm:$0xff]
        %v551 = vld [vmem:[%s324 + $0x1a8] sm:$0xff]
        %v552 = vld [vmem:[%s324 + $0x1b0] sm:$0xff]
        %v553 = vld [vmem:[%s324 + $0x1b8] sm:$0xff]
        %v554 = vld [vmem:[%s324 + $0x1c0] sm:$0xff]
        %v555 = vld [vmem:[%s324 + $0x1c8] sm:$0xff]
        %v556 = vld [vmem:[%s324 + $0x1d0] sm:$0xff]
        %v557 = vld [vmem:[%s324 + $0x1d8] sm:$0xff]
        %v558 = vld [vmem:[%s324 + $0x1e0] sm:$0xff]
        %v559 = vld [vmem:[%s324 + $0x1e8] sm:$0xff]
        %v560 = vld [vmem:[%s324 + $0x1f0] sm:$0xff]
        %v561 = vld [vmem:[%s324 + $0x1f8] sm:$0xff]
        %v562 = vld [vmem:[%s324 + $0x200] sm:$0xff]
        %v563 = vld [vmem:[%s324 + $0x208] sm:$0xff]
        %v564 = vld [vmem:[%s324 + $0x210] sm:$0xff]
        %v565 = vld [vmem:[%s324 + $0x218] sm:$0xff]
        %v566 = vld [vmem:[%s324 + $0x220] sm:$0xff]
        %v567 = vld [vmem:[%s324 + $0x228] sm:$0xff]
        %v568 = vld [vmem:[%s324 + $0x230] sm:$0xff]
        %v569 = vld [vmem:[%s324 + $0x238] sm:$0xff]
        %v570 = vld [vmem:[%s324 + $0x240] sm:$0xff]
        %v571 = vld [vmem:[%s324 + $0x248] sm:$0xff]
        %v572 = vld [vmem:[%s324 + $0x250] sm:$0xff]
        %v573 = vld [vmem:[%s324 + $0x258] sm:$0xff]
        %v574 = vld [vmem:[%s324 + $0x260] sm:$0xff]
        %v575 = vld [vmem:[%s324 + $0x268] sm:$0xff]
        %v576 = vld [vmem:[%s324 + $0x270] sm:$0xff]
        %v577 = vld [vmem:[%s324 + $0x278] sm:$0xff]
        %v578 = vld [vmem:[%s324 + $0x280] sm:$0xff]
        %v579 = vld [vmem:[%s324 + $0x288] sm:$0xff]
        %v580 = vld [vmem:[%s324 + $0x290] sm:$0xff]
        %v581 = vld [vmem:[%s324 + $0x298] sm:$0xff]
        %v582 = vld [vmem:[%s324 + $0x2a0] sm:$0xff]
        %v583 = vld [vmem:[%s324 + $0x2a8] sm:$0xff]
        %v584 = vld [vmem:[%s324 + $0x2b0] sm:$0xff]
        %v585 = vld [vmem:[%s324 + $0x2b8] sm:$0xff]
        %v586 = vld [vmem:[%s324 + $0x2c0] sm:$0xff]
        %v587 = vld [vmem:[%s324 + $0x2c8] sm:$0xff]
        %v588 = vld [vmem:[%s324 + $0x2d0] sm:$0xff]
        %v589 = vld [vmem:[%s324 + $0x2d8] sm:$0xff]
        %v590 = vld [vmem:[%s324 + $0x2e0] sm:$0xff]
        %v591 = vld [vmem:[%s324 + $0x2e8] sm:$0xff]
        %v592 = vld [vmem:[%s324 + $0x2f0] sm:$0xff]
        %v593 = vld [vmem:[%s324 + $0x2f8] sm:$0xff]
        %v594 = vld [vmem:[%s324 + $0x300] sm:$0xff]
        %v595 = vld [vmem:[%s324 + $0x308] sm:$0xff]
        %v596 = vld [vmem:[%s324 + $0x310] sm:$0xff]
        %v597 = vld [vmem:[%s324 + $0x318] sm:$0xff]
        %v598 = vld [vmem:[%s324 + $0x320] sm:$0xff]
        %v599 = vld [vmem:[%s324 + $0x328] sm:$0xff]
        %v600 = vld [vmem:[%s324 + $0x330] sm:$0xff]
        %v601 = vld [vmem:[%s324 + $0x338] sm:$0xff]
        %v602 = vld [vmem:[%s324 + $0x340] sm:$0xff]
        %v603 = vld [vmem:[%s324 + $0x348] sm:$0xff]
        %v604 = vld [vmem:[%s324 + $0x350] sm:$0xff]
        %v605 = vld [vmem:[%s324 + $0x358] sm:$0xff]
        %v606 = vld [vmem:[%s324 + $0x360] sm:$0xff]
        %v607 = vld [vmem:[%s324 + $0x368] sm:$0xff]
        %v608 = vld [vmem:[%s324 + $0x370] sm:$0xff]
        %v609 = vld [vmem:[%s324 + $0x378] sm:$0xff]
        %v610 = vld [vmem:[%s324 + $0x380] sm:$0xff]
        %v611 = vld [vmem:[%s324 + $0x388] sm:$0xff]
        %v612 = vld [vmem:[%s324 + $0x390] sm:$0xff]
        %v613 = vld [vmem:[%s324 + $0x398] sm:$0xff]
        %v614 = vld [vmem:[%s324 + $0x3a0] sm:$0xff]
        %v615 = vld [vmem:[%s324 + $0x3a8] sm:$0xff]
        %v616 = vld [vmem:[%s324 + $0x3b0] sm:$0xff]
        %v617 = vld [vmem:[%s324 + $0x3b8] sm:$0xff]
        %v618 = vld [vmem:[%s324 + $0x3c0] sm:$0xff]
        %v619 = vld [vmem:[%s324 + $0x3c8] sm:$0xff]
        %v620 = vld [vmem:[%s324 + $0x3d0] sm:$0xff]
        %v621 = vld [vmem:[%s324 + $0x3d8] sm:$0xff]
        %v622 = vld [vmem:[%s324 + $0x3e0] sm:$0xff]
        %v623 = vld [vmem:[%s324 + $0x3e8] sm:$0xff]
        %v624 = vld [vmem:[%s324 + $0x3f0] sm:$0xff]
        %v625 = vld [vmem:[%s324 + $0x3f8] sm:$0xff]
        %v626 = vld [vmem:[%s324 + $0x400] sm:$0xff]
        %v627 = vld [vmem:[%s324 + $0x408] sm:$0xff]
        %v628 = vld [vmem:[%s324 + $0x410] sm:$0xff]
        %v629 = vld [vmem:[%s324 + $0x418] sm:$0xff]
        %v630 = vld [vmem:[%s324 + $0x420] sm:$0xff]
        %v631 = vld [vmem:[%s324 + $0x428] sm:$0xff]
        %v632 = vld [vmem:[%s324 + $0x430] sm:$0xff]
        %v633 = vld [vmem:[%s324 + $0x438] sm:$0xff]
        %v634 = vld [vmem:[%s324 + $0x440] sm:$0xff]
        %v635 = vld [vmem:[%s324 + $0x448] sm:$0xff]
        %v636 = vld [vmem:[%s324 + $0x450] sm:$0xff]
        %v637 = vld [vmem:[%s324 + $0x458] sm:$0xff]
        %v638 = vld [vmem:[%s324 + $0x460] sm:$0xff]
        %v639 = vld [vmem:[%s324 + $0x468] sm:$0xff]
        %v640 = vld [vmem:[%s324 + $0x470] sm:$0xff]
        %v641 = vld [vmem:[%s324 + $0x478] sm:$0xff]
        %v642 = vld [vmem:[%s324 + $0x480] sm:$0xff]
        %v643 = vld [vmem:[%s324 + $0x488] sm:$0xff]
        %v644 = vld [vmem:[%s324 + $0x490] sm:$0xff]
        %v645 = vld [vmem:[%s324 + $0x498] sm:$0xff]
        %v646 = vld [vmem:[%s324 + $0x4a0] sm:$0xff]
        %v647 = vld [vmem:[%s324 + $0x4a8] sm:$0xff]
        %v648 = vld [vmem:[%s324 + $0x4b0] sm:$0xff]
        %v649 = vld [vmem:[%s324 + $0x4b8] sm:$0xff]
        %v650 = vld [vmem:[%s324 + $0x4c0] sm:$0xff]
        %v651 = vld [vmem:[%s324 + $0x4c8] sm:$0xff]
        %v652 = vld [vmem:[%s324 + $0x4d0] sm:$0xff]
        %v653 = vld [vmem:[%s324 + $0x4d8] sm:$0xff]
        %v654 = vld [vmem:[%s324 + $0x4e0] sm:$0xff]
        %v655 = vld [vmem:[%s324 + $0x4e8] sm:$0xff]
        %v656 = vld [vmem:[%s324 + $0x4f0] sm:$0xff]
        %v657 = vld [vmem:[%s324 + $0x4f8] sm:$0xff]
        %v658 = vld [vmem:[%s324 + $0x500] sm:$0xff]
        %v659 = vld [vmem:[%s324 + $0x508] sm:$0xff]
        %v660 = vld [vmem:[%s324 + $0x510] sm:$0xff]
        %v661 = vld [vmem:[%s324 + $0x518] sm:$0xff]
        %v662 = vld [vmem:[%s324 + $0x520] sm:$0xff]
        %v663 = vld [vmem:[%s324 + $0x528] sm:$0xff]
        %v664 = vld [vmem:[%s324 + $0x530] sm:$0xff]
        %v665 = vld [vmem:[%s324 + $0x538] sm:$0xff]
        %v666 = vld [vmem:[%s324 + $0x540] sm:$0xff]
        %v667 = vld [vmem:[%s324 + $0x548] sm:$0xff]
        %v668 = vld [vmem:[%s324 + $0x550] sm:$0xff]
        %v669 = vld [vmem:[%s324 + $0x558] sm:$0xff]
        %v670 = vld [vmem:[%s324 + $0x560] sm:$0xff]
        %v671 = vld [vmem:[%s324 + $0x568] sm:$0xff]
        %v672 = vld [vmem:[%s324 + $0x570] sm:$0xff]
        %v673 = vld [vmem:[%s324 + $0x578] sm:$0xff]
        %v674 = vld [vmem:[%s324 + $0x580] sm:$0xff]
        %v675 = vld [vmem:[%s324 + $0x588] sm:$0xff]
        %v676 = vld [vmem:[%s324 + $0x590] sm:$0xff]
        %v677 = vld [vmem:[%s324 + $0x598] sm:$0xff]
        %v678 = vld [vmem:[%s324 + $0x5a0] sm:$0xff]
        %v679 = vld [vmem:[%s324 + $0x5a8] sm:$0xff]
        %v680 = vld [vmem:[%s324 + $0x5b0] sm:$0xff]
        %v681 = vld [vmem:[%s324 + $0x5b8] sm:$0xff]
        %v682 = vld [vmem:[%s324 + $0x5c0] sm:$0xff]
        %v683 = vld [vmem:[%s324 + $0x5c8] sm:$0xff]
        %v684 = vld [vmem:[%s324 + $0x5d0] sm:$0xff]
        %v685 = vld [vmem:[%s324 + $0x5d8] sm:$0xff]
        %v686 = vld [vmem:[%s324 + $0x5e0] sm:$0xff]
        %v687 = vld [vmem:[%s324 + $0x5e8] sm:$0xff]
        %v688 = vld [vmem:[%s324 + $0x5f0] sm:$0xff]
        %v689 = vld [vmem:[%s324 + $0x5f8] sm:$0xff]
        %v690 = vld [vmem:[%s324 + $0x600] sm:$0xff]
        %v691 = vld [vmem:[%s324 + $0x608] sm:$0xff]
        %v692 = vld [vmem:[%s324 + $0x610] sm:$0xff]
        %v693 = vld [vmem:[%s324 + $0x618] sm:$0xff]
        %v694 = vld [vmem:[%s324 + $0x620] sm:$0xff]
        %v695 = vld [vmem:[%s324 + $0x628] sm:$0xff]
        %v696 = vld [vmem:[%s324 + $0x630] sm:$0xff]
        %v697 = vld [vmem:[%s324 + $0x638] sm:$0xff]
        %v698 = vld [vmem:[%s324 + $0x640] sm:$0xff]
        %v699 = vld [vmem:[%s324 + $0x648] sm:$0xff]
        %v700 = vld [vmem:[%s324 + $0x650] sm:$0xff]
        %v701 = vld [vmem:[%s324 + $0x658] sm:$0xff]
        %v702 = vld [vmem:[%s324 + $0x660] sm:$0xff]
        %v703 = vld [vmem:[%s324 + $0x668] sm:$0xff]
        %v704 = vld [vmem:[%s324 + $0x670] sm:$0xff]
        %v705 = vld [vmem:[%s324 + $0x678] sm:$0xff]
        %v706 = vld [vmem:[%s324 + $0x680] sm:$0xff]
        %v707 = vld [vmem:[%s324 + $0x688] sm:$0xff]
        %v708 = vld [vmem:[%s324 + $0x690] sm:$0xff]
        %v709 = vld [vmem:[%s324 + $0x698] sm:$0xff]
        %v710 = vld [vmem:[%s324 + $0x6a0] sm:$0xff]
        %v711 = vld [vmem:[%s324 + $0x6a8] sm:$0xff]
        %v712 = vld [vmem:[%s324 + $0x6b0] sm:$0xff]
        %v713 = vld [vmem:[%s324 + $0x6b8] sm:$0xff]
        %v714 = vld [vmem:[%s324 + $0x6c0] sm:$0xff]
        %v715 = vld [vmem:[%s324 + $0x6c8] sm:$0xff]
        %v716 = vld [vmem:[%s324 + $0x6d0] sm:$0xff]
        %v717 = vld [vmem:[%s324 + $0x6d8] sm:$0xff]
        %v718 = vld [vmem:[%s324 + $0x6e0] sm:$0xff]
        %v719 = vld [vmem:[%s324 + $0x6e8] sm:$0xff]
        %v720 = vld [vmem:[%s324 + $0x6f0] sm:$0xff]
        %v721 = vld [vmem:[%s324 + $0x6f8] sm:$0xff]
        %v722 = vld [vmem:[%s324 + $0x700] sm:$0xff]
        %v723 = vld [vmem:[%s324 + $0x708] sm:$0xff]
        %v724 = vld [vmem:[%s324 + $0x710] sm:$0xff]
        %v725 = vld [vmem:[%s324 + $0x718] sm:$0xff]
        %v726 = vld [vmem:[%s324 + $0x720] sm:$0xff]
        %v727 = vld [vmem:[%s324 + $0x728] sm:$0xff]
        %v728 = vld [vmem:[%s324 + $0x730] sm:$0xff]
        %v729 = vld [vmem:[%s324 + $0x738] sm:$0xff]
        %v730 = vld [vmem:[%s324 + $0x740] sm:$0xff]
        %v731 = vld [vmem:[%s324 + $0x748] sm:$0xff]
        %v732 = vld [vmem:[%s324 + $0x750] sm:$0xff]
        %v733 = vld [vmem:[%s324 + $0x758] sm:$0xff]
        %v734 = vld [vmem:[%s324 + $0x760] sm:$0xff]
        %v735 = vld [vmem:[%s324 + $0x768] sm:$0xff]
        %v736 = vld [vmem:[%s324 + $0x770] sm:$0xff]
        %v737 = vld [vmem:[%s324 + $0x778] sm:$0xff]
        %v738 = vld [vmem:[%s324 + $0x780] sm:$0xff]
        %v739 = vld [vmem:[%s324 + $0x788] sm:$0xff]
        %v740 = vld [vmem:[%s324 + $0x790] sm:$0xff]
        %v741 = vld [vmem:[%s324 + $0x798] sm:$0xff]
        %v742 = vld [vmem:[%s324 + $0x7a0] sm:$0xff]
        %v743 = vld [vmem:[%s324 + $0x7a8] sm:$0xff]
        %v744 = vld [vmem:[%s324 + $0x7b0] sm:$0xff]
        %v745 = vld [vmem:[%s324 + $0x7b8] sm:$0xff]
        %v746 = vld [vmem:[%s324 + $0x7c0] sm:$0xff]
        %v747 = vld [vmem:[%s324 + $0x7c8] sm:$0xff]
        %v748 = vld [vmem:[%s324 + $0x7d0] sm:$0xff]
        %v749 = vld [vmem:[%s324 + $0x7d8] sm:$0xff]
        %v750 = vld [vmem:[%s324 + $0x7e0] sm:$0xff]
        %v751 = vld [vmem:[%s324 + $0x7e8] sm:$0xff]
        %v752 = vld [vmem:[%s324 + $0x7f0] sm:$0xff]
        %v753 = vld [vmem:[%s324 + $0x7f8] sm:$0xff]
        %v754 = vld [vmem:[%s324 + $0x800] sm:$0xff]
        %v755 = vld [vmem:[%s324 + $0x808] sm:$0xff]
        %v756 = vld [vmem:[%s324 + $0x810] sm:$0xff]
        %v757 = vld [vmem:[%s324 + $0x818] sm:$0xff]
        %v758 = vld [vmem:[%s324 + $0x820] sm:$0xff]
        %v759 = vld [vmem:[%s324 + $0x828] sm:$0xff]
        %v760 = vld [vmem:[%s324 + $0x830] sm:$0xff]
        %v761 = vld [vmem:[%s324 + $0x838] sm:$0xff]
        %v762 = vld [vmem:[%s324 + $0x840] sm:$0xff]
        %v763 = vld [vmem:[%s324 + $0x848] sm:$0xff]
        %v764 = vld [vmem:[%s324 + $0x850] sm:$0xff]
        %v765 = vld [vmem:[%s324 + $0x858] sm:$0xff]
        %v766 = vld [vmem:[%s324 + $0x860] sm:$0xff]
        %v767 = vld [vmem:[%s324 + $0x868] sm:$0xff]
        %v768 = vld [vmem:[%s324 + $0x870] sm:$0xff]
        %v769 = vld [vmem:[%s324 + $0x878] sm:$0xff]
        %v770 = vld [vmem:[%s324 + $0x880] sm:$0xff]
        %v771 = vld [vmem:[%s324 + $0x888] sm:$0xff]
        %v772 = vld [vmem:[%s324 + $0x890] sm:$0xff]
        %v773 = vld [vmem:[%s324 + $0x898] sm:$0xff]
        %v774 = vld [vmem:[%s324 + $0x8a0] sm:$0xff]
        %v775 = vld [vmem:[%s324 + $0x8a8] sm:$0xff]
        %v776 = vld [vmem:[%s324 + $0x8b0] sm:$0xff]
        %v777 = vld [vmem:[%s324 + $0x8b8] sm:$0xff]
        %v778 = vld [vmem:[%s324 + $0x8c0] sm:$0xff]
        %v779 = vld [vmem:[%s324 + $0x8c8] sm:$0xff]
        %v780 = vld [vmem:[%s324 + $0x8d0] sm:$0xff]
        %v781 = vld [vmem:[%s324 + $0x8d8] sm:$0xff]
        %v782 = vld [vmem:[%s324 + $0x8e0] sm:$0xff]
        %v783 = vld [vmem:[%s324 + $0x8e8] sm:$0xff]
        %v784 = vld [vmem:[%s324 + $0x8f0] sm:$0xff]
        %v785 = vld [vmem:[%s324 + $0x8f8] sm:$0xff]
        %v786 = vld [vmem:[%s324 + $0x900] sm:$0xff]
        %v787 = vld [vmem:[%s324 + $0x908] sm:$0xff]
        %v788 = vld [vmem:[%s324 + $0x910] sm:$0xff]
        %v789 = vld [vmem:[%s324 + $0x918] sm:$0xff]
        %v790 = vld [vmem:[%s324 + $0x920] sm:$0xff]
        %v791 = vld [vmem:[%s324 + $0x928] sm:$0xff]
        %v792 = vld [vmem:[%s324 + $0x930] sm:$0xff]
        %v793 = vld [vmem:[%s324 + $0x938] sm:$0xff]
        %v794 = vld [vmem:[%s324 + $0x940] sm:$0xff]
        %v795 = vld [vmem:[%s324 + $0x948] sm:$0xff]
        %v796 = vld [vmem:[%s324 + $0x950] sm:$0xff]
        %v797 = vld [vmem:[%s324 + $0x958] sm:$0xff]
        %v798 = vld [vmem:[%s324 + $0x960] sm:$0xff]
        %v799 = vld [vmem:[%s324 + $0x968] sm:$0xff]
        %v800 = vld [vmem:[%s324 + $0x970] sm:$0xff]
        %v801 = vld [vmem:[%s324 + $0x978] sm:$0xff]
        %v802 = vld [vmem:[%s324 + $0x980] sm:$0xff]
        %v803 = vld [vmem:[%s324 + $0x988] sm:$0xff]
        %v804 = vld [vmem:[%s324 + $0x990] sm:$0xff]
        %v805 = vld [vmem:[%s324 + $0x998] sm:$0xff]
        %v806 = vld [vmem:[%s324 + $0x9a0] sm:$0xff]
        %v807 = vld [vmem:[%s324 + $0x9a8] sm:$0xff]
        %v808 = vld [vmem:[%s324 + $0x9b0] sm:$0xff]
        %v809 = vld [vmem:[%s324 + $0x9b8] sm:$0xff]
        %v810 = vld [vmem:[%s324 + $0x9c0] sm:$0xff]
        %v811 = vld [vmem:[%s324 + $0x9c8] sm:$0xff]
        %v812 = vld [vmem:[%s324 + $0x9d0] sm:$0xff]
        %v813 = vld [vmem:[%s324 + $0x9d8] sm:$0xff]
        %v814 = vld [vmem:[%s324 + $0x9e0] sm:$0xff]
        %v815 = vld [vmem:[%s324 + $0x9e8] sm:$0xff]
        %v816 = vld [vmem:[%s324 + $0x9f0] sm:$0xff]
        %v817 = vld [vmem:[%s324 + $0x9f8] sm:$0xff]
        %v818 = vld [vmem:[%s324 + $0xa00] sm:$0xff]
        %v819 = vld [vmem:[%s324 + $0xa08] sm:$0xff]
        %v820 = vld [vmem:[%s324 + $0xa10] sm:$0xff]
        %v821 = vld [vmem:[%s324 + $0xa18] sm:$0xff]
        %v822 = vld [vmem:[%s324 + $0xa20] sm:$0xff]
        %v823 = vld [vmem:[%s324 + $0xa28] sm:$0xff]
        %v824 = vld [vmem:[%s324 + $0xa30] sm:$0xff]
        %v825 = vld [vmem:[%s324 + $0xa38] sm:$0xff]
        %v826 = vld [vmem:[%s324 + $0xa40] sm:$0xff]
        %v827 = vld [vmem:[%s324 + $0xa48] sm:$0xff]
        %v828 = vld [vmem:[%s324 + $0xa50] sm:$0xff]
        %v829 = vld [vmem:[%s324 + $0xa58] sm:$0xff]
        %v830 = vld [vmem:[%s324 + $0xa60] sm:$0xff]
        %v831 = vld [vmem:[%s324 + $0xa68] sm:$0xff]
        %v832 = vld [vmem:[%s324 + $0xa70] sm:$0xff]
        %v833 = vld [vmem:[%s324 + $0xa78] sm:$0xff]
        %v834 = vld [vmem:[%s324 + $0xa80] sm:$0xff]
        %v835 = vld [vmem:[%s324 + $0xa88] sm:$0xff]
        %v836 = vld [vmem:[%s324 + $0xa90] sm:$0xff]
        %v837 = vld [vmem:[%s324 + $0xa98] sm:$0xff]
        %v838 = vld [vmem:[%s324 + $0xaa0] sm:$0xff]
        %v839 = vld [vmem:[%s324 + $0xaa8] sm:$0xff]
        %v840 = vld [vmem:[%s324 + $0xab0] sm:$0xff]
        %v841 = vld [vmem:[%s324 + $0xab8] sm:$0xff]
        %v842 = vld [vmem:[%s324 + $0xac0] sm:$0xff]
        %v843 = vld [vmem:[%s324 + $0xac8] sm:$0xff]
        %v844 = vld [vmem:[%s324 + $0xad0] sm:$0xff]
        %v845 = vld [vmem:[%s324 + $0xad8] sm:$0xff]
        %v846 = vld [vmem:[%s324 + $0xae0] sm:$0xff]
        %v847 = vld [vmem:[%s324 + $0xae8] sm:$0xff]
        %v848 = vld [vmem:[%s324 + $0xaf0] sm:$0xff]
        %v849 = vld [vmem:[%s324 + $0xaf8] sm:$0xff]
        %v850 = vld [vmem:[%s324 + $0xb00] sm:$0xff]
        %v851 = vld [vmem:[%s324 + $0xb08] sm:$0xff]
        %v852 = vld [vmem:[%s324 + $0xb10] sm:$0xff]
        %v853 = vld [vmem:[%s324 + $0xb18] sm:$0xff]
        %v854 = vld [vmem:[%s324 + $0xb20] sm:$0xff]
        %v855 = vld [vmem:[%s324 + $0xb28] sm:$0xff]
        %v856 = vld [vmem:[%s324 + $0xb30] sm:$0xff]
        %v857 = vld [vmem:[%s324 + $0xb38] sm:$0xff]
        %v858 = vld [vmem:[%s324 + $0xb40] sm:$0xff]
        %v859 = vld [vmem:[%s324 + $0xb48] sm:$0xff]
        %v860 = vld [vmem:[%s324 + $0xb50] sm:$0xff]
        %v861 = vld [vmem:[%s324 + $0xb58] sm:$0xff]
        %v862 = vld [vmem:[%s324 + $0xb60] sm:$0xff]
        %v863 = vld [vmem:[%s324 + $0xb68] sm:$0xff]
        %v864 = vld [vmem:[%s324 + $0xb70] sm:$0xff]
        %v865 = vld [vmem:[%s324 + $0xb78] sm:$0xff]
        %v866 = vld [vmem:[%s324 + $0xb80] sm:$0xff]
        %v867 = vld [vmem:[%s324 + $0xb88] sm:$0xff]
        %v868 = vld [vmem:[%s324 + $0xb90] sm:$0xff]
        %v869 = vld [vmem:[%s324 + $0xb98] sm:$0xff]
        %v870 = vld [vmem:[%s324 + $0xba0] sm:$0xff]
        %v871 = vld [vmem:[%s324 + $0xba8] sm:$0xff]
        %v872 = vld [vmem:[%s324 + $0xbb0] sm:$0xff]
        %v873 = vld [vmem:[%s324 + $0xbb8] sm:$0xff]
        %v874 = vld [vmem:[%s324 + $0xbc0] sm:$0xff]
        %v875 = vld [vmem:[%s324 + $0xbc8] sm:$0xff]
        %v876 = vld [vmem:[%s324 + $0xbd0] sm:$0xff]
        %v877 = vld [vmem:[%s324 + $0xbd8] sm:$0xff]
        %v878 = vld [vmem:[%s324 + $0xbe0] sm:$0xff]
        %v879 = vld [vmem:[%s324 + $0xbe8] sm:$0xff]
        %v880 = vld [vmem:[%s324 + $0xbf0] sm:$0xff]
        %v881 = vld [vmem:[%s324 + $0xbf8] sm:$0xff]
        %v882 = vld [vmem:[%s324 + $0xc00] sm:$0xff]
        %v883 = vld [vmem:[%s324 + $0xc08] sm:$0xff]
        %v884 = vld [vmem:[%s324 + $0xc10] sm:$0xff]
        %v885 = vld [vmem:[%s324 + $0xc18] sm:$0xff]
        %v886 = vld [vmem:[%s324 + $0xc20] sm:$0xff]
        %v887 = vld [vmem:[%s324 + $0xc28] sm:$0xff]
        %v888 = vld [vmem:[%s324 + $0xc30] sm:$0xff]
        %v889 = vld [vmem:[%s324 + $0xc38] sm:$0xff]
        %v890 = vld [vmem:[%s324 + $0xc40] sm:$0xff]
        %v891 = vld [vmem:[%s324 + $0xc48] sm:$0xff]
        %v892 = vld [vmem:[%s324 + $0xc50] sm:$0xff]
        %v893 = vld [vmem:[%s324 + $0xc58] sm:$0xff]
        %v894 = vld [vmem:[%s324 + $0xc60] sm:$0xff]
        %v895 = vld [vmem:[%s324 + $0xc68] sm:$0xff]
        %v896 = vld [vmem:[%s324 + $0xc70] sm:$0xff]
        %v897 = vld [vmem:[%s324 + $0xc78] sm:$0xff]
        %v898 = vld [vmem:[%s324 + $0xc80] sm:$0xff]
        %v899 = vld [vmem:[%s324 + $0xc88] sm:$0xff]
        %v900 = vld [vmem:[%s324 + $0xc90] sm:$0xff]
        %v901 = vld [vmem:[%s324 + $0xc98] sm:$0xff]
        %v902 = vld [vmem:[%s324 + $0xca0] sm:$0xff]
        %v903 = vld [vmem:[%s324 + $0xca8] sm:$0xff]
        %v904 = vld [vmem:[%s324 + $0xcb0] sm:$0xff]
        %v905 = vld [vmem:[%s324 + $0xcb8] sm:$0xff]
        %v906 = vld [vmem:[%s324 + $0xcc0] sm:$0xff]
        %v907 = vld [vmem:[%s324 + $0xcc8] sm:$0xff]
        %v908 = vld [vmem:[%s324 + $0xcd0] sm:$0xff]
        %v909 = vld [vmem:[%s324 + $0xcd8] sm:$0xff]
        %v910 = vld [vmem:[%s324 + $0xce0] sm:$0xff]
        %v911 = vld [vmem:[%s324 + $0xce8] sm:$0xff]
        %v912 = vld [vmem:[%s324 + $0xcf0] sm:$0xff]
        %v913 = vld [vmem:[%s324 + $0xcf8] sm:$0xff]
        %v914 = vld [vmem:[%s324 + $0xd00] sm:$0xff]
        %v915 = vld [vmem:[%s324 + $0xd08] sm:$0xff]
        %v916 = vld [vmem:[%s324 + $0xd10] sm:$0xff]
        %v917 = vld [vmem:[%s324 + $0xd18] sm:$0xff]
        %v918 = vld [vmem:[%s324 + $0xd20] sm:$0xff]
        %v919 = vld [vmem:[%s324 + $0xd28] sm:$0xff]
        %v920 = vld [vmem:[%s324 + $0xd30] sm:$0xff]
        %v921 = vld [vmem:[%s324 + $0xd38] sm:$0xff]
        %v922 = vld [vmem:[%s324 + $0xd40] sm:$0xff]
        %v923 = vld [vmem:[%s324 + $0xd48] sm:$0xff]
        %v924 = vld [vmem:[%s324 + $0xd50] sm:$0xff]
        %v925 = vld [vmem:[%s324 + $0xd58] sm:$0xff]
        %v926 = vld [vmem:[%s324 + $0xd60] sm:$0xff]
        %v927 = vld [vmem:[%s324 + $0xd68] sm:$0xff]
        %v928 = vld [vmem:[%s324 + $0xd70] sm:$0xff]
        %v929 = vld [vmem:[%s324 + $0xd78] sm:$0xff]
        %v930 = vld [vmem:[%s324 + $0xd80] sm:$0xff]
        %v931 = vld [vmem:[%s324 + $0xd88] sm:$0xff]
        %v932 = vld [vmem:[%s324 + $0xd90] sm:$0xff]
        %v933 = vld [vmem:[%s324 + $0xd98] sm:$0xff]
        %v934 = vld [vmem:[%s324 + $0xda0] sm:$0xff]
        %v935 = vld [vmem:[%s324 + $0xda8] sm:$0xff]
        %v936 = vld [vmem:[%s324 + $0xdb0] sm:$0xff]
        %v937 = vld [vmem:[%s324 + $0xdb8] sm:$0xff]
        %v938 = vld [vmem:[%s324 + $0xdc0] sm:$0xff]
        %v939 = vld [vmem:[%s324 + $0xdc8] sm:$0xff]
        %v940 = vld [vmem:[%s324 + $0xdd0] sm:$0xff]
        %v941 = vld [vmem:[%s324 + $0xdd8] sm:$0xff]
        %v942 = vld [vmem:[%s324 + $0xde0] sm:$0xff]
        %v943 = vld [vmem:[%s324 + $0xde8] sm:$0xff]
        %v944 = vld [vmem:[%s324 + $0xdf0] sm:$0xff]
        %v945 = vld [vmem:[%s324 + $0xdf8] sm:$0xff]
        %v946 = vld [vmem:[%s324 + $0xe00] sm:$0xff]
        %v947 = vld [vmem:[%s324 + $0xe08] sm:$0xff]
        %v948 = vld [vmem:[%s324 + $0xe10] sm:$0xff]
        %v949 = vld [vmem:[%s324 + $0xe18] sm:$0xff]
        %v950 = vld [vmem:[%s324 + $0xe20] sm:$0xff]
        %v951 = vld [vmem:[%s324 + $0xe28] sm:$0xff]
        %v952 = vld [vmem:[%s324 + $0xe30] sm:$0xff]
        %v953 = vld [vmem:[%s324 + $0xe38] sm:$0xff]
        %v954 = vld [vmem:[%s324 + $0xe40] sm:$0xff]
        %v955 = vld [vmem:[%s324 + $0xe48] sm:$0xff]
        %v956 = vld [vmem:[%s324 + $0xe50] sm:$0xff]
        %v957 = vld [vmem:[%s324 + $0xe58] sm:$0xff]
        %v958 = vld [vmem:[%s324 + $0xe60] sm:$0xff]
        %v959 = vld [vmem:[%s324 + $0xe68] sm:$0xff]
        %v960 = vld [vmem:[%s324 + $0xe70] sm:$0xff]
        %v961 = vld [vmem:[%s324 + $0xe78] sm:$0xff]
        %v962 = vld [vmem:[%s324 + $0xe80] sm:$0xff]
        %v963 = vld [vmem:[%s324 + $0xe88] sm:$0xff]
        %v964 = vld [vmem:[%s324 + $0xe90] sm:$0xff]
        %v965 = vld [vmem:[%s324 + $0xe98] sm:$0xff]
        %v966 = vld [vmem:[%s324 + $0xea0] sm:$0xff]
        %v967 = vld [vmem:[%s324 + $0xea8] sm:$0xff]
        %v968 = vld [vmem:[%s324 + $0xeb0] sm:$0xff]
        %v969 = vld [vmem:[%s324 + $0xeb8] sm:$0xff]
        %v970 = vld [vmem:[%s324 + $0xec0] sm:$0xff]
        %v971 = vld [vmem:[%s324 + $0xec8] sm:$0xff]
        %v972 = vld [vmem:[%s324 + $0xed0] sm:$0xff]
        %v973 = vld [vmem:[%s324 + $0xed8] sm:$0xff]
        %v974 = vld [vmem:[%s324 + $0xee0] sm:$0xff]
        %v975 = vld [vmem:[%s324 + $0xee8] sm:$0xff]
        %v976 = vld [vmem:[%s324 + $0xef0] sm:$0xff]
        %v977 = vld [vmem:[%s324 + $0xef8] sm:$0xff]
        %v978 = vld [vmem:[%s324 + $0xf00] sm:$0xff]
        %v979 = vld [vmem:[%s324 + $0xf08] sm:$0xff]
        %v980 = vld [vmem:[%s324 + $0xf10] sm:$0xff]
        %v981 = vld [vmem:[%s324 + $0xf18] sm:$0xff]
        %v982 = vld [vmem:[%s324 + $0xf20] sm:$0xff]
        %v983 = vld [vmem:[%s324 + $0xf28] sm:$0xff]
        %v984 = vld [vmem:[%s324 + $0xf30] sm:$0xff]
        %v985 = vld [vmem:[%s324 + $0xf38] sm:$0xff]
        %v986 = vld [vmem:[%s324 + $0xf40] sm:$0xff]
        %v987 = vld [vmem:[%s324 + $0xf48] sm:$0xff]
        %v988 = vld [vmem:[%s324 + $0xf50] sm:$0xff]
        %v989 = vld [vmem:[%s324 + $0xf58] sm:$0xff]
        %v990 = vld [vmem:[%s324 + $0xf60] sm:$0xff]
        %v991 = vld [vmem:[%s324 + $0xf68] sm:$0xff]
        %v992 = vld [vmem:[%s324 + $0xf70] sm:$0xff]
        %v993 = vld [vmem:[%s324 + $0xf78] sm:$0xff]
        %v994 = vld [vmem:[%s324 + $0xf80] sm:$0xff]
        %v995 = vld [vmem:[%s324 + $0xf88] sm:$0xff]
        %v996 = vld [vmem:[%s324 + $0xf90] sm:$0xff]
        %v997 = vld [vmem:[%s324 + $0xf98] sm:$0xff]
        %v998 = vld [vmem:[%s324 + $0xfa0] sm:$0xff]
        %v999 = vld [vmem:[%s324 + $0xfa8] sm:$0xff]
        %v1000 = vld [vmem:[%s324 + $0xfb0] sm:$0xff]
        %v1001 = vld [vmem:[%s324 + $0xfb8] sm:$0xff]
        %v1002 = vld [vmem:[%s324 + $0xfc0] sm:$0xff]
        %v1003 = vld [vmem:[%s324 + $0xfc8] sm:$0xff]
        %v1004 = vld [vmem:[%s324 + $0xfd0] sm:$0xff]
        %v1005 = vld [vmem:[%s324 + $0xfd8] sm:$0xff]
        %v1006 = vld [vmem:[%s324 + $0xfe0] sm:$0xff]
        %v1007 = vld [vmem:[%s324 + $0xfe8] sm:$0xff]
        %v1008 = vld [vmem:[%s324 + $0xff0] sm:$0xff]
        %v1009 = vld [vmem:[%s324 + $0xff8] sm:$0xff]
        %v1010 = vld [vmem:[%s324 + $0x1000] sm:$0xff]
        %v1011 = vld [vmem:[%s324 + $0x1008] sm:$0xff]
        %v1012 = vld [vmem:[%s324 + $0x1010] sm:$0xff]
        %v1013 = vld [vmem:[%s324 + $0x1018] sm:$0xff]
        %v1014 = vld [vmem:[%s324 + $0x1020] sm:$0xff]
        %v1015 = vld [vmem:[%s324 + $0x1028] sm:$0xff]
        %v1016 = vld [vmem:[%s324 + $0x1030] sm:$0xff]
        %v1017 = vld [vmem:[%s324 + $0x1038] sm:$0xff]
        %v1018 = vld [vmem:[%s324 + $0x1040] sm:$0xff]
        %v1019 = vld [vmem:[%s324 + $0x1048] sm:$0xff]
        %v1020 = vld [vmem:[%s324 + $0x1050] sm:$0xff]
        %v1021 = vld [vmem:[%s324 + $0x1058] sm:$0xff]
        %v1022 = vld [vmem:[%s324 + $0x1060] sm:$0xff]
        %v1023 = vld [vmem:[%s324 + $0x1068] sm:$0xff]
        %v1024 = vld [vmem:[%s324 + $0x1070] sm:$0xff]
        %v1025 = vld [vmem:[%s324 + $0x1078] sm:$0xff]
        %v1026 = vld [vmem:[%s324 + $0x1080] sm:$0xff]
        %v1027 = vld [vmem:[%s324 + $0x1088] sm:$0xff]
        %v1028 = vld [vmem:[%s324 + $0x1090] sm:$0xff]
        %v1029 = vld [vmem:[%s324 + $0x1098] sm:$0xff]
        %v1030 = vld [vmem:[%s324 + $0x10a0] sm:$0xff]
        %v1031 = vld [vmem:[%s324 + $0x10a8] sm:$0xff]
        %v1032 = vld [vmem:[%s324 + $0x10b0] sm:$0xff]
        %v1033 = vld [vmem:[%s324 + $0x10b8] sm:$0xff]
        %v1034 = vld [vmem:[%s324 + $0x10c0] sm:$0xff]
        %v1035 = vld [vmem:[%s324 + $0x10c8] sm:$0xff]
        %v1036 = vld [vmem:[%s324 + $0x10d0] sm:$0xff]
        %v1037 = vld [vmem:[%s324 + $0x10d8] sm:$0xff]
        %v1038 = vld [vmem:[%s324 + $0x10e0] sm:$0xff]
        %v1039 = vld [vmem:[%s324 + $0x10e8] sm:$0xff]
        %v1040 = vld [vmem:[%s324 + $0x10f0] sm:$0xff]
        %v1041 = vld [vmem:[%s324 + $0x10f8] sm:$0xff]
        %v1042 = vld [vmem:[%s324 + $0x1100] sm:$0xff]
        %v1043 = vld [vmem:[%s324 + $0x1108] sm:$0xff]
        %v1044 = vld [vmem:[%s324 + $0x1110] sm:$0xff]
        %v1045 = vld [vmem:[%s324 + $0x1118] sm:$0xff]
        %v1046 = vld [vmem:[%s324 + $0x1120] sm:$0xff]
        %v1047 = vld [vmem:[%s324 + $0x1128] sm:$0xff]
        %v1048 = vld [vmem:[%s324 + $0x1130] sm:$0xff]
        %v1049 = vld [vmem:[%s324 + $0x1138] sm:$0xff]
        %v1050 = vld [vmem:[%s324 + $0x1140] sm:$0xff]
        %v1051 = vld [vmem:[%s324 + $0x1148] sm:$0xff]
        %v1052 = vld [vmem:[%s324 + $0x1150] sm:$0xff]
        %v1053 = vld [vmem:[%s324 + $0x1158] sm:$0xff]
        %v1054 = vld [vmem:[%s324 + $0x1160] sm:$0xff]
        %v1055 = vld [vmem:[%s324 + $0x1168] sm:$0xff]
        %v1056 = vld [vmem:[%s324 + $0x1170] sm:$0xff]
        %v1057 = vld [vmem:[%s324 + $0x1178] sm:$0xff]
        %v1058 = vld [vmem:[%s324 + $0x1180] sm:$0xff]
        %v1059 = vld [vmem:[%s324 + $0x1188] sm:$0xff]
        %v1060 = vld [vmem:[%s324 + $0x1190] sm:$0xff]
        %v1061 = vld [vmem:[%s324 + $0x1198] sm:$0xff]
        %v1062 = vld [vmem:[%s324 + $0x11a0] sm:$0xff]
        %v1063 = vld [vmem:[%s324 + $0x11a8] sm:$0xff]
        %v1064 = vld [vmem:[%s324 + $0x11b0] sm:$0xff]
        %v1065 = vld [vmem:[%s324 + $0x11b8] sm:$0xff]
        %v1066 = vld [vmem:[%s324 + $0x11c0] sm:$0xff]
        %v1067 = vld [vmem:[%s324 + $0x11c8] sm:$0xff]
        %v1068 = vld [vmem:[%s324 + $0x11d0] sm:$0xff]
        %v1069 = vld [vmem:[%s324 + $0x11d8] sm:$0xff]
        %v1070 = vld [vmem:[%s324 + $0x11e0] sm:$0xff]
        %v1071 = vld [vmem:[%s324 + $0x11e8] sm:$0xff]
        %v1072 = vld [vmem:[%s324 + $0x11f0] sm:$0xff]
        %v1073 = vld [vmem:[%s324 + $0x11f8] sm:$0xff]
        %v1074 = vld [vmem:[%s324 + $0x1200] sm:$0xff]
        %v1075 = vld [vmem:[%s324 + $0x1208] sm:$0xff]
        %v1076 = vld [vmem:[%s324 + $0x1210] sm:$0xff]
        %v1077 = vld [vmem:[%s324 + $0x1218] sm:$0xff]
        %v1078 = vld [vmem:[%s324 + $0x1220] sm:$0xff]
        %v1079 = vld [vmem:[%s324 + $0x1228] sm:$0xff]
        %v1080 = vld [vmem:[%s324 + $0x1230] sm:$0xff]
        %v1081 = vld [vmem:[%s324 + $0x1238] sm:$0xff]
        %v1082 = vld [vmem:[%s324 + $0x1240] sm:$0xff]
        %v1083 = vld [vmem:[%s324 + $0x1248] sm:$0xff]
        %v1084 = vld [vmem:[%s324 + $0x1250] sm:$0xff]
        %v1085 = vld [vmem:[%s324 + $0x1258] sm:$0xff]
        %v1086 = vld [vmem:[%s324 + $0x1260] sm:$0xff]
        %v1087 = vld [vmem:[%s324 + $0x1268] sm:$0xff]
        %v1088 = vld [vmem:[%s324 + $0x1270] sm:$0xff]
        %v1089 = vld [vmem:[%s324 + $0x1278] sm:$0xff]
        %v1090 = vld [vmem:[%s324 + $0x1280] sm:$0xff]
        %v1091 = vld [vmem:[%s324 + $0x1288] sm:$0xff]
        %v1092 = vld [vmem:[%s324 + $0x1290] sm:$0xff]
        %v1093 = vld [vmem:[%s324 + $0x1298] sm:$0xff]
        %v1094 = vld [vmem:[%s324 + $0x12a0] sm:$0xff]
        %v1095 = vld [vmem:[%s324 + $0x12a8] sm:$0xff]
        %v1096 = vld [vmem:[%s324 + $0x12b0] sm:$0xff]
        %v1097 = vld [vmem:[%s324 + $0x12b8] sm:$0xff]
        %v1098 = vld [vmem:[%s324 + $0x12c0] sm:$0xff]
        %v1099 = vld [vmem:[%s324 + $0x12c8] sm:$0xff]
        %v1100 = vld [vmem:[%s324 + $0x12d0] sm:$0xff]
        %v1101 = vld [vmem:[%s324 + $0x12d8] sm:$0xff]
        %v1102 = vld [vmem:[%s324 + $0x12e0] sm:$0xff]
        %v1103 = vld [vmem:[%s324 + $0x12e8] sm:$0xff]
        %v1104 = vld [vmem:[%s324 + $0x12f0] sm:$0xff]
        %v1105 = vld [vmem:[%s324 + $0x12f8] sm:$0xff]
        %v1106 = vld [vmem:[%s324 + $0x1300] sm:$0xff]
        %v1107 = vld [vmem:[%s324 + $0x1308] sm:$0xff]
        %v1108 = vld [vmem:[%s324 + $0x1310] sm:$0xff]
        %v1109 = vld [vmem:[%s324 + $0x1318] sm:$0xff]
        %v1110 = vld [vmem:[%s324 + $0x1320] sm:$0xff]
        %v1111 = vld [vmem:[%s324 + $0x1328] sm:$0xff]
        %v1112 = vld [vmem:[%s324 + $0x1330] sm:$0xff]
        %v1113 = vld [vmem:[%s324 + $0x1338] sm:$0xff]
        %v1114 = vld [vmem:[%s324 + $0x1340] sm:$0xff]
        %v1115 = vld [vmem:[%s324 + $0x1348] sm:$0xff]
        %v1116 = vld [vmem:[%s324 + $0x1350] sm:$0xff]
        %v1117 = vld [vmem:[%s324 + $0x1358] sm:$0xff]
        %v1118 = vld [vmem:[%s324 + $0x1360] sm:$0xff]
        %v1119 = vld [vmem:[%s324 + $0x1368] sm:$0xff]
        %v1120 = vld [vmem:[%s324 + $0x1370] sm:$0xff]
        %v1121 = vld [vmem:[%s324 + $0x1378] sm:$0xff]
        %v1122 = vld [vmem:[%s324 + $0x1380] sm:$0xff]
        %v1123 = vld [vmem:[%s324 + $0x1388] sm:$0xff]
        %v1124 = vld [vmem:[%s324 + $0x1390] sm:$0xff]
        %v1125 = vld [vmem:[%s324 + $0x1398] sm:$0xff]
        %v1126 = vld [vmem:[%s324 + $0x13a0] sm:$0xff]
        %v1127 = vld [vmem:[%s324 + $0x13a8] sm:$0xff]
        %v1128 = vld [vmem:[%s324 + $0x13b0] sm:$0xff]
        %v1129 = vld [vmem:[%s324 + $0x13b8] sm:$0xff]
        %v1130 = vld [vmem:[%s324 + $0x13c0] sm:$0xff]
        %v1131 = vld [vmem:[%s324 + $0x13c8] sm:$0xff]
        %v1132 = vld [vmem:[%s324 + $0x13d0] sm:$0xff]
        %v1133 = vld [vmem:[%s324 + $0x13d8] sm:$0xff]
        %v1134 = vld [vmem:[%s324 + $0x13e0] sm:$0xff]
        %v1135 = vld [vmem:[%s324 + $0x13e8] sm:$0xff]
        %v1136 = vld [vmem:[%s324 + $0x13f0] sm:$0xff]
        %v1137 = vld [vmem:[%s324 + $0x13f8] sm:$0xff]
        %v1138 = vld [vmem:[%s324 + $0x1400] sm:$0xff]
        %v1139 = vld [vmem:[%s324 + $0x1408] sm:$0xff]
        %v1140 = vld [vmem:[%s324 + $0x1410] sm:$0xff]
        %v1141 = vld [vmem:[%s324 + $0x1418] sm:$0xff]
        %v1142 = vld [vmem:[%s324 + $0x1420] sm:$0xff]
        %v1143 = vld [vmem:[%s324 + $0x1428] sm:$0xff]
        %v1144 = vld [vmem:[%s324 + $0x1430] sm:$0xff]
        %v1145 = vld [vmem:[%s324 + $0x1438] sm:$0xff]
        %v1146 = vld [vmem:[%s324 + $0x1440] sm:$0xff]
        %v1147 = vld [vmem:[%s324 + $0x1448] sm:$0xff]
        %v1148 = vld [vmem:[%s324 + $0x1450] sm:$0xff]
        %v1149 = vld [vmem:[%s324 + $0x1458] sm:$0xff]
        %v1150 = vld [vmem:[%s324 + $0x1460] sm:$0xff]
        %v1151 = vld [vmem:[%s324 + $0x1468] sm:$0xff]
        %v1152 = vld [vmem:[%s324 + $0x1470] sm:$0xff]
        %v1153 = vld [vmem:[%s324 + $0x1478] sm:$0xff]
        %v1154 = vld [vmem:[%s324 + $0x1480] sm:$0xff]
        %v1155 = vld [vmem:[%s324 + $0x1488] sm:$0xff]
        %v1156 = vld [vmem:[%s324 + $0x1490] sm:$0xff]
        %v1157 = vld [vmem:[%s324 + $0x1498] sm:$0xff]
        %v1158 = vld [vmem:[%s324 + $0x14a0] sm:$0xff]
        %v1159 = vld [vmem:[%s324 + $0x14a8] sm:$0xff]
        %v1160 = vld [vmem:[%s324 + $0x14b0] sm:$0xff]
        %v1161 = vld [vmem:[%s324 + $0x14b8] sm:$0xff]
        %v1162 = vld [vmem:[%s324 + $0x14c0] sm:$0xff]
        %v1163 = vld [vmem:[%s324 + $0x14c8] sm:$0xff]
        %v1164 = vld [vmem:[%s324 + $0x14d0] sm:$0xff]
        %v1165 = vld [vmem:[%s324 + $0x14d8] sm:$0xff]
        %v1166 = vld [vmem:[%s324 + $0x14e0] sm:$0xff]
        %v1167 = vld [vmem:[%s324 + $0x14e8] sm:$0xff]
        %v1168 = vld [vmem:[%s324 + $0x14f0] sm:$0xff]
        %v1169 = vld [vmem:[%s324 + $0x14f8] sm:$0xff]
        %v1170 = vld [vmem:[%s324 + $0x1500] sm:$0xff]
        %v1171 = vld [vmem:[%s324 + $0x1508] sm:$0xff]
        %v1172 = vld [vmem:[%s324 + $0x1510] sm:$0xff]
        %v1173 = vld [vmem:[%s324 + $0x1518] sm:$0xff]
        %v1174 = vld [vmem:[%s324 + $0x1520] sm:$0xff]
        %v1175 = vld [vmem:[%s324 + $0x1528] sm:$0xff]
        %v1176 = vld [vmem:[%s324 + $0x1530] sm:$0xff]
        %v1177 = vld [vmem:[%s324 + $0x1538] sm:$0xff]
        %v1178 = vld [vmem:[%s324 + $0x1540] sm:$0xff]
        %v1179 = vld [vmem:[%s324 + $0x1548] sm:$0xff]
        %v1180 = vld [vmem:[%s324 + $0x1550] sm:$0xff]
        %v1181 = vld [vmem:[%s324 + $0x1558] sm:$0xff]
        %v1182 = vld [vmem:[%s324 + $0x1560] sm:$0xff]
        %v1183 = vld [vmem:[%s324 + $0x1568] sm:$0xff]
        %v1184 = vld [vmem:[%s324 + $0x1570] sm:$0xff]
        %v1185 = vld [vmem:[%s324 + $0x1578] sm:$0xff]
        %v1186 = vld [vmem:[%s324 + $0x1580] sm:$0xff]
        %v1187 = vld [vmem:[%s324 + $0x1588] sm:$0xff]
        %v1188 = vld [vmem:[%s324 + $0x1590] sm:$0xff]
        %v1189 = vld [vmem:[%s324 + $0x1598] sm:$0xff]
        %v1190 = vld [vmem:[%s324 + $0x15a0] sm:$0xff]
        %v1191 = vld [vmem:[%s324 + $0x15a8] sm:$0xff]
        %v1192 = vld [vmem:[%s324 + $0x15b0] sm:$0xff]
        %v1193 = vld [vmem:[%s324 + $0x15b8] sm:$0xff]
        %v1194 = vld [vmem:[%s324 + $0x15c0] sm:$0xff]
        %v1195 = vld [vmem:[%s324 + $0x15c8] sm:$0xff]
        %v1196 = vld [vmem:[%s324 + $0x15d0] sm:$0xff]
        %v1197 = vld [vmem:[%s324 + $0x15d8] sm:$0xff]
        %v1198 = vld [vmem:[%s324 + $0x15e0] sm:$0xff]
        %v1199 = vld [vmem:[%s324 + $0x15e8] sm:$0xff]
        %v1200 = vld [vmem:[%s324 + $0x15f0] sm:$0xff]
        %v1201 = vld [vmem:[%s324 + $0x15f8] sm:$0xff]
        %v1202 = vld [vmem:[%s324 + $0x1600] sm:$0xff]
        %v1203 = vld [vmem:[%s324 + $0x1608] sm:$0xff]
        %v1204 = vld [vmem:[%s324 + $0x1610] sm:$0xff]
        %v1205 = vld [vmem:[%s324 + $0x1618] sm:$0xff]
        %v1206 = vld [vmem:[%s324 + $0x1620] sm:$0xff]
        %v1207 = vld [vmem:[%s324 + $0x1628] sm:$0xff]
        %v1208 = vld [vmem:[%s324 + $0x1630] sm:$0xff]
        %v1209 = vld [vmem:[%s324 + $0x1638] sm:$0xff]
        %v1210 = vld [vmem:[%s324 + $0x1640] sm:$0xff]
        %v1211 = vld [vmem:[%s324 + $0x1648] sm:$0xff]
        %v1212 = vld [vmem:[%s324 + $0x1650] sm:$0xff]
        %v1213 = vld [vmem:[%s324 + $0x1658] sm:$0xff]
        %v1214 = vld [vmem:[%s324 + $0x1660] sm:$0xff]
        %v1215 = vld [vmem:[%s324 + $0x1668] sm:$0xff]
        %v1216 = vld [vmem:[%s324 + $0x1670] sm:$0xff]
        %v1217 = vld [vmem:[%s324 + $0x1678] sm:$0xff]
        %v1218 = vld [vmem:[%s324 + $0x1680] sm:$0xff]
        %v1219 = vld [vmem:[%s324 + $0x1688] sm:$0xff]
        %v1220 = vld [vmem:[%s324 + $0x1690] sm:$0xff]
        %v1221 = vld [vmem:[%s324 + $0x1698] sm:$0xff]
        %v1222 = vld [vmem:[%s324 + $0x16a0] sm:$0xff]
        %v1223 = vld [vmem:[%s324 + $0x16a8] sm:$0xff]
        %v1224 = vld [vmem:[%s324 + $0x16b0] sm:$0xff]
        %v1225 = vld [vmem:[%s324 + $0x16b8] sm:$0xff]
        %v1226 = vld [vmem:[%s324 + $0x16c0] sm:$0xff]
        %v1227 = vld [vmem:[%s324 + $0x16c8] sm:$0xff]
        %v1228 = vld [vmem:[%s324 + $0x16d0] sm:$0xff]
        %v1229 = vld [vmem:[%s324 + $0x16d8] sm:$0xff]
        %v1230 = vld [vmem:[%s324 + $0x16e0] sm:$0xff]
        %v1231 = vld [vmem:[%s324 + $0x16e8] sm:$0xff]
        %v1232 = vld [vmem:[%s324 + $0x16f0] sm:$0xff]
        %v1233 = vld [vmem:[%s324 + $0x16f8] sm:$0xff]
        %v1234 = vld [vmem:[%s324 + $0x1700] sm:$0xff]
        %v1235 = vld [vmem:[%s324 + $0x1708] sm:$0xff]
        %v1236 = vld [vmem:[%s324 + $0x1710] sm:$0xff]
        %v1237 = vld [vmem:[%s324 + $0x1718] sm:$0xff]
        %v1238 = vld [vmem:[%s324 + $0x1720] sm:$0xff]
        %v1239 = vld [vmem:[%s324 + $0x1728] sm:$0xff]
        %v1240 = vld [vmem:[%s324 + $0x1730] sm:$0xff]
        %v1241 = vld [vmem:[%s324 + $0x1738] sm:$0xff]
        %v1242 = vld [vmem:[%s324 + $0x1740] sm:$0xff]
        %v1243 = vld [vmem:[%s324 + $0x1748] sm:$0xff]
        %v1244 = vld [vmem:[%s324 + $0x1750] sm:$0xff]
        %v1245 = vld [vmem:[%s324 + $0x1758] sm:$0xff]
        %v1246 = vld [vmem:[%s324 + $0x1760] sm:$0xff]
        %v1247 = vld [vmem:[%s324 + $0x1768] sm:$0xff]
        %v1248 = vld [vmem:[%s324 + $0x1770] sm:$0xff]
        %v1249 = vld [vmem:[%s324 + $0x1778] sm:$0xff]
        %v1250 = vld [vmem:[%s324 + $0x1780] sm:$0xff]
        %v1251 = vld [vmem:[%s324 + $0x1788] sm:$0xff]
        %v1252 = vld [vmem:[%s324 + $0x1790] sm:$0xff]
        %v1253 = vld [vmem:[%s324 + $0x1798] sm:$0xff]
        %v1254 = vld [vmem:[%s324 + $0x17a0] sm:$0xff]
        %v1255 = vld [vmem:[%s324 + $0x17a8] sm:$0xff]
        %v1256 = vld [vmem:[%s324 + $0x17b0] sm:$0xff]
        %v1257 = vld [vmem:[%s324 + $0x17b8] sm:$0xff]
        %v1258 = vld [vmem:[%s324 + $0x17c0] sm:$0xff]
        %v1259 = vld [vmem:[%s324 + $0x17c8] sm:$0xff]
        %v1260 = vld [vmem:[%s324 + $0x17d0] sm:$0xff]
        %v1261 = vld [vmem:[%s324 + $0x17d8] sm:$0xff]
        %v1262 = vld [vmem:[%s324 + $0x17e0] sm:$0xff]
        %v1263 = vld [vmem:[%s324 + $0x17e8] sm:$0xff]
        %v1264 = vld [vmem:[%s324 + $0x17f0] sm:$0xff]
        %v1265 = vld [vmem:[%s324 + $0x17f8] sm:$0xff]
        %v1266 = vld [vmem:[%s324 + $0x1800] sm:$0xff]
        %v1267 = vld [vmem:[%s324 + $0x1808] sm:$0xff]
        %v1268 = vld [vmem:[%s324 + $0x1810] sm:$0xff]
        %v1269 = vld [vmem:[%s324 + $0x1818] sm:$0xff]
        %v1270 = vld [vmem:[%s324 + $0x1820] sm:$0xff]
        %v1271 = vld [vmem:[%s324 + $0x1828] sm:$0xff]
        %v1272 = vld [vmem:[%s324 + $0x1830] sm:$0xff]
        %v1273 = vld [vmem:[%s324 + $0x1838] sm:$0xff]
        %v1274 = vld [vmem:[%s324 + $0x1840] sm:$0xff]
        %v1275 = vld [vmem:[%s324 + $0x1848] sm:$0xff]
        %v1276 = vld [vmem:[%s324 + $0x1850] sm:$0xff]
        %v1277 = vld [vmem:[%s324 + $0x1858] sm:$0xff]
        %v1278 = vld [vmem:[%s324 + $0x1860] sm:$0xff]
        %v1279 = vld [vmem:[%s324 + $0x1868] sm:$0xff]
        %v1280 = vld [vmem:[%s324 + $0x1870] sm:$0xff]
        %v1281 = vld [vmem:[%s324 + $0x1878] sm:$0xff]
        %v1282 = vld [vmem:[%s324 + $0x1880] sm:$0xff]
        %v1283 = vld [vmem:[%s324 + $0x1888] sm:$0xff]
        %v1284 = vld [vmem:[%s324 + $0x1890] sm:$0xff]
        %v1285 = vld [vmem:[%s324 + $0x1898] sm:$0xff]
        %v1286 = vld [vmem:[%s324 + $0x18a0] sm:$0xff]
        %v1287 = vld [vmem:[%s324 + $0x18a8] sm:$0xff]
        %v1288 = vld [vmem:[%s324 + $0x18b0] sm:$0xff]
        %v1289 = vld [vmem:[%s324 + $0x18b8] sm:$0xff]
        %v1290 = vld [vmem:[%s324 + $0x18c0] sm:$0xff]
        %v1291 = vld [vmem:[%s324 + $0x18c8] sm:$0xff]
        %v1292 = vld [vmem:[%s324 + $0x18d0] sm:$0xff]
        %v1293 = vld [vmem:[%s324 + $0x18d8] sm:$0xff]
        %v1294 = vld [vmem:[%s324 + $0x18e0] sm:$0xff]
        %v1295 = vld [vmem:[%s324 + $0x18e8] sm:$0xff]
        %v1296 = vld [vmem:[%s324 + $0x18f0] sm:$0xff]
        %v1297 = vld [vmem:[%s324 + $0x18f8] sm:$0xff]
        %v1298 = vld [vmem:[%s324 + $0x1900] sm:$0xff]
        %v1299 = vld [vmem:[%s324 + $0x1908] sm:$0xff]
        %v1300 = vld [vmem:[%s324 + $0x1910] sm:$0xff]
        %v1301 = vld [vmem:[%s324 + $0x1918] sm:$0xff]
        %v1302 = vld [vmem:[%s324 + $0x1920] sm:$0xff]
        %v1303 = vld [vmem:[%s324 + $0x1928] sm:$0xff]
        %v1304 = vld [vmem:[%s324 + $0x1930] sm:$0xff]
        %v1305 = vld [vmem:[%s324 + $0x1938] sm:$0xff]
        %v1306 = vld [vmem:[%s324 + $0x1940] sm:$0xff]
        %v1307 = vld [vmem:[%s324 + $0x1948] sm:$0xff]
        %v1308 = vld [vmem:[%s324 + $0x1950] sm:$0xff]
        %v1309 = vld [vmem:[%s324 + $0x1958] sm:$0xff]
        %v1310 = vld [vmem:[%s324 + $0x1960] sm:$0xff]
        %v1311 = vld [vmem:[%s324 + $0x1968] sm:$0xff]
        %v1312 = vld [vmem:[%s324 + $0x1970] sm:$0xff]
        %v1313 = vld [vmem:[%s324 + $0x1978] sm:$0xff]
        %v1314 = vld [vmem:[%s324 + $0x1980] sm:$0xff]
        %v1315 = vld [vmem:[%s324 + $0x1988] sm:$0xff]
        %v1316 = vld [vmem:[%s324 + $0x1990] sm:$0xff]
        %v1317 = vld [vmem:[%s324 + $0x1998] sm:$0xff]
        %v1318 = vld [vmem:[%s324 + $0x19a0] sm:$0xff]
        %v1319 = vld [vmem:[%s324 + $0x19a8] sm:$0xff]
        %v1320 = vld [vmem:[%s324 + $0x19b0] sm:$0xff]
        %v1321 = vld [vmem:[%s324 + $0x19b8] sm:$0xff]
        %v1322 = vld [vmem:[%s324 + $0x19c0] sm:$0xff]
        %v1323 = vld [vmem:[%s324 + $0x19c8] sm:$0xff]
        %v1324 = vld [vmem:[%s324 + $0x19d0] sm:$0xff]
        %v1325 = vld [vmem:[%s324 + $0x19d8] sm:$0xff]
        %v1326 = vld [vmem:[%s324 + $0x19e0] sm:$0xff]
        %v1327 = vld [vmem:[%s324 + $0x19e8] sm:$0xff]
        %v1328 = vld [vmem:[%s324 + $0x19f0] sm:$0xff]
        %v1329 = vld [vmem:[%s324 + $0x19f8] sm:$0xff]
        %v1330 = vld [vmem:[%s324 + $0x1a00] sm:$0xff]
        %v1331 = vld [vmem:[%s324 + $0x1a08] sm:$0xff]
        %v1332 = vld [vmem:[%s324 + $0x1a10] sm:$0xff]
        %v1333 = vld [vmem:[%s324 + $0x1a18] sm:$0xff]
        %v1334 = vld [vmem:[%s324 + $0x1a20] sm:$0xff]
        %v1335 = vld [vmem:[%s324 + $0x1a28] sm:$0xff]
        %v1336 = vld [vmem:[%s324 + $0x1a30] sm:$0xff]
        %v1337 = vld [vmem:[%s324 + $0x1a38] sm:$0xff]
        %v1338 = vld [vmem:[%s324 + $0x1a40] sm:$0xff]
        %v1339 = vld [vmem:[%s324 + $0x1a48] sm:$0xff]
        %v1340 = vld [vmem:[%s324 + $0x1a50] sm:$0xff]
        %v1341 = vld [vmem:[%s324 + $0x1a58] sm:$0xff]
        %v1342 = vld [vmem:[%s324 + $0x1a60] sm:$0xff]
        %v1343 = vld [vmem:[%s324 + $0x1a68] sm:$0xff]
        %v1344 = vld [vmem:[%s324 + $0x1a70] sm:$0xff]
        %v1345 = vld [vmem:[%s324 + $0x1a78] sm:$0xff]
        %v1346 = vld [vmem:[%s324 + $0x1a80] sm:$0xff]
        %v1347 = vld [vmem:[%s324 + $0x1a88] sm:$0xff]
        %v1348 = vld [vmem:[%s324 + $0x1a90] sm:$0xff]
        %v1349 = vld [vmem:[%s324 + $0x1a98] sm:$0xff]
        %v1350 = vld [vmem:[%s324 + $0x1aa0] sm:$0xff]
        %v1351 = vld [vmem:[%s324 + $0x1aa8] sm:$0xff]
        %v1352 = vld [vmem:[%s324 + $0x1ab0] sm:$0xff]
        %v1353 = vld [vmem:[%s324 + $0x1ab8] sm:$0xff]
        %v1354 = vld [vmem:[%s324 + $0x1ac0] sm:$0xff]
        %v1355 = vld [vmem:[%s324 + $0x1ac8] sm:$0xff]
        %v1356 = vld [vmem:[%s324 + $0x1ad0] sm:$0xff]
        %v1357 = vld [vmem:[%s324 + $0x1ad8] sm:$0xff]
        %v1358 = vld [vmem:[%s324 + $0x1ae0] sm:$0xff]
        %v1359 = vld [vmem:[%s324 + $0x1ae8] sm:$0xff]
        %v1360 = vld [vmem:[%s324 + $0x1af0] sm:$0xff]
        %v1361 = vld [vmem:[%s324 + $0x1af8] sm:$0xff]
        %v2226 = vunpack.c.l.b16 %v498
        %v2227 = vunpack.c.h.b16 %v498
        %v2228 = vunpack.c.l.b16 %v499
        %v2229 = vunpack.c.h.b16 %v499
        %v2230 = vunpack.c.l.b16 %v500
        %v2231 = vunpack.c.h.b16 %v500
        %v2232 = vunpack.c.l.b16 %v501
        %v2233 = vunpack.c.h.b16 %v501
        %v2234 = vunpack.c.l.b16 %v502
        %v2235 = vunpack.c.h.b16 %v502
        %v2236 = vunpack.c.l.b16 %v503
        %v2237 = vunpack.c.h.b16 %v503
        %v2238 = vunpack.c.l.b16 %v504
        %v2239 = vunpack.c.h.b16 %v504
        %v2240 = vunpack.c.l.b16 %v505
        %v2241 = vunpack.c.h.b16 %v505
        %v2242 = vunpack.c.l.b16 %v506
        %v2243 = vunpack.c.h.b16 %v506
        %v2244 = vunpack.c.l.b16 %v507
        %v2245 = vunpack.c.h.b16 %v507
        %v2246 = vunpack.c.l.b16 %v508
        %v2247 = vunpack.c.h.b16 %v508
        %v2248 = vunpack.c.l.b16 %v509
        %v2249 = vunpack.c.h.b16 %v509
        %v2250 = vunpack.c.l.b16 %v510
        %v2251 = vunpack.c.h.b16 %v510
        %v2252 = vunpack.c.l.b16 %v511
        %v2253 = vunpack.c.h.b16 %v511
        %v2254 = vunpack.c.l.b16 %v512
        %v2255 = vunpack.c.h.b16 %v512
        %v2256 = vunpack.c.l.b16 %v513
        %v2257 = vunpack.c.h.b16 %v513
        %v2258 = vunpack.c.l.b16 %v514
        %v2259 = vunpack.c.h.b16 %v514
        %v2260 = vunpack.c.l.b16 %v515
        %v2261 = vunpack.c.h.b16 %v515
        %v2262 = vunpack.c.l.b16 %v516
        %v2263 = vunpack.c.h.b16 %v516
        %v2264 = vunpack.c.l.b16 %v517
        %v2265 = vunpack.c.h.b16 %v517
        %v2266 = vunpack.c.l.b16 %v518
        %v2267 = vunpack.c.h.b16 %v518
        %v2268 = vunpack.c.l.b16 %v519
        %v2269 = vunpack.c.h.b16 %v519
        %v2270 = vunpack.c.l.b16 %v520
        %v2271 = vunpack.c.h.b16 %v520
        %v2272 = vunpack.c.l.b16 %v521
        %v2273 = vunpack.c.h.b16 %v521
        %v2274 = vunpack.c.l.b16 %v522
        %v2275 = vunpack.c.h.b16 %v522
        %v2276 = vunpack.c.l.b16 %v523
        %v2277 = vunpack.c.h.b16 %v523
        %v2278 = vunpack.c.l.b16 %v524
        %v2279 = vunpack.c.h.b16 %v524
        %v2280 = vunpack.c.l.b16 %v525
        %v2281 = vunpack.c.h.b16 %v525
        %v2282 = vunpack.c.l.b16 %v526
        %v2283 = vunpack.c.h.b16 %v526
        %v2284 = vunpack.c.l.b16 %v527
        %v2285 = vunpack.c.h.b16 %v527
        %v2286 = vunpack.c.l.b16 %v528
        %v2287 = vunpack.c.h.b16 %v528
        %v2288 = vunpack.c.l.b16 %v529
        %v2289 = vunpack.c.h.b16 %v529
        %v2290 = vunpack.c.l.b16 %v530
        %v2291 = vunpack.c.h.b16 %v530
        %v2292 = vunpack.c.l.b16 %v531
        %v2293 = vunpack.c.h.b16 %v531
        %v2294 = vunpack.c.l.b16 %v532
        %v2295 = vunpack.c.h.b16 %v532
        %v2296 = vunpack.c.l.b16 %v533
        %v2297 = vunpack.c.h.b16 %v533
        %v2298 = vunpack.c.l.b16 %v534
        %v2299 = vunpack.c.h.b16 %v534
        %v2300 = vunpack.c.l.b16 %v535
        %v2301 = vunpack.c.h.b16 %v535
        %v2302 = vunpack.c.l.b16 %v536
        %v2303 = vunpack.c.h.b16 %v536
        %v2304 = vunpack.c.l.b16 %v537
        %v2305 = vunpack.c.h.b16 %v537
        %v2306 = vunpack.c.l.b16 %v538
        %v2307 = vunpack.c.h.b16 %v538
        %v2308 = vunpack.c.l.b16 %v539
        %v2309 = vunpack.c.h.b16 %v539
        %v2310 = vunpack.c.l.b16 %v540
        %v2311 = vunpack.c.h.b16 %v540
        %v2312 = vunpack.c.l.b16 %v541
        %v2313 = vunpack.c.h.b16 %v541
        %v2314 = vunpack.c.l.b16 %v542
        %v2315 = vunpack.c.h.b16 %v542
        %v2316 = vunpack.c.l.b16 %v543
        %v2317 = vunpack.c.h.b16 %v543
        %v2318 = vunpack.c.l.b16 %v544
        %v2319 = vunpack.c.h.b16 %v544
        %v2320 = vunpack.c.l.b16 %v545
        %v2321 = vunpack.c.h.b16 %v545
        %v2322 = vunpack.c.l.b16 %v546
        %v2323 = vunpack.c.h.b16 %v546
        %v2324 = vunpack.c.l.b16 %v547
        %v2325 = vunpack.c.h.b16 %v547
        %v2326 = vunpack.c.l.b16 %v548
        %v2327 = vunpack.c.h.b16 %v548
        %v2328 = vunpack.c.l.b16 %v549
        %v2329 = vunpack.c.h.b16 %v549
        %v2330 = vunpack.c.l.b16 %v550
        %v2331 = vunpack.c.h.b16 %v550
        %v2332 = vunpack.c.l.b16 %v551
        %v2333 = vunpack.c.h.b16 %v551
        %v2334 = vunpack.c.l.b16 %v552
        %v2335 = vunpack.c.h.b16 %v552
        %v2336 = vunpack.c.l.b16 %v553
        %v2337 = vunpack.c.h.b16 %v553
        %v2338 = vunpack.c.l.b16 %v554
        %v2339 = vunpack.c.h.b16 %v554
        %v2340 = vunpack.c.l.b16 %v555
        %v2341 = vunpack.c.h.b16 %v555
        %v2342 = vunpack.c.l.b16 %v556
        %v2343 = vunpack.c.h.b16 %v556
        %v2344 = vunpack.c.l.b16 %v557
        %v2345 = vunpack.c.h.b16 %v557
        %v2346 = vunpack.c.l.b16 %v558
        %v2347 = vunpack.c.h.b16 %v558
        %v2348 = vunpack.c.l.b16 %v559
        %v2349 = vunpack.c.h.b16 %v559
        %v2350 = vunpack.c.l.b16 %v560
        %v2351 = vunpack.c.h.b16 %v560
        %v2352 = vunpack.c.l.b16 %v561
        %v2353 = vunpack.c.h.b16 %v561
        %v2354 = vunpack.c.l.b16 %v562
        %v2355 = vunpack.c.h.b16 %v562
        %v2356 = vunpack.c.l.b16 %v563
        %v2357 = vunpack.c.h.b16 %v563
        %v2358 = vunpack.c.l.b16 %v564
        %v2359 = vunpack.c.h.b16 %v564
        %v2360 = vunpack.c.l.b16 %v565
        %v2361 = vunpack.c.h.b16 %v565
        %v2362 = vunpack.c.l.b16 %v566
        %v2363 = vunpack.c.h.b16 %v566
        %v2364 = vunpack.c.l.b16 %v567
        %v2365 = vunpack.c.h.b16 %v567
        %v2366 = vunpack.c.l.b16 %v568
        %v2367 = vunpack.c.h.b16 %v568
        %v2368 = vunpack.c.l.b16 %v569
        %v2369 = vunpack.c.h.b16 %v569
        %v2370 = vunpack.c.l.b16 %v570
        %v2371 = vunpack.c.h.b16 %v570
        %v2372 = vunpack.c.l.b16 %v571
        %v2373 = vunpack.c.h.b16 %v571
        %v2374 = vunpack.c.l.b16 %v572
        %v2375 = vunpack.c.h.b16 %v572
        %v2376 = vunpack.c.l.b16 %v573
        %v2377 = vunpack.c.h.b16 %v573
        %v2378 = vunpack.c.l.b16 %v574
        %v2379 = vunpack.c.h.b16 %v574
        %v2380 = vunpack.c.l.b16 %v575
        %v2381 = vunpack.c.h.b16 %v575
        %v2382 = vunpack.c.l.b16 %v576
        %v2383 = vunpack.c.h.b16 %v576
        %v2384 = vunpack.c.l.b16 %v577
        %v2385 = vunpack.c.h.b16 %v577
        %v2386 = vunpack.c.l.b16 %v578
        %v2387 = vunpack.c.h.b16 %v578
        %v2388 = vunpack.c.l.b16 %v579
        %v2389 = vunpack.c.h.b16 %v579
        %v2390 = vunpack.c.l.b16 %v580
        %v2391 = vunpack.c.h.b16 %v580
        %v2392 = vunpack.c.l.b16 %v581
        %v2393 = vunpack.c.h.b16 %v581
        %v2394 = vunpack.c.l.b16 %v582
        %v2395 = vunpack.c.h.b16 %v582
        %v2396 = vunpack.c.l.b16 %v583
        %v2397 = vunpack.c.h.b16 %v583
        %v2398 = vunpack.c.l.b16 %v584
        %v2399 = vunpack.c.h.b16 %v584
        %v2400 = vunpack.c.l.b16 %v585
        %v2401 = vunpack.c.h.b16 %v585
        %v2402 = vunpack.c.l.b16 %v586
        %v2403 = vunpack.c.h.b16 %v586
        %v2404 = vunpack.c.l.b16 %v587
        %v2405 = vunpack.c.h.b16 %v587
        %v2406 = vunpack.c.l.b16 %v588
        %v2407 = vunpack.c.h.b16 %v588
        %v2408 = vunpack.c.l.b16 %v589
        %v2409 = vunpack.c.h.b16 %v589
        %v2410 = vunpack.c.l.b16 %v590
        %v2411 = vunpack.c.h.b16 %v590
        %v2412 = vunpack.c.l.b16 %v591
        %v2413 = vunpack.c.h.b16 %v591
        %v2414 = vunpack.c.l.b16 %v592
        %v2415 = vunpack.c.h.b16 %v592
        %v2416 = vunpack.c.l.b16 %v593
        %v2417 = vunpack.c.h.b16 %v593
        %v2418 = vunpack.c.l.b16 %v594
        %v2419 = vunpack.c.h.b16 %v594
        %v2420 = vunpack.c.l.b16 %v595
        %v2421 = vunpack.c.h.b16 %v595
        %v2422 = vunpack.c.l.b16 %v596
        %v2423 = vunpack.c.h.b16 %v596
        %v2424 = vunpack.c.l.b16 %v597
        %v2425 = vunpack.c.h.b16 %v597
        %v2426 = vunpack.c.l.b16 %v598
        %v2427 = vunpack.c.h.b16 %v598
        %v2428 = vunpack.c.l.b16 %v599
        %v2429 = vunpack.c.h.b16 %v599
        %v2430 = vunpack.c.l.b16 %v600
        %v2431 = vunpack.c.h.b16 %v600
        %v2432 = vunpack.c.l.b16 %v601
        %v2433 = vunpack.c.h.b16 %v601
        %v2434 = vunpack.c.l.b16 %v602
        %v2435 = vunpack.c.h.b16 %v602
        %v2436 = vunpack.c.l.b16 %v603
        %v2437 = vunpack.c.h.b16 %v603
        %v2438 = vunpack.c.l.b16 %v604
        %v2439 = vunpack.c.h.b16 %v604
        %v2440 = vunpack.c.l.b16 %v605
        %v2441 = vunpack.c.h.b16 %v605
        %v2442 = vunpack.c.l.b16 %v606
        %v2443 = vunpack.c.h.b16 %v606
        %v2444 = vunpack.c.l.b16 %v607
        %v2445 = vunpack.c.h.b16 %v607
        %v2446 = vunpack.c.l.b16 %v608
        %v2447 = vunpack.c.h.b16 %v608
        %v2448 = vunpack.c.l.b16 %v609
        %v2449 = vunpack.c.h.b16 %v609
        %v2450 = vunpack.c.l.b16 %v610
        %v2451 = vunpack.c.h.b16 %v610
        %v2452 = vunpack.c.l.b16 %v611
        %v2453 = vunpack.c.h.b16 %v611
        %v2454 = vunpack.c.l.b16 %v612
        %v2455 = vunpack.c.h.b16 %v612
        %v2456 = vunpack.c.l.b16 %v613
        %v2457 = vunpack.c.h.b16 %v613
        %v2458 = vunpack.c.l.b16 %v614
        %v2459 = vunpack.c.h.b16 %v614
        %v2460 = vunpack.c.l.b16 %v615
        %v2461 = vunpack.c.h.b16 %v615
        %v2462 = vunpack.c.l.b16 %v616
        %v2463 = vunpack.c.h.b16 %v616
        %v2464 = vunpack.c.l.b16 %v617
        %v2465 = vunpack.c.h.b16 %v617
        %v2466 = vunpack.c.l.b16 %v618
        %v2467 = vunpack.c.h.b16 %v618
        %v2468 = vunpack.c.l.b16 %v619
        %v2469 = vunpack.c.h.b16 %v619
        %v2470 = vunpack.c.l.b16 %v620
        %v2471 = vunpack.c.h.b16 %v620
        %v2472 = vunpack.c.l.b16 %v621
        %v2473 = vunpack.c.h.b16 %v621
        %v2474 = vunpack.c.l.b16 %v622
        %v2475 = vunpack.c.h.b16 %v622
        %v2476 = vunpack.c.l.b16 %v623
        %v2477 = vunpack.c.h.b16 %v623
        %v2478 = vunpack.c.l.b16 %v624
        %v2479 = vunpack.c.h.b16 %v624
        %v2480 = vunpack.c.l.b16 %v625
        %v2481 = vunpack.c.h.b16 %v625
        %v2482 = vunpack.c.l.b16 %v626
        %v2483 = vunpack.c.h.b16 %v626
        %v2484 = vunpack.c.l.b16 %v627
        %v2485 = vunpack.c.h.b16 %v627
        %v2486 = vunpack.c.l.b16 %v628
        %v2487 = vunpack.c.h.b16 %v628
        %v2488 = vunpack.c.l.b16 %v629
        %v2489 = vunpack.c.h.b16 %v629
        %v2490 = vunpack.c.l.b16 %v630
        %v2491 = vunpack.c.h.b16 %v630
        %v2492 = vunpack.c.l.b16 %v631
        %v2493 = vunpack.c.h.b16 %v631
        %v2494 = vunpack.c.l.b16 %v632
        %v2495 = vunpack.c.h.b16 %v632
        %v2496 = vunpack.c.l.b16 %v633
        %v2497 = vunpack.c.h.b16 %v633
        %v2498 = vunpack.c.l.b16 %v634
        %v2499 = vunpack.c.h.b16 %v634
        %v2500 = vunpack.c.l.b16 %v635
        %v2501 = vunpack.c.h.b16 %v635
        %v2502 = vunpack.c.l.b16 %v636
        %v2503 = vunpack.c.h.b16 %v636
        %v2504 = vunpack.c.l.b16 %v637
        %v2505 = vunpack.c.h.b16 %v637
        %v2506 = vunpack.c.l.b16 %v638
        %v2507 = vunpack.c.h.b16 %v638
        %v2508 = vunpack.c.l.b16 %v639
        %v2509 = vunpack.c.h.b16 %v639
        %v2510 = vunpack.c.l.b16 %v640
        %v2511 = vunpack.c.h.b16 %v640
        %v2512 = vunpack.c.l.b16 %v641
        %v2513 = vunpack.c.h.b16 %v641
        %v2514 = vunpack.c.l.b16 %v642
        %v2515 = vunpack.c.h.b16 %v642
        %v2516 = vunpack.c.l.b16 %v643
        %v2517 = vunpack.c.h.b16 %v643
        %v2518 = vunpack.c.l.b16 %v644
        %v2519 = vunpack.c.h.b16 %v644
        %v2520 = vunpack.c.l.b16 %v645
        %v2521 = vunpack.c.h.b16 %v645
        %v2522 = vunpack.c.l.b16 %v646
        %v2523 = vunpack.c.h.b16 %v646
        %v2524 = vunpack.c.l.b16 %v647
        %v2525 = vunpack.c.h.b16 %v647
        %v2526 = vunpack.c.l.b16 %v648
        %v2527 = vunpack.c.h.b16 %v648
        %v2528 = vunpack.c.l.b16 %v649
        %v2529 = vunpack.c.h.b16 %v649
        %v2530 = vunpack.c.l.b16 %v650
        %v2531 = vunpack.c.h.b16 %v650
        %v2532 = vunpack.c.l.b16 %v651
        %v2533 = vunpack.c.h.b16 %v651
        %v2534 = vunpack.c.l.b16 %v652
        %v2535 = vunpack.c.h.b16 %v652
        %v2536 = vunpack.c.l.b16 %v653
        %v2537 = vunpack.c.h.b16 %v653
        %v2538 = vunpack.c.l.b16 %v654
        %v2539 = vunpack.c.h.b16 %v654
        %v2540 = vunpack.c.l.b16 %v655
        %v2541 = vunpack.c.h.b16 %v655
        %v2542 = vunpack.c.l.b16 %v656
        %v2543 = vunpack.c.h.b16 %v656
        %v2544 = vunpack.c.l.b16 %v657
        %v2545 = vunpack.c.h.b16 %v657
        %v2546 = vunpack.c.l.b16 %v658
        %v2547 = vunpack.c.h.b16 %v658
        %v2548 = vunpack.c.l.b16 %v659
        %v2549 = vunpack.c.h.b16 %v659
        %v2550 = vunpack.c.l.b16 %v660
        %v2551 = vunpack.c.h.b16 %v660
        %v2552 = vunpack.c.l.b16 %v661
        %v2553 = vunpack.c.h.b16 %v661
        %v2554 = vunpack.c.l.b16 %v662
        %v2555 = vunpack.c.h.b16 %v662
        %v2556 = vunpack.c.l.b16 %v663
        %v2557 = vunpack.c.h.b16 %v663
        %v2558 = vunpack.c.l.b16 %v664
        %v2559 = vunpack.c.h.b16 %v664
        %v2560 = vunpack.c.l.b16 %v665
        %v2561 = vunpack.c.h.b16 %v665
        %v2562 = vunpack.c.l.b16 %v666
        %v2563 = vunpack.c.h.b16 %v666
        %v2564 = vunpack.c.l.b16 %v667
        %v2565 = vunpack.c.h.b16 %v667
        %v2566 = vunpack.c.l.b16 %v668
        %v2567 = vunpack.c.h.b16 %v668
        %v2568 = vunpack.c.l.b16 %v669
        %v2569 = vunpack.c.h.b16 %v669
        %v2570 = vunpack.c.l.b16 %v670
        %v2571 = vunpack.c.h.b16 %v670
        %v2572 = vunpack.c.l.b16 %v671
        %v2573 = vunpack.c.h.b16 %v671
        %v2574 = vunpack.c.l.b16 %v672
        %v2575 = vunpack.c.h.b16 %v672
        %v2576 = vunpack.c.l.b16 %v673
        %v2577 = vunpack.c.h.b16 %v673
        %v2578 = vunpack.c.l.b16 %v674
        %v2579 = vunpack.c.h.b16 %v674
        %v2580 = vunpack.c.l.b16 %v675
        %v2581 = vunpack.c.h.b16 %v675
        %v2582 = vunpack.c.l.b16 %v676
        %v2583 = vunpack.c.h.b16 %v676
        %v2584 = vunpack.c.l.b16 %v677
        %v2585 = vunpack.c.h.b16 %v677
        %v2586 = vunpack.c.l.b16 %v678
        %v2587 = vunpack.c.h.b16 %v678
        %v2588 = vunpack.c.l.b16 %v679
        %v2589 = vunpack.c.h.b16 %v679
        %v2590 = vunpack.c.l.b16 %v680
        %v2591 = vunpack.c.h.b16 %v680
        %v2592 = vunpack.c.l.b16 %v681
        %v2593 = vunpack.c.h.b16 %v681
        %v2594 = vunpack.c.l.b16 %v682
        %v2595 = vunpack.c.h.b16 %v682
        %v2596 = vunpack.c.l.b16 %v683
        %v2597 = vunpack.c.h.b16 %v683
        %v2598 = vunpack.c.l.b16 %v684
        %v2599 = vunpack.c.h.b16 %v684
        %v2600 = vunpack.c.l.b16 %v685
        %v2601 = vunpack.c.h.b16 %v685
        %v2602 = vunpack.c.l.b16 %v686
        %v2603 = vunpack.c.h.b16 %v686
        %v2604 = vunpack.c.l.b16 %v687
        %v2605 = vunpack.c.h.b16 %v687
        %v2606 = vunpack.c.l.b16 %v688
        %v2607 = vunpack.c.h.b16 %v688
        %v2608 = vunpack.c.l.b16 %v689
        %v2609 = vunpack.c.h.b16 %v689
        %v2610 = vunpack.c.l.b16 %v690
        %v2611 = vunpack.c.h.b16 %v690
        %v2612 = vunpack.c.l.b16 %v691
        %v2613 = vunpack.c.h.b16 %v691
        %v2614 = vunpack.c.l.b16 %v692
        %v2615 = vunpack.c.h.b16 %v692
        %v2616 = vunpack.c.l.b16 %v693
        %v2617 = vunpack.c.h.b16 %v693
        %v2618 = vunpack.c.l.b16 %v694
        %v2619 = vunpack.c.h.b16 %v694
        %v2620 = vunpack.c.l.b16 %v695
        %v2621 = vunpack.c.h.b16 %v695
        %v2622 = vunpack.c.l.b16 %v696
        %v2623 = vunpack.c.h.b16 %v696
        %v2624 = vunpack.c.l.b16 %v697
        %v2625 = vunpack.c.h.b16 %v697
        %v2626 = vunpack.c.l.b16 %v698
        %v2627 = vunpack.c.h.b16 %v698
        %v2628 = vunpack.c.l.b16 %v699
        %v2629 = vunpack.c.h.b16 %v699
        %v2630 = vunpack.c.l.b16 %v700
        %v2631 = vunpack.c.h.b16 %v700
        %v2632 = vunpack.c.l.b16 %v701
        %v2633 = vunpack.c.h.b16 %v701
        %v2634 = vunpack.c.l.b16 %v702
        %v2635 = vunpack.c.h.b16 %v702
        %v2636 = vunpack.c.l.b16 %v703
        %v2637 = vunpack.c.h.b16 %v703
        %v2638 = vunpack.c.l.b16 %v704
        %v2639 = vunpack.c.h.b16 %v704
        %v2640 = vunpack.c.l.b16 %v705
        %v2641 = vunpack.c.h.b16 %v705
        %v2642 = vunpack.c.l.b16 %v706
        %v2643 = vunpack.c.h.b16 %v706
        %v2644 = vunpack.c.l.b16 %v707
        %v2645 = vunpack.c.h.b16 %v707
        %v2646 = vunpack.c.l.b16 %v708
        %v2647 = vunpack.c.h.b16 %v708
        %v2648 = vunpack.c.l.b16 %v709
        %v2649 = vunpack.c.h.b16 %v709
        %v2650 = vunpack.c.l.b16 %v710
        %v2651 = vunpack.c.h.b16 %v710
        %v2652 = vunpack.c.l.b16 %v711
        %v2653 = vunpack.c.h.b16 %v711
        %v2654 = vunpack.c.l.b16 %v712
        %v2655 = vunpack.c.h.b16 %v712
        %v2656 = vunpack.c.l.b16 %v713
        %v2657 = vunpack.c.h.b16 %v713
        %v2658 = vunpack.c.l.b16 %v714
        %v2659 = vunpack.c.h.b16 %v714
        %v2660 = vunpack.c.l.b16 %v715
        %v2661 = vunpack.c.h.b16 %v715
        %v2662 = vunpack.c.l.b16 %v716
        %v2663 = vunpack.c.h.b16 %v716
        %v2664 = vunpack.c.l.b16 %v717
        %v2665 = vunpack.c.h.b16 %v717
        %v2666 = vunpack.c.l.b16 %v718
        %v2667 = vunpack.c.h.b16 %v718
        %v2668 = vunpack.c.l.b16 %v719
        %v2669 = vunpack.c.h.b16 %v719
        %v2670 = vunpack.c.l.b16 %v720
        %v2671 = vunpack.c.h.b16 %v720
        %v2672 = vunpack.c.l.b16 %v721
        %v2673 = vunpack.c.h.b16 %v721
        %v2674 = vunpack.c.l.b16 %v722
        %v2675 = vunpack.c.h.b16 %v722
        %v2676 = vunpack.c.l.b16 %v723
        %v2677 = vunpack.c.h.b16 %v723
        %v2678 = vunpack.c.l.b16 %v724
        %v2679 = vunpack.c.h.b16 %v724
        %v2680 = vunpack.c.l.b16 %v725
        %v2681 = vunpack.c.h.b16 %v725
        %v2682 = vunpack.c.l.b16 %v726
        %v2683 = vunpack.c.h.b16 %v726
        %v2684 = vunpack.c.l.b16 %v727
        %v2685 = vunpack.c.h.b16 %v727
        %v2686 = vunpack.c.l.b16 %v728
        %v2687 = vunpack.c.h.b16 %v728
        %v2688 = vunpack.c.l.b16 %v729
        %v2689 = vunpack.c.h.b16 %v729
        %v2690 = vunpack.c.l.b16 %v730
        %v2691 = vunpack.c.h.b16 %v730
        %v2692 = vunpack.c.l.b16 %v731
        %v2693 = vunpack.c.h.b16 %v731
        %v2694 = vunpack.c.l.b16 %v732
        %v2695 = vunpack.c.h.b16 %v732
        %v2696 = vunpack.c.l.b16 %v733
        %v2697 = vunpack.c.h.b16 %v733
        %v2698 = vunpack.c.l.b16 %v734
        %v2699 = vunpack.c.h.b16 %v734
        %v2700 = vunpack.c.l.b16 %v735
        %v2701 = vunpack.c.h.b16 %v735
        %v2702 = vunpack.c.l.b16 %v736
        %v2703 = vunpack.c.h.b16 %v736
        %v2704 = vunpack.c.l.b16 %v737
        %v2705 = vunpack.c.h.b16 %v737
        %v2706 = vunpack.c.l.b16 %v738
        %v2707 = vunpack.c.h.b16 %v738
        %v2708 = vunpack.c.l.b16 %v739
        %v2709 = vunpack.c.h.b16 %v739
        %v2710 = vunpack.c.l.b16 %v740
        %v2711 = vunpack.c.h.b16 %v740
        %v2712 = vunpack.c.l.b16 %v741
        %v2713 = vunpack.c.h.b16 %v741
        %v2714 = vunpack.c.l.b16 %v742
        %v2715 = vunpack.c.h.b16 %v742
        %v2716 = vunpack.c.l.b16 %v743
        %v2717 = vunpack.c.h.b16 %v743
        %v2718 = vunpack.c.l.b16 %v744
        %v2719 = vunpack.c.h.b16 %v744
        %v2720 = vunpack.c.l.b16 %v745
        %v2721 = vunpack.c.h.b16 %v745
        %v2722 = vunpack.c.l.b16 %v746
        %v2723 = vunpack.c.h.b16 %v746
        %v2724 = vunpack.c.l.b16 %v747
        %v2725 = vunpack.c.h.b16 %v747
        %v2726 = vunpack.c.l.b16 %v748
        %v2727 = vunpack.c.h.b16 %v748
        %v2728 = vunpack.c.l.b16 %v749
        %v2729 = vunpack.c.h.b16 %v749
        %v2730 = vunpack.c.l.b16 %v750
        %v2731 = vunpack.c.h.b16 %v750
        %v2732 = vunpack.c.l.b16 %v751
        %v2733 = vunpack.c.h.b16 %v751
        %v2734 = vunpack.c.l.b16 %v752
        %v2735 = vunpack.c.h.b16 %v752
        %v2736 = vunpack.c.l.b16 %v753
        %v2737 = vunpack.c.h.b16 %v753
        %v2738 = vunpack.c.l.b16 %v754
        %v2739 = vunpack.c.h.b16 %v754
        %v2740 = vunpack.c.l.b16 %v755
        %v2741 = vunpack.c.h.b16 %v755
        %v2742 = vunpack.c.l.b16 %v756
        %v2743 = vunpack.c.h.b16 %v756
        %v2744 = vunpack.c.l.b16 %v757
        %v2745 = vunpack.c.h.b16 %v757
        %v2746 = vunpack.c.l.b16 %v758
        %v2747 = vunpack.c.h.b16 %v758
        %v2748 = vunpack.c.l.b16 %v759
        %v2749 = vunpack.c.h.b16 %v759
        %v2750 = vunpack.c.l.b16 %v760
        %v2751 = vunpack.c.h.b16 %v760
        %v2752 = vunpack.c.l.b16 %v761
        %v2753 = vunpack.c.h.b16 %v761
        %v2754 = vunpack.c.l.b16 %v762
        %v2755 = vunpack.c.h.b16 %v762
        %v2756 = vunpack.c.l.b16 %v763
        %v2757 = vunpack.c.h.b16 %v763
        %v2758 = vunpack.c.l.b16 %v764
        %v2759 = vunpack.c.h.b16 %v764
        %v2760 = vunpack.c.l.b16 %v765
        %v2761 = vunpack.c.h.b16 %v765
        %v2762 = vunpack.c.l.b16 %v766
        %v2763 = vunpack.c.h.b16 %v766
        %v2764 = vunpack.c.l.b16 %v767
        %v2765 = vunpack.c.h.b16 %v767
        %v2766 = vunpack.c.l.b16 %v768
        %v2767 = vunpack.c.h.b16 %v768
        %v2768 = vunpack.c.l.b16 %v769
        %v2769 = vunpack.c.h.b16 %v769
        %v2770 = vunpack.c.l.b16 %v770
        %v2771 = vunpack.c.h.b16 %v770
        %v2772 = vunpack.c.l.b16 %v771
        %v2773 = vunpack.c.h.b16 %v771
        %v2774 = vunpack.c.l.b16 %v772
        %v2775 = vunpack.c.h.b16 %v772
        %v2776 = vunpack.c.l.b16 %v773
        %v2777 = vunpack.c.h.b16 %v773
        %v2778 = vunpack.c.l.b16 %v774
        %v2779 = vunpack.c.h.b16 %v774
        %v2780 = vunpack.c.l.b16 %v775
        %v2781 = vunpack.c.h.b16 %v775
        %v2782 = vunpack.c.l.b16 %v776
        %v2783 = vunpack.c.h.b16 %v776
        %v2784 = vunpack.c.l.b16 %v777
        %v2785 = vunpack.c.h.b16 %v777
        %v2786 = vunpack.c.l.b16 %v778
        %v2787 = vunpack.c.h.b16 %v778
        %v2788 = vunpack.c.l.b16 %v779
        %v2789 = vunpack.c.h.b16 %v779
        %v2790 = vunpack.c.l.b16 %v780
        %v2791 = vunpack.c.h.b16 %v780
        %v2792 = vunpack.c.l.b16 %v781
        %v2793 = vunpack.c.h.b16 %v781
        %v2794 = vunpack.c.l.b16 %v782
        %v2795 = vunpack.c.h.b16 %v782
        %v2796 = vunpack.c.l.b16 %v783
        %v2797 = vunpack.c.h.b16 %v783
        %v2798 = vunpack.c.l.b16 %v784
        %v2799 = vunpack.c.h.b16 %v784
        %v2800 = vunpack.c.l.b16 %v785
        %v2801 = vunpack.c.h.b16 %v785
        %v2802 = vunpack.c.l.b16 %v786
        %v2803 = vunpack.c.h.b16 %v786
        %v2804 = vunpack.c.l.b16 %v787
        %v2805 = vunpack.c.h.b16 %v787
        %v2806 = vunpack.c.l.b16 %v788
        %v2807 = vunpack.c.h.b16 %v788
        %v2808 = vunpack.c.l.b16 %v789
        %v2809 = vunpack.c.h.b16 %v789
        %v2810 = vunpack.c.l.b16 %v790
        %v2811 = vunpack.c.h.b16 %v790
        %v2812 = vunpack.c.l.b16 %v791
        %v2813 = vunpack.c.h.b16 %v791
        %v2814 = vunpack.c.l.b16 %v792
        %v2815 = vunpack.c.h.b16 %v792
        %v2816 = vunpack.c.l.b16 %v793
        %v2817 = vunpack.c.h.b16 %v793
        %v2818 = vunpack.c.l.b16 %v794
        %v2819 = vunpack.c.h.b16 %v794
        %v2820 = vunpack.c.l.b16 %v795
        %v2821 = vunpack.c.h.b16 %v795
        %v2822 = vunpack.c.l.b16 %v796
        %v2823 = vunpack.c.h.b16 %v796
        %v2824 = vunpack.c.l.b16 %v797
        %v2825 = vunpack.c.h.b16 %v797
        %v2826 = vunpack.c.l.b16 %v798
        %v2827 = vunpack.c.h.b16 %v798
        %v2828 = vunpack.c.l.b16 %v799
        %v2829 = vunpack.c.h.b16 %v799
        %v2830 = vunpack.c.l.b16 %v800
        %v2831 = vunpack.c.h.b16 %v800
        %v2832 = vunpack.c.l.b16 %v801
        %v2833 = vunpack.c.h.b16 %v801
        %v2834 = vunpack.c.l.b16 %v802
        %v2835 = vunpack.c.h.b16 %v802
        %v2836 = vunpack.c.l.b16 %v803
        %v2837 = vunpack.c.h.b16 %v803
        %v2838 = vunpack.c.l.b16 %v804
        %v2839 = vunpack.c.h.b16 %v804
        %v2840 = vunpack.c.l.b16 %v805
        %v2841 = vunpack.c.h.b16 %v805
        %v2842 = vunpack.c.l.b16 %v806
        %v2843 = vunpack.c.h.b16 %v806
        %v2844 = vunpack.c.l.b16 %v807
        %v2845 = vunpack.c.h.b16 %v807
        %v2846 = vunpack.c.l.b16 %v808
        %v2847 = vunpack.c.h.b16 %v808
        %v2848 = vunpack.c.l.b16 %v809
        %v2849 = vunpack.c.h.b16 %v809
        %v2850 = vunpack.c.l.b16 %v810
        %v2851 = vunpack.c.h.b16 %v810
        %v2852 = vunpack.c.l.b16 %v811
        %v2853 = vunpack.c.h.b16 %v811
        %v2854 = vunpack.c.l.b16 %v812
        %v2855 = vunpack.c.h.b16 %v812
        %v2856 = vunpack.c.l.b16 %v813
        %v2857 = vunpack.c.h.b16 %v813
        %v2858 = vunpack.c.l.b16 %v814
        %v2859 = vunpack.c.h.b16 %v814
        %v2860 = vunpack.c.l.b16 %v815
        %v2861 = vunpack.c.h.b16 %v815
        %v2862 = vunpack.c.l.b16 %v816
        %v2863 = vunpack.c.h.b16 %v816
        %v2864 = vunpack.c.l.b16 %v817
        %v2865 = vunpack.c.h.b16 %v817
        %v2866 = vunpack.c.l.b16 %v818
        %v2867 = vunpack.c.h.b16 %v818
        %v2868 = vunpack.c.l.b16 %v819
        %v2869 = vunpack.c.h.b16 %v819
        %v2870 = vunpack.c.l.b16 %v820
        %v2871 = vunpack.c.h.b16 %v820
        %v2872 = vunpack.c.l.b16 %v821
        %v2873 = vunpack.c.h.b16 %v821
        %v2874 = vunpack.c.l.b16 %v822
        %v2875 = vunpack.c.h.b16 %v822
        %v2876 = vunpack.c.l.b16 %v823
        %v2877 = vunpack.c.h.b16 %v823
        %v2878 = vunpack.c.l.b16 %v824
        %v2879 = vunpack.c.h.b16 %v824
        %v2880 = vunpack.c.l.b16 %v825
        %v2881 = vunpack.c.h.b16 %v825
        %v2882 = vunpack.c.l.b16 %v826
        %v2883 = vunpack.c.h.b16 %v826
        %v2884 = vunpack.c.l.b16 %v827
        %v2885 = vunpack.c.h.b16 %v827
        %v2886 = vunpack.c.l.b16 %v828
        %v2887 = vunpack.c.h.b16 %v828
        %v2888 = vunpack.c.l.b16 %v829
        %v2889 = vunpack.c.h.b16 %v829
        %v2890 = vunpack.c.l.b16 %v830
        %v2891 = vunpack.c.h.b16 %v830
        %v2892 = vunpack.c.l.b16 %v831
        %v2893 = vunpack.c.h.b16 %v831
        %v2894 = vunpack.c.l.b16 %v832
        %v2895 = vunpack.c.h.b16 %v832
        %v2896 = vunpack.c.l.b16 %v833
        %v2897 = vunpack.c.h.b16 %v833
        %v2898 = vunpack.c.l.b16 %v834
        %v2899 = vunpack.c.h.b16 %v834
        %v2900 = vunpack.c.l.b16 %v835
        %v2901 = vunpack.c.h.b16 %v835
        %v2902 = vunpack.c.l.b16 %v836
        %v2903 = vunpack.c.h.b16 %v836
        %v2904 = vunpack.c.l.b16 %v837
        %v2905 = vunpack.c.h.b16 %v837
        %v2906 = vunpack.c.l.b16 %v838
        %v2907 = vunpack.c.h.b16 %v838
        %v2908 = vunpack.c.l.b16 %v839
        %v2909 = vunpack.c.h.b16 %v839
        %v2910 = vunpack.c.l.b16 %v840
        %v2911 = vunpack.c.h.b16 %v840
        %v2912 = vunpack.c.l.b16 %v841
        %v2913 = vunpack.c.h.b16 %v841
        %v2914 = vunpack.c.l.b16 %v842
        %v2915 = vunpack.c.h.b16 %v842
        %v2916 = vunpack.c.l.b16 %v843
        %v2917 = vunpack.c.h.b16 %v843
        %v2918 = vunpack.c.l.b16 %v844
        %v2919 = vunpack.c.h.b16 %v844
        %v2920 = vunpack.c.l.b16 %v845
        %v2921 = vunpack.c.h.b16 %v845
        %v2922 = vunpack.c.l.b16 %v846
        %v2923 = vunpack.c.h.b16 %v846
        %v2924 = vunpack.c.l.b16 %v847
        %v2925 = vunpack.c.h.b16 %v847
        %v2926 = vunpack.c.l.b16 %v848
        %v2927 = vunpack.c.h.b16 %v848
        %v2928 = vunpack.c.l.b16 %v849
        %v2929 = vunpack.c.h.b16 %v849
        %v2930 = vunpack.c.l.b16 %v850
        %v2931 = vunpack.c.h.b16 %v850
        %v2932 = vunpack.c.l.b16 %v851
        %v2933 = vunpack.c.h.b16 %v851
        %v2934 = vunpack.c.l.b16 %v852
        %v2935 = vunpack.c.h.b16 %v852
        %v2936 = vunpack.c.l.b16 %v853
        %v2937 = vunpack.c.h.b16 %v853
        %v2938 = vunpack.c.l.b16 %v854
        %v2939 = vunpack.c.h.b16 %v854
        %v2940 = vunpack.c.l.b16 %v855
        %v2941 = vunpack.c.h.b16 %v855
        %v2942 = vunpack.c.l.b16 %v856
        %v2943 = vunpack.c.h.b16 %v856
        %v2944 = vunpack.c.l.b16 %v857
        %v2945 = vunpack.c.h.b16 %v857
        %v2946 = vunpack.c.l.b16 %v858
        %v2947 = vunpack.c.h.b16 %v858
        %v2948 = vunpack.c.l.b16 %v859
        %v2949 = vunpack.c.h.b16 %v859
        %v2950 = vunpack.c.l.b16 %v860
        %v2951 = vunpack.c.h.b16 %v860
        %v2952 = vunpack.c.l.b16 %v861
        %v2953 = vunpack.c.h.b16 %v861
        %v2954 = vunpack.c.l.b16 %v862
        %v2955 = vunpack.c.h.b16 %v862
        %v2956 = vunpack.c.l.b16 %v863
        %v2957 = vunpack.c.h.b16 %v863
        %v2958 = vunpack.c.l.b16 %v864
        %v2959 = vunpack.c.h.b16 %v864
        %v2960 = vunpack.c.l.b16 %v865
        %v2961 = vunpack.c.h.b16 %v865
        %v2962 = vunpack.c.l.b16 %v866
        %v2963 = vunpack.c.h.b16 %v866
        %v2964 = vunpack.c.l.b16 %v867
        %v2965 = vunpack.c.h.b16 %v867
        %v2966 = vunpack.c.l.b16 %v868
        %v2967 = vunpack.c.h.b16 %v868
        %v2968 = vunpack.c.l.b16 %v869
        %v2969 = vunpack.c.h.b16 %v869
        %v2970 = vunpack.c.l.b16 %v870
        %v2971 = vunpack.c.h.b16 %v870
        %v2972 = vunpack.c.l.b16 %v871
        %v2973 = vunpack.c.h.b16 %v871
        %v2974 = vunpack.c.l.b16 %v872
        %v2975 = vunpack.c.h.b16 %v872
        %v2976 = vunpack.c.l.b16 %v873
        %v2977 = vunpack.c.h.b16 %v873
        %v2978 = vunpack.c.l.b16 %v874
        %v2979 = vunpack.c.h.b16 %v874
        %v2980 = vunpack.c.l.b16 %v875
        %v2981 = vunpack.c.h.b16 %v875
        %v2982 = vunpack.c.l.b16 %v876
        %v2983 = vunpack.c.h.b16 %v876
        %v2984 = vunpack.c.l.b16 %v877
        %v2985 = vunpack.c.h.b16 %v877
        %v2986 = vunpack.c.l.b16 %v878
        %v2987 = vunpack.c.h.b16 %v878
        %v2988 = vunpack.c.l.b16 %v879
        %v2989 = vunpack.c.h.b16 %v879
        %v2990 = vunpack.c.l.b16 %v880
        %v2991 = vunpack.c.h.b16 %v880
        %v2992 = vunpack.c.l.b16 %v881
        %v2993 = vunpack.c.h.b16 %v881
        %v2994 = vunpack.c.l.b16 %v882
        %v2995 = vunpack.c.h.b16 %v882
        %v2996 = vunpack.c.l.b16 %v883
        %v2997 = vunpack.c.h.b16 %v883
        %v2998 = vunpack.c.l.b16 %v884
        %v2999 = vunpack.c.h.b16 %v884
        %v3000 = vunpack.c.l.b16 %v885
        %v3001 = vunpack.c.h.b16 %v885
        %v3002 = vunpack.c.l.b16 %v886
        %v3003 = vunpack.c.h.b16 %v886
        %v3004 = vunpack.c.l.b16 %v887
        %v3005 = vunpack.c.h.b16 %v887
        %v3006 = vunpack.c.l.b16 %v888
        %v3007 = vunpack.c.h.b16 %v888
        %v3008 = vunpack.c.l.b16 %v889
        %v3009 = vunpack.c.h.b16 %v889
        %v3010 = vunpack.c.l.b16 %v890
        %v3011 = vunpack.c.h.b16 %v890
        %v3012 = vunpack.c.l.b16 %v891
        %v3013 = vunpack.c.h.b16 %v891
        %v3014 = vunpack.c.l.b16 %v892
        %v3015 = vunpack.c.h.b16 %v892
        %v3016 = vunpack.c.l.b16 %v893
        %v3017 = vunpack.c.h.b16 %v893
        %v3018 = vunpack.c.l.b16 %v894
        %v3019 = vunpack.c.h.b16 %v894
        %v3020 = vunpack.c.l.b16 %v895
        %v3021 = vunpack.c.h.b16 %v895
        %v3022 = vunpack.c.l.b16 %v896
        %v3023 = vunpack.c.h.b16 %v896
        %v3024 = vunpack.c.l.b16 %v897
        %v3025 = vunpack.c.h.b16 %v897
        %v3026 = vunpack.c.l.b16 %v898
        %v3027 = vunpack.c.h.b16 %v898
        %v3028 = vunpack.c.l.b16 %v899
        %v3029 = vunpack.c.h.b16 %v899
        %v3030 = vunpack.c.l.b16 %v900
        %v3031 = vunpack.c.h.b16 %v900
        %v3032 = vunpack.c.l.b16 %v901
        %v3033 = vunpack.c.h.b16 %v901
        %v3034 = vunpack.c.l.b16 %v902
        %v3035 = vunpack.c.h.b16 %v902
        %v3036 = vunpack.c.l.b16 %v903
        %v3037 = vunpack.c.h.b16 %v903
        %v3038 = vunpack.c.l.b16 %v904
        %v3039 = vunpack.c.h.b16 %v904
        %v3040 = vunpack.c.l.b16 %v905
        %v3041 = vunpack.c.h.b16 %v905
        %v3042 = vunpack.c.l.b16 %v906
        %v3043 = vunpack.c.h.b16 %v906
        %v3044 = vunpack.c.l.b16 %v907
        %v3045 = vunpack.c.h.b16 %v907
        %v3046 = vunpack.c.l.b16 %v908
        %v3047 = vunpack.c.h.b16 %v908
        %v3048 = vunpack.c.l.b16 %v909
        %v3049 = vunpack.c.h.b16 %v909
        %v3050 = vunpack.c.l.b16 %v910
        %v3051 = vunpack.c.h.b16 %v910
        %v3052 = vunpack.c.l.b16 %v911
        %v3053 = vunpack.c.h.b16 %v911
        %v3054 = vunpack.c.l.b16 %v912
        %v3055 = vunpack.c.h.b16 %v912
        %v3056 = vunpack.c.l.b16 %v913
        %v3057 = vunpack.c.h.b16 %v913
        %v3058 = vunpack.c.l.b16 %v914
        %v3059 = vunpack.c.h.b16 %v914
        %v3060 = vunpack.c.l.b16 %v915
        %v3061 = vunpack.c.h.b16 %v915
        %v3062 = vunpack.c.l.b16 %v916
        %v3063 = vunpack.c.h.b16 %v916
        %v3064 = vunpack.c.l.b16 %v917
        %v3065 = vunpack.c.h.b16 %v917
        %v3066 = vunpack.c.l.b16 %v918
        %v3067 = vunpack.c.h.b16 %v918
        %v3068 = vunpack.c.l.b16 %v919
        %v3069 = vunpack.c.h.b16 %v919
        %v3070 = vunpack.c.l.b16 %v920
        %v3071 = vunpack.c.h.b16 %v920
        %v3072 = vunpack.c.l.b16 %v921
        %v3073 = vunpack.c.h.b16 %v921
        %v3074 = vunpack.c.l.b16 %v922
        %v3075 = vunpack.c.h.b16 %v922
        %v3076 = vunpack.c.l.b16 %v923
        %v3077 = vunpack.c.h.b16 %v923
        %v3078 = vunpack.c.l.b16 %v924
        %v3079 = vunpack.c.h.b16 %v924
        %v3080 = vunpack.c.l.b16 %v925
        %v3081 = vunpack.c.h.b16 %v925
        %v3082 = vunpack.c.l.b16 %v926
        %v3083 = vunpack.c.h.b16 %v926
        %v3084 = vunpack.c.l.b16 %v927
        %v3085 = vunpack.c.h.b16 %v927
        %v3086 = vunpack.c.l.b16 %v928
        %v3087 = vunpack.c.h.b16 %v928
        %v3088 = vunpack.c.l.b16 %v929
        %v3089 = vunpack.c.h.b16 %v929
        %v3090 = vunpack.c.l.b16 %v930
        %v3091 = vunpack.c.h.b16 %v930
        %v3092 = vunpack.c.l.b16 %v931
        %v3093 = vunpack.c.h.b16 %v931
        %v3094 = vunpack.c.l.b16 %v932
        %v3095 = vunpack.c.h.b16 %v932
        %v3096 = vunpack.c.l.b16 %v933
        %v3097 = vunpack.c.h.b16 %v933
        %v3098 = vunpack.c.l.b16 %v934
        %v3099 = vunpack.c.h.b16 %v934
        %v3100 = vunpack.c.l.b16 %v935
        %v3101 = vunpack.c.h.b16 %v935
        %v3102 = vunpack.c.l.b16 %v936
        %v3103 = vunpack.c.h.b16 %v936
        %v3104 = vunpack.c.l.b16 %v937
        %v3105 = vunpack.c.h.b16 %v937
        %v3106 = vunpack.c.l.b16 %v938
        %v3107 = vunpack.c.h.b16 %v938
        %v3108 = vunpack.c.l.b16 %v939
        %v3109 = vunpack.c.h.b16 %v939
        %v3110 = vunpack.c.l.b16 %v940
        %v3111 = vunpack.c.h.b16 %v940
        %v3112 = vunpack.c.l.b16 %v941
        %v3113 = vunpack.c.h.b16 %v941
        %v3114 = vunpack.c.l.b16 %v942
        %v3115 = vunpack.c.h.b16 %v942
        %v3116 = vunpack.c.l.b16 %v943
        %v3117 = vunpack.c.h.b16 %v943
        %v3118 = vunpack.c.l.b16 %v944
        %v3119 = vunpack.c.h.b16 %v944
        %v3120 = vunpack.c.l.b16 %v945
        %v3121 = vunpack.c.h.b16 %v945
        %v3122 = vunpack.c.l.b16 %v946
        %v3123 = vunpack.c.h.b16 %v946
        %v3124 = vunpack.c.l.b16 %v947
        %v3125 = vunpack.c.h.b16 %v947
        %v3126 = vunpack.c.l.b16 %v948
        %v3127 = vunpack.c.h.b16 %v948
        %v3128 = vunpack.c.l.b16 %v949
        %v3129 = vunpack.c.h.b16 %v949
        %v3130 = vunpack.c.l.b16 %v950
        %v3131 = vunpack.c.h.b16 %v950
        %v3132 = vunpack.c.l.b16 %v951
        %v3133 = vunpack.c.h.b16 %v951
        %v3134 = vunpack.c.l.b16 %v952
        %v3135 = vunpack.c.h.b16 %v952
        %v3136 = vunpack.c.l.b16 %v953
        %v3137 = vunpack.c.h.b16 %v953
        %v3138 = vunpack.c.l.b16 %v954
        %v3139 = vunpack.c.h.b16 %v954
        %v3140 = vunpack.c.l.b16 %v955
        %v3141 = vunpack.c.h.b16 %v955
        %v3142 = vunpack.c.l.b16 %v956
        %v3143 = vunpack.c.h.b16 %v956
        %v3144 = vunpack.c.l.b16 %v957
        %v3145 = vunpack.c.h.b16 %v957
        %v3146 = vunpack.c.l.b16 %v958
        %v3147 = vunpack.c.h.b16 %v958
        %v3148 = vunpack.c.l.b16 %v959
        %v3149 = vunpack.c.h.b16 %v959
        %v3150 = vunpack.c.l.b16 %v960
        %v3151 = vunpack.c.h.b16 %v960
        %v3152 = vunpack.c.l.b16 %v961
        %v3153 = vunpack.c.h.b16 %v961
        %v3154 = vunpack.c.l.b16 %v962
        %v3155 = vunpack.c.h.b16 %v962
        %v3156 = vunpack.c.l.b16 %v963
        %v3157 = vunpack.c.h.b16 %v963
        %v3158 = vunpack.c.l.b16 %v964
        %v3159 = vunpack.c.h.b16 %v964
        %v3160 = vunpack.c.l.b16 %v965
        %v3161 = vunpack.c.h.b16 %v965
        %v3162 = vunpack.c.l.b16 %v966
        %v3163 = vunpack.c.h.b16 %v966
        %v3164 = vunpack.c.l.b16 %v967
        %v3165 = vunpack.c.h.b16 %v967
        %v3166 = vunpack.c.l.b16 %v968
        %v3167 = vunpack.c.h.b16 %v968
        %v3168 = vunpack.c.l.b16 %v969
        %v3169 = vunpack.c.h.b16 %v969
        %v3170 = vunpack.c.l.b16 %v970
        %v3171 = vunpack.c.h.b16 %v970
        %v3172 = vunpack.c.l.b16 %v971
        %v3173 = vunpack.c.h.b16 %v971
        %v3174 = vunpack.c.l.b16 %v972
        %v3175 = vunpack.c.h.b16 %v972
        %v3176 = vunpack.c.l.b16 %v973
        %v3177 = vunpack.c.h.b16 %v973
        %v3178 = vunpack.c.l.b16 %v974
        %v3179 = vunpack.c.h.b16 %v974
        %v3180 = vunpack.c.l.b16 %v975
        %v3181 = vunpack.c.h.b16 %v975
        %v3182 = vunpack.c.l.b16 %v976
        %v3183 = vunpack.c.h.b16 %v976
        %v3184 = vunpack.c.l.b16 %v977
        %v3185 = vunpack.c.h.b16 %v977
        %v3186 = vunpack.c.l.b16 %v978
        %v3187 = vunpack.c.h.b16 %v978
        %v3188 = vunpack.c.l.b16 %v979
        %v3189 = vunpack.c.h.b16 %v979
        %v3190 = vunpack.c.l.b16 %v980
        %v3191 = vunpack.c.h.b16 %v980
        %v3192 = vunpack.c.l.b16 %v981
        %v3193 = vunpack.c.h.b16 %v981
        %v3194 = vunpack.c.l.b16 %v982
        %v3195 = vunpack.c.h.b16 %v982
        %v3196 = vunpack.c.l.b16 %v983
        %v3197 = vunpack.c.h.b16 %v983
        %v3198 = vunpack.c.l.b16 %v984
        %v3199 = vunpack.c.h.b16 %v984
        %v3200 = vunpack.c.l.b16 %v985
        %v3201 = vunpack.c.h.b16 %v985
        %v3202 = vunpack.c.l.b16 %v986
        %v3203 = vunpack.c.h.b16 %v986
        %v3204 = vunpack.c.l.b16 %v987
        %v3205 = vunpack.c.h.b16 %v987
        %v3206 = vunpack.c.l.b16 %v988
        %v3207 = vunpack.c.h.b16 %v988
        %v3208 = vunpack.c.l.b16 %v989
        %v3209 = vunpack.c.h.b16 %v989
        %v3210 = vunpack.c.l.b16 %v990
        %v3211 = vunpack.c.h.b16 %v990
        %v3212 = vunpack.c.l.b16 %v991
        %v3213 = vunpack.c.h.b16 %v991
        %v3214 = vunpack.c.l.b16 %v992
        %v3215 = vunpack.c.h.b16 %v992
        %v3216 = vunpack.c.l.b16 %v993
        %v3217 = vunpack.c.h.b16 %v993
        %v3218 = vunpack.c.l.b16 %v994
        %v3219 = vunpack.c.h.b16 %v994
        %v3220 = vunpack.c.l.b16 %v995
        %v3221 = vunpack.c.h.b16 %v995
        %v3222 = vunpack.c.l.b16 %v996
        %v3223 = vunpack.c.h.b16 %v996
        %v3224 = vunpack.c.l.b16 %v997
        %v3225 = vunpack.c.h.b16 %v997
        %v3226 = vunpack.c.l.b16 %v998
        %v3227 = vunpack.c.h.b16 %v998
        %v3228 = vunpack.c.l.b16 %v999
        %v3229 = vunpack.c.h.b16 %v999
        %v3230 = vunpack.c.l.b16 %v1000
        %v3231 = vunpack.c.h.b16 %v1000
        %v3232 = vunpack.c.l.b16 %v1001
        %v3233 = vunpack.c.h.b16 %v1001
        %v3234 = vunpack.c.l.b16 %v1002
        %v3235 = vunpack.c.h.b16 %v1002
        %v3236 = vunpack.c.l.b16 %v1003
        %v3237 = vunpack.c.h.b16 %v1003
        %v3238 = vunpack.c.l.b16 %v1004
        %v3239 = vunpack.c.h.b16 %v1004
        %v3240 = vunpack.c.l.b16 %v1005
        %v3241 = vunpack.c.h.b16 %v1005
        %v3242 = vunpack.c.l.b16 %v1006
        %v3243 = vunpack.c.h.b16 %v1006
        %v3244 = vunpack.c.l.b16 %v1007
        %v3245 = vunpack.c.h.b16 %v1007
        %v3246 = vunpack.c.l.b16 %v1008
        %v3247 = vunpack.c.h.b16 %v1008
        %v3248 = vunpack.c.l.b16 %v1009
        %v3249 = vunpack.c.h.b16 %v1009
        %v3250 = vunpack.c.l.b16 %v1010
        %v3251 = vunpack.c.h.b16 %v1010
        %v3252 = vunpack.c.l.b16 %v1011
        %v3253 = vunpack.c.h.b16 %v1011
        %v3254 = vunpack.c.l.b16 %v1012
        %v3255 = vunpack.c.h.b16 %v1012
        %v3256 = vunpack.c.l.b16 %v1013
        %v3257 = vunpack.c.h.b16 %v1013
        %v3258 = vunpack.c.l.b16 %v1014
        %v3259 = vunpack.c.h.b16 %v1014
        %v3260 = vunpack.c.l.b16 %v1015
        %v3261 = vunpack.c.h.b16 %v1015
        %v3262 = vunpack.c.l.b16 %v1016
        %v3263 = vunpack.c.h.b16 %v1016
        %v3264 = vunpack.c.l.b16 %v1017
        %v3265 = vunpack.c.h.b16 %v1017
        %v3266 = vunpack.c.l.b16 %v1018
        %v3267 = vunpack.c.h.b16 %v1018
        %v3268 = vunpack.c.l.b16 %v1019
        %v3269 = vunpack.c.h.b16 %v1019
        %v3270 = vunpack.c.l.b16 %v1020
        %v3271 = vunpack.c.h.b16 %v1020
        %v3272 = vunpack.c.l.b16 %v1021
        %v3273 = vunpack.c.h.b16 %v1021
        %v3274 = vunpack.c.l.b16 %v1022
        %v3275 = vunpack.c.h.b16 %v1022
        %v3276 = vunpack.c.l.b16 %v1023
        %v3277 = vunpack.c.h.b16 %v1023
        %v3278 = vunpack.c.l.b16 %v1024
        %v3279 = vunpack.c.h.b16 %v1024
        %v3280 = vunpack.c.l.b16 %v1025
        %v3281 = vunpack.c.h.b16 %v1025
        %v3282 = vunpack.c.l.b16 %v1026
        %v3283 = vunpack.c.h.b16 %v1026
        %v3284 = vunpack.c.l.b16 %v1027
        %v3285 = vunpack.c.h.b16 %v1027
        %v3286 = vunpack.c.l.b16 %v1028
        %v3287 = vunpack.c.h.b16 %v1028
        %v3288 = vunpack.c.l.b16 %v1029
        %v3289 = vunpack.c.h.b16 %v1029
        %v3290 = vunpack.c.l.b16 %v1030
        %v3291 = vunpack.c.h.b16 %v1030
        %v3292 = vunpack.c.l.b16 %v1031
        %v3293 = vunpack.c.h.b16 %v1031
        %v3294 = vunpack.c.l.b16 %v1032
        %v3295 = vunpack.c.h.b16 %v1032
        %v3296 = vunpack.c.l.b16 %v1033
        %v3297 = vunpack.c.h.b16 %v1033
        %v3298 = vunpack.c.l.b16 %v1034
        %v3299 = vunpack.c.h.b16 %v1034
        %v3300 = vunpack.c.l.b16 %v1035
        %v3301 = vunpack.c.h.b16 %v1035
        %v3302 = vunpack.c.l.b16 %v1036
        %v3303 = vunpack.c.h.b16 %v1036
        %v3304 = vunpack.c.l.b16 %v1037
        %v3305 = vunpack.c.h.b16 %v1037
        %v3306 = vunpack.c.l.b16 %v1038
        %v3307 = vunpack.c.h.b16 %v1038
        %v3308 = vunpack.c.l.b16 %v1039
        %v3309 = vunpack.c.h.b16 %v1039
        %v3310 = vunpack.c.l.b16 %v1040
        %v3311 = vunpack.c.h.b16 %v1040
        %v3312 = vunpack.c.l.b16 %v1041
        %v3313 = vunpack.c.h.b16 %v1041
        %v3314 = vunpack.c.l.b16 %v1042
        %v3315 = vunpack.c.h.b16 %v1042
        %v3316 = vunpack.c.l.b16 %v1043
        %v3317 = vunpack.c.h.b16 %v1043
        %v3318 = vunpack.c.l.b16 %v1044
        %v3319 = vunpack.c.h.b16 %v1044
        %v3320 = vunpack.c.l.b16 %v1045
        %v3321 = vunpack.c.h.b16 %v1045
        %v3322 = vunpack.c.l.b16 %v1046
        %v3323 = vunpack.c.h.b16 %v1046
        %v3324 = vunpack.c.l.b16 %v1047
        %v3325 = vunpack.c.h.b16 %v1047
        %v3326 = vunpack.c.l.b16 %v1048
        %v3327 = vunpack.c.h.b16 %v1048
        %v3328 = vunpack.c.l.b16 %v1049
        %v3329 = vunpack.c.h.b16 %v1049
        %v3330 = vunpack.c.l.b16 %v1050
        %v3331 = vunpack.c.h.b16 %v1050
        %v3332 = vunpack.c.l.b16 %v1051
        %v3333 = vunpack.c.h.b16 %v1051
        %v3334 = vunpack.c.l.b16 %v1052
        %v3335 = vunpack.c.h.b16 %v1052
        %v3336 = vunpack.c.l.b16 %v1053
        %v3337 = vunpack.c.h.b16 %v1053
        %v3338 = vunpack.c.l.b16 %v1054
        %v3339 = vunpack.c.h.b16 %v1054
        %v3340 = vunpack.c.l.b16 %v1055
        %v3341 = vunpack.c.h.b16 %v1055
        %v3342 = vunpack.c.l.b16 %v1056
        %v3343 = vunpack.c.h.b16 %v1056
        %v3344 = vunpack.c.l.b16 %v1057
        %v3345 = vunpack.c.h.b16 %v1057
        %v3346 = vunpack.c.l.b16 %v1058
        %v3347 = vunpack.c.h.b16 %v1058
        %v3348 = vunpack.c.l.b16 %v1059
        %v3349 = vunpack.c.h.b16 %v1059
        %v3350 = vunpack.c.l.b16 %v1060
        %v3351 = vunpack.c.h.b16 %v1060
        %v3352 = vunpack.c.l.b16 %v1061
        %v3353 = vunpack.c.h.b16 %v1061
        %v3354 = vunpack.c.l.b16 %v1062
        %v3355 = vunpack.c.h.b16 %v1062
        %v3356 = vunpack.c.l.b16 %v1063
        %v3357 = vunpack.c.h.b16 %v1063
        %v3358 = vunpack.c.l.b16 %v1064
        %v3359 = vunpack.c.h.b16 %v1064
        %v3360 = vunpack.c.l.b16 %v1065
        %v3361 = vunpack.c.h.b16 %v1065
        %v3362 = vunpack.c.l.b16 %v1066
        %v3363 = vunpack.c.h.b16 %v1066
        %v3364 = vunpack.c.l.b16 %v1067
        %v3365 = vunpack.c.h.b16 %v1067
        %v3366 = vunpack.c.l.b16 %v1068
        %v3367 = vunpack.c.h.b16 %v1068
        %v3368 = vunpack.c.l.b16 %v1069
        %v3369 = vunpack.c.h.b16 %v1069
        %v3370 = vunpack.c.l.b16 %v1070
        %v3371 = vunpack.c.h.b16 %v1070
        %v3372 = vunpack.c.l.b16 %v1071
        %v3373 = vunpack.c.h.b16 %v1071
        %v3374 = vunpack.c.l.b16 %v1072
        %v3375 = vunpack.c.h.b16 %v1072
        %v3376 = vunpack.c.l.b16 %v1073
        %v3377 = vunpack.c.h.b16 %v1073
        %v3378 = vunpack.c.l.b16 %v1074
        %v3379 = vunpack.c.h.b16 %v1074
        %v3380 = vunpack.c.l.b16 %v1075
        %v3381 = vunpack.c.h.b16 %v1075
        %v3382 = vunpack.c.l.b16 %v1076
        %v3383 = vunpack.c.h.b16 %v1076
        %v3384 = vunpack.c.l.b16 %v1077
        %v3385 = vunpack.c.h.b16 %v1077
        %v3386 = vunpack.c.l.b16 %v1078
        %v3387 = vunpack.c.h.b16 %v1078
        %v3388 = vunpack.c.l.b16 %v1079
        %v3389 = vunpack.c.h.b16 %v1079
        %v3390 = vunpack.c.l.b16 %v1080
        %v3391 = vunpack.c.h.b16 %v1080
        %v3392 = vunpack.c.l.b16 %v1081
        %v3393 = vunpack.c.h.b16 %v1081
        %v3394 = vunpack.c.l.b16 %v1082
        %v3395 = vunpack.c.h.b16 %v1082
        %v3396 = vunpack.c.l.b16 %v1083
        %v3397 = vunpack.c.h.b16 %v1083
        %v3398 = vunpack.c.l.b16 %v1084
        %v3399 = vunpack.c.h.b16 %v1084
        %v3400 = vunpack.c.l.b16 %v1085
        %v3401 = vunpack.c.h.b16 %v1085
        %v3402 = vunpack.c.l.b16 %v1086
        %v3403 = vunpack.c.h.b16 %v1086
        %v3404 = vunpack.c.l.b16 %v1087
        %v3405 = vunpack.c.h.b16 %v1087
        %v3406 = vunpack.c.l.b16 %v1088
        %v3407 = vunpack.c.h.b16 %v1088
        %v3408 = vunpack.c.l.b16 %v1089
        %v3409 = vunpack.c.h.b16 %v1089
        %v3410 = vunpack.c.l.b16 %v1090
        %v3411 = vunpack.c.h.b16 %v1090
        %v3412 = vunpack.c.l.b16 %v1091
        %v3413 = vunpack.c.h.b16 %v1091
        %v3414 = vunpack.c.l.b16 %v1092
        %v3415 = vunpack.c.h.b16 %v1092
        %v3416 = vunpack.c.l.b16 %v1093
        %v3417 = vunpack.c.h.b16 %v1093
        %v3418 = vunpack.c.l.b16 %v1094
        %v3419 = vunpack.c.h.b16 %v1094
        %v3420 = vunpack.c.l.b16 %v1095
        %v3421 = vunpack.c.h.b16 %v1095
        %v3422 = vunpack.c.l.b16 %v1096
        %v3423 = vunpack.c.h.b16 %v1096
        %v3424 = vunpack.c.l.b16 %v1097
        %v3425 = vunpack.c.h.b16 %v1097
        %v3426 = vunpack.c.l.b16 %v1098
        %v3427 = vunpack.c.h.b16 %v1098
        %v3428 = vunpack.c.l.b16 %v1099
        %v3429 = vunpack.c.h.b16 %v1099
        %v3430 = vunpack.c.l.b16 %v1100
        %v3431 = vunpack.c.h.b16 %v1100
        %v3432 = vunpack.c.l.b16 %v1101
        %v3433 = vunpack.c.h.b16 %v1101
        %v3434 = vunpack.c.l.b16 %v1102
        %v3435 = vunpack.c.h.b16 %v1102
        %v3436 = vunpack.c.l.b16 %v1103
        %v3437 = vunpack.c.h.b16 %v1103
        %v3438 = vunpack.c.l.b16 %v1104
        %v3439 = vunpack.c.h.b16 %v1104
        %v3440 = vunpack.c.l.b16 %v1105
        %v3441 = vunpack.c.h.b16 %v1105
        %v3442 = vunpack.c.l.b16 %v1106
        %v3443 = vunpack.c.h.b16 %v1106
        %v3444 = vunpack.c.l.b16 %v1107
        %v3445 = vunpack.c.h.b16 %v1107
        %v3446 = vunpack.c.l.b16 %v1108
        %v3447 = vunpack.c.h.b16 %v1108
        %v3448 = vunpack.c.l.b16 %v1109
        %v3449 = vunpack.c.h.b16 %v1109
        %v3450 = vunpack.c.l.b16 %v1110
        %v3451 = vunpack.c.h.b16 %v1110
        %v3452 = vunpack.c.l.b16 %v1111
        %v3453 = vunpack.c.h.b16 %v1111
        %v3454 = vunpack.c.l.b16 %v1112
        %v3455 = vunpack.c.h.b16 %v1112
        %v3456 = vunpack.c.l.b16 %v1113
        %v3457 = vunpack.c.h.b16 %v1113
        %v3458 = vunpack.c.l.b16 %v1114
        %v3459 = vunpack.c.h.b16 %v1114
        %v3460 = vunpack.c.l.b16 %v1115
        %v3461 = vunpack.c.h.b16 %v1115
        %v3462 = vunpack.c.l.b16 %v1116
        %v3463 = vunpack.c.h.b16 %v1116
        %v3464 = vunpack.c.l.b16 %v1117
        %v3465 = vunpack.c.h.b16 %v1117
        %v3466 = vunpack.c.l.b16 %v1118
        %v3467 = vunpack.c.h.b16 %v1118
        %v3468 = vunpack.c.l.b16 %v1119
        %v3469 = vunpack.c.h.b16 %v1119
        %v3470 = vunpack.c.l.b16 %v1120
        %v3471 = vunpack.c.h.b16 %v1120
        %v3472 = vunpack.c.l.b16 %v1121
        %v3473 = vunpack.c.h.b16 %v1121
        %v3474 = vunpack.c.l.b16 %v1122
        %v3475 = vunpack.c.h.b16 %v1122
        %v3476 = vunpack.c.l.b16 %v1123
        %v3477 = vunpack.c.h.b16 %v1123
        %v3478 = vunpack.c.l.b16 %v1124
        %v3479 = vunpack.c.h.b16 %v1124
        %v3480 = vunpack.c.l.b16 %v1125
        %v3481 = vunpack.c.h.b16 %v1125
        %v3482 = vunpack.c.l.b16 %v1126
        %v3483 = vunpack.c.h.b16 %v1126
        %v3484 = vunpack.c.l.b16 %v1127
        %v3485 = vunpack.c.h.b16 %v1127
        %v3486 = vunpack.c.l.b16 %v1128
        %v3487 = vunpack.c.h.b16 %v1128
        %v3488 = vunpack.c.l.b16 %v1129
        %v3489 = vunpack.c.h.b16 %v1129
        %v3490 = vunpack.c.l.b16 %v1130
        %v3491 = vunpack.c.h.b16 %v1130
        %v3492 = vunpack.c.l.b16 %v1131
        %v3493 = vunpack.c.h.b16 %v1131
        %v3494 = vunpack.c.l.b16 %v1132
        %v3495 = vunpack.c.h.b16 %v1132
        %v3496 = vunpack.c.l.b16 %v1133
        %v3497 = vunpack.c.h.b16 %v1133
        %v3498 = vunpack.c.l.b16 %v1134
        %v3499 = vunpack.c.h.b16 %v1134
        %v3500 = vunpack.c.l.b16 %v1135
        %v3501 = vunpack.c.h.b16 %v1135
        %v3502 = vunpack.c.l.b16 %v1136
        %v3503 = vunpack.c.h.b16 %v1136
        %v3504 = vunpack.c.l.b16 %v1137
        %v3505 = vunpack.c.h.b16 %v1137
        %v3506 = vunpack.c.l.b16 %v1138
        %v3507 = vunpack.c.h.b16 %v1138
        %v3508 = vunpack.c.l.b16 %v1139
        %v3509 = vunpack.c.h.b16 %v1139
        %v3510 = vunpack.c.l.b16 %v1140
        %v3511 = vunpack.c.h.b16 %v1140
        %v3512 = vunpack.c.l.b16 %v1141
        %v3513 = vunpack.c.h.b16 %v1141
        %v3514 = vunpack.c.l.b16 %v1142
        %v3515 = vunpack.c.h.b16 %v1142
        %v3516 = vunpack.c.l.b16 %v1143
        %v3517 = vunpack.c.h.b16 %v1143
        %v3518 = vunpack.c.l.b16 %v1144
        %v3519 = vunpack.c.h.b16 %v1144
        %v3520 = vunpack.c.l.b16 %v1145
        %v3521 = vunpack.c.h.b16 %v1145
        %v3522 = vunpack.c.l.b16 %v1146
        %v3523 = vunpack.c.h.b16 %v1146
        %v3524 = vunpack.c.l.b16 %v1147
        %v3525 = vunpack.c.h.b16 %v1147
        %v3526 = vunpack.c.l.b16 %v1148
        %v3527 = vunpack.c.h.b16 %v1148
        %v3528 = vunpack.c.l.b16 %v1149
        %v3529 = vunpack.c.h.b16 %v1149
        %v3530 = vunpack.c.l.b16 %v1150
        %v3531 = vunpack.c.h.b16 %v1150
        %v3532 = vunpack.c.l.b16 %v1151
        %v3533 = vunpack.c.h.b16 %v1151
        %v3534 = vunpack.c.l.b16 %v1152
        %v3535 = vunpack.c.h.b16 %v1152
        %v3536 = vunpack.c.l.b16 %v1153
        %v3537 = vunpack.c.h.b16 %v1153
        %v3538 = vunpack.c.l.b16 %v1154
        %v3539 = vunpack.c.h.b16 %v1154
        %v3540 = vunpack.c.l.b16 %v1155
        %v3541 = vunpack.c.h.b16 %v1155
        %v3542 = vunpack.c.l.b16 %v1156
        %v3543 = vunpack.c.h.b16 %v1156
        %v3544 = vunpack.c.l.b16 %v1157
        %v3545 = vunpack.c.h.b16 %v1157
        %v3546 = vunpack.c.l.b16 %v1158
        %v3547 = vunpack.c.h.b16 %v1158
        %v3548 = vunpack.c.l.b16 %v1159
        %v3549 = vunpack.c.h.b16 %v1159
        %v3550 = vunpack.c.l.b16 %v1160
        %v3551 = vunpack.c.h.b16 %v1160
        %v3552 = vunpack.c.l.b16 %v1161
        %v3553 = vunpack.c.h.b16 %v1161
        %v3554 = vunpack.c.l.b16 %v1162
        %v3555 = vunpack.c.h.b16 %v1162
        %v3556 = vunpack.c.l.b16 %v1163
        %v3557 = vunpack.c.h.b16 %v1163
        %v3558 = vunpack.c.l.b16 %v1164
        %v3559 = vunpack.c.h.b16 %v1164
        %v3560 = vunpack.c.l.b16 %v1165
        %v3561 = vunpack.c.h.b16 %v1165
        %v3562 = vunpack.c.l.b16 %v1166
        %v3563 = vunpack.c.h.b16 %v1166
        %v3564 = vunpack.c.l.b16 %v1167
        %v3565 = vunpack.c.h.b16 %v1167
        %v3566 = vunpack.c.l.b16 %v1168
        %v3567 = vunpack.c.h.b16 %v1168
        %v3568 = vunpack.c.l.b16 %v1169
        %v3569 = vunpack.c.h.b16 %v1169
        %v3570 = vunpack.c.l.b16 %v1170
        %v3571 = vunpack.c.h.b16 %v1170
        %v3572 = vunpack.c.l.b16 %v1171
        %v3573 = vunpack.c.h.b16 %v1171
        %v3574 = vunpack.c.l.b16 %v1172
        %v3575 = vunpack.c.h.b16 %v1172
        %v3576 = vunpack.c.l.b16 %v1173
        %v3577 = vunpack.c.h.b16 %v1173
        %v3578 = vunpack.c.l.b16 %v1174
        %v3579 = vunpack.c.h.b16 %v1174
        %v3580 = vunpack.c.l.b16 %v1175
        %v3581 = vunpack.c.h.b16 %v1175
        %v3582 = vunpack.c.l.b16 %v1176
        %v3583 = vunpack.c.h.b16 %v1176
        %v3584 = vunpack.c.l.b16 %v1177
        %v3585 = vunpack.c.h.b16 %v1177
        %v3586 = vunpack.c.l.b16 %v1178
        %v3587 = vunpack.c.h.b16 %v1178
        %v3588 = vunpack.c.l.b16 %v1179
        %v3589 = vunpack.c.h.b16 %v1179
        %v3590 = vunpack.c.l.b16 %v1180
        %v3591 = vunpack.c.h.b16 %v1180
        %v3592 = vunpack.c.l.b16 %v1181
        %v3593 = vunpack.c.h.b16 %v1181
        %v3594 = vunpack.c.l.b16 %v1182
        %v3595 = vunpack.c.h.b16 %v1182
        %v3596 = vunpack.c.l.b16 %v1183
        %v3597 = vunpack.c.h.b16 %v1183
        %v3598 = vunpack.c.l.b16 %v1184
        %v3599 = vunpack.c.h.b16 %v1184
        %v3600 = vunpack.c.l.b16 %v1185
        %v3601 = vunpack.c.h.b16 %v1185
        %v3602 = vunpack.c.l.b16 %v1186
        %v3603 = vunpack.c.h.b16 %v1186
        %v3604 = vunpack.c.l.b16 %v1187
        %v3605 = vunpack.c.h.b16 %v1187
        %v3606 = vunpack.c.l.b16 %v1188
        %v3607 = vunpack.c.h.b16 %v1188
        %v3608 = vunpack.c.l.b16 %v1189
        %v3609 = vunpack.c.h.b16 %v1189
        %v3610 = vunpack.c.l.b16 %v1190
        %v3611 = vunpack.c.h.b16 %v1190
        %v3612 = vunpack.c.l.b16 %v1191
        %v3613 = vunpack.c.h.b16 %v1191
        %v3614 = vunpack.c.l.b16 %v1192
        %v3615 = vunpack.c.h.b16 %v1192
        %v3616 = vunpack.c.l.b16 %v1193
        %v3617 = vunpack.c.h.b16 %v1193
        %v3618 = vunpack.c.l.b16 %v1194
        %v3619 = vunpack.c.h.b16 %v1194
        %v3620 = vunpack.c.l.b16 %v1195
        %v3621 = vunpack.c.h.b16 %v1195
        %v3622 = vunpack.c.l.b16 %v1196
        %v3623 = vunpack.c.h.b16 %v1196
        %v3624 = vunpack.c.l.b16 %v1197
        %v3625 = vunpack.c.h.b16 %v1197
        %v3626 = vunpack.c.l.b16 %v1198
        %v3627 = vunpack.c.h.b16 %v1198
        %v3628 = vunpack.c.l.b16 %v1199
        %v3629 = vunpack.c.h.b16 %v1199
        %v3630 = vunpack.c.l.b16 %v1200
        %v3631 = vunpack.c.h.b16 %v1200
        %v3632 = vunpack.c.l.b16 %v1201
        %v3633 = vunpack.c.h.b16 %v1201
        %v3634 = vunpack.c.l.b16 %v1202
        %v3635 = vunpack.c.h.b16 %v1202
        %v3636 = vunpack.c.l.b16 %v1203
        %v3637 = vunpack.c.h.b16 %v1203
        %v3638 = vunpack.c.l.b16 %v1204
        %v3639 = vunpack.c.h.b16 %v1204
        %v3640 = vunpack.c.l.b16 %v1205
        %v3641 = vunpack.c.h.b16 %v1205
        %v3642 = vunpack.c.l.b16 %v1206
        %v3643 = vunpack.c.h.b16 %v1206
        %v3644 = vunpack.c.l.b16 %v1207
        %v3645 = vunpack.c.h.b16 %v1207
        %v3646 = vunpack.c.l.b16 %v1208
        %v3647 = vunpack.c.h.b16 %v1208
        %v3648 = vunpack.c.l.b16 %v1209
        %v3649 = vunpack.c.h.b16 %v1209
        %v3650 = vunpack.c.l.b16 %v1210
        %v3651 = vunpack.c.h.b16 %v1210
        %v3652 = vunpack.c.l.b16 %v1211
        %v3653 = vunpack.c.h.b16 %v1211
        %v3654 = vunpack.c.l.b16 %v1212
        %v3655 = vunpack.c.h.b16 %v1212
        %v3656 = vunpack.c.l.b16 %v1213
        %v3657 = vunpack.c.h.b16 %v1213
        %v3658 = vunpack.c.l.b16 %v1214
        %v3659 = vunpack.c.h.b16 %v1214
        %v3660 = vunpack.c.l.b16 %v1215
        %v3661 = vunpack.c.h.b16 %v1215
        %v3662 = vunpack.c.l.b16 %v1216
        %v3663 = vunpack.c.h.b16 %v1216
        %v3664 = vunpack.c.l.b16 %v1217
        %v3665 = vunpack.c.h.b16 %v1217
        %v3666 = vunpack.c.l.b16 %v1218
        %v3667 = vunpack.c.h.b16 %v1218
        %v3668 = vunpack.c.l.b16 %v1219
        %v3669 = vunpack.c.h.b16 %v1219
        %v3670 = vunpack.c.l.b16 %v1220
        %v3671 = vunpack.c.h.b16 %v1220
        %v3672 = vunpack.c.l.b16 %v1221
        %v3673 = vunpack.c.h.b16 %v1221
        %v3674 = vunpack.c.l.b16 %v1222
        %v3675 = vunpack.c.h.b16 %v1222
        %v3676 = vunpack.c.l.b16 %v1223
        %v3677 = vunpack.c.h.b16 %v1223
        %v3678 = vunpack.c.l.b16 %v1224
        %v3679 = vunpack.c.h.b16 %v1224
        %v3680 = vunpack.c.l.b16 %v1225
        %v3681 = vunpack.c.h.b16 %v1225
        %v3682 = vunpack.c.l.b16 %v1226
        %v3683 = vunpack.c.h.b16 %v1226
        %v3684 = vunpack.c.l.b16 %v1227
        %v3685 = vunpack.c.h.b16 %v1227
        %v3686 = vunpack.c.l.b16 %v1228
        %v3687 = vunpack.c.h.b16 %v1228
        %v3688 = vunpack.c.l.b16 %v1229
        %v3689 = vunpack.c.h.b16 %v1229
        %v3690 = vunpack.c.l.b16 %v1230
        %v3691 = vunpack.c.h.b16 %v1230
        %v3692 = vunpack.c.l.b16 %v1231
        %v3693 = vunpack.c.h.b16 %v1231
        %v3694 = vunpack.c.l.b16 %v1232
        %v3695 = vunpack.c.h.b16 %v1232
        %v3696 = vunpack.c.l.b16 %v1233
        %v3697 = vunpack.c.h.b16 %v1233
        %v3698 = vunpack.c.l.b16 %v1234
        %v3699 = vunpack.c.h.b16 %v1234
        %v3700 = vunpack.c.l.b16 %v1235
        %v3701 = vunpack.c.h.b16 %v1235
        %v3702 = vunpack.c.l.b16 %v1236
        %v3703 = vunpack.c.h.b16 %v1236
        %v3704 = vunpack.c.l.b16 %v1237
        %v3705 = vunpack.c.h.b16 %v1237
        %v3706 = vunpack.c.l.b16 %v1238
        %v3707 = vunpack.c.h.b16 %v1238
        %v3708 = vunpack.c.l.b16 %v1239
        %v3709 = vunpack.c.h.b16 %v1239
        %v3710 = vunpack.c.l.b16 %v1240
        %v3711 = vunpack.c.h.b16 %v1240
        %v3712 = vunpack.c.l.b16 %v1241
        %v3713 = vunpack.c.h.b16 %v1241
        %v3714 = vunpack.c.l.b16 %v1242
        %v3715 = vunpack.c.h.b16 %v1242
        %v3716 = vunpack.c.l.b16 %v1243
        %v3717 = vunpack.c.h.b16 %v1243
        %v3718 = vunpack.c.l.b16 %v1244
        %v3719 = vunpack.c.h.b16 %v1244
        %v3720 = vunpack.c.l.b16 %v1245
        %v3721 = vunpack.c.h.b16 %v1245
        %v3722 = vunpack.c.l.b16 %v1246
        %v3723 = vunpack.c.h.b16 %v1246
        %v3724 = vunpack.c.l.b16 %v1247
        %v3725 = vunpack.c.h.b16 %v1247
        %v3726 = vunpack.c.l.b16 %v1248
        %v3727 = vunpack.c.h.b16 %v1248
        %v3728 = vunpack.c.l.b16 %v1249
        %v3729 = vunpack.c.h.b16 %v1249
        %v3730 = vunpack.c.l.b16 %v1250
        %v3731 = vunpack.c.h.b16 %v1250
        %v3732 = vunpack.c.l.b16 %v1251
        %v3733 = vunpack.c.h.b16 %v1251
        %v3734 = vunpack.c.l.b16 %v1252
        %v3735 = vunpack.c.h.b16 %v1252
        %v3736 = vunpack.c.l.b16 %v1253
        %v3737 = vunpack.c.h.b16 %v1253
        %v3738 = vunpack.c.l.b16 %v1254
        %v3739 = vunpack.c.h.b16 %v1254
        %v3740 = vunpack.c.l.b16 %v1255
        %v3741 = vunpack.c.h.b16 %v1255
        %v3742 = vunpack.c.l.b16 %v1256
        %v3743 = vunpack.c.h.b16 %v1256
        %v3744 = vunpack.c.l.b16 %v1257
        %v3745 = vunpack.c.h.b16 %v1257
        %v3746 = vunpack.c.l.b16 %v1258
        %v3747 = vunpack.c.h.b16 %v1258
        %v3748 = vunpack.c.l.b16 %v1259
        %v3749 = vunpack.c.h.b16 %v1259
        %v3750 = vunpack.c.l.b16 %v1260
        %v3751 = vunpack.c.h.b16 %v1260
        %v3752 = vunpack.c.l.b16 %v1261
        %v3753 = vunpack.c.h.b16 %v1261
        %v3754 = vunpack.c.l.b16 %v1262
        %v3755 = vunpack.c.h.b16 %v1262
        %v3756 = vunpack.c.l.b16 %v1263
        %v3757 = vunpack.c.h.b16 %v1263
        %v3758 = vunpack.c.l.b16 %v1264
        %v3759 = vunpack.c.h.b16 %v1264
        %v3760 = vunpack.c.l.b16 %v1265
        %v3761 = vunpack.c.h.b16 %v1265
        %v3762 = vunpack.c.l.b16 %v1266
        %v3763 = vunpack.c.h.b16 %v1266
        %v3764 = vunpack.c.l.b16 %v1267
        %v3765 = vunpack.c.h.b16 %v1267
        %v3766 = vunpack.c.l.b16 %v1268
        %v3767 = vunpack.c.h.b16 %v1268
        %v3768 = vunpack.c.l.b16 %v1269
        %v3769 = vunpack.c.h.b16 %v1269
        %v3770 = vunpack.c.l.b16 %v1270
        %v3771 = vunpack.c.h.b16 %v1270
        %v3772 = vunpack.c.l.b16 %v1271
        %v3773 = vunpack.c.h.b16 %v1271
        %v3774 = vunpack.c.l.b16 %v1272
        %v3775 = vunpack.c.h.b16 %v1272
        %v3776 = vunpack.c.l.b16 %v1273
        %v3777 = vunpack.c.h.b16 %v1273
        %v3778 = vunpack.c.l.b16 %v1274
        %v3779 = vunpack.c.h.b16 %v1274
        %v3780 = vunpack.c.l.b16 %v1275
        %v3781 = vunpack.c.h.b16 %v1275
        %v3782 = vunpack.c.l.b16 %v1276
        %v3783 = vunpack.c.h.b16 %v1276
        %v3784 = vunpack.c.l.b16 %v1277
        %v3785 = vunpack.c.h.b16 %v1277
        %v3786 = vunpack.c.l.b16 %v1278
        %v3787 = vunpack.c.h.b16 %v1278
        %v3788 = vunpack.c.l.b16 %v1279
        %v3789 = vunpack.c.h.b16 %v1279
        %v3790 = vunpack.c.l.b16 %v1280
        %v3791 = vunpack.c.h.b16 %v1280
        %v3792 = vunpack.c.l.b16 %v1281
        %v3793 = vunpack.c.h.b16 %v1281
        %v3794 = vunpack.c.l.b16 %v1282
        %v3795 = vunpack.c.h.b16 %v1282
        %v3796 = vunpack.c.l.b16 %v1283
        %v3797 = vunpack.c.h.b16 %v1283
        %v3798 = vunpack.c.l.b16 %v1284
        %v3799 = vunpack.c.h.b16 %v1284
        %v3800 = vunpack.c.l.b16 %v1285
        %v3801 = vunpack.c.h.b16 %v1285
        %v3802 = vunpack.c.l.b16 %v1286
        %v3803 = vunpack.c.h.b16 %v1286
        %v3804 = vunpack.c.l.b16 %v1287
        %v3805 = vunpack.c.h.b16 %v1287
        %v3806 = vunpack.c.l.b16 %v1288
        %v3807 = vunpack.c.h.b16 %v1288
        %v3808 = vunpack.c.l.b16 %v1289
        %v3809 = vunpack.c.h.b16 %v1289
        %v3810 = vunpack.c.l.b16 %v1290
        %v3811 = vunpack.c.h.b16 %v1290
        %v3812 = vunpack.c.l.b16 %v1291
        %v3813 = vunpack.c.h.b16 %v1291
        %v3814 = vunpack.c.l.b16 %v1292
        %v3815 = vunpack.c.h.b16 %v1292
        %v3816 = vunpack.c.l.b16 %v1293
        %v3817 = vunpack.c.h.b16 %v1293
        %v3818 = vunpack.c.l.b16 %v1294
        %v3819 = vunpack.c.h.b16 %v1294
        %v3820 = vunpack.c.l.b16 %v1295
        %v3821 = vunpack.c.h.b16 %v1295
        %v3822 = vunpack.c.l.b16 %v1296
        %v3823 = vunpack.c.h.b16 %v1296
        %v3824 = vunpack.c.l.b16 %v1297
        %v3825 = vunpack.c.h.b16 %v1297
        %v3826 = vunpack.c.l.b16 %v1298
        %v3827 = vunpack.c.h.b16 %v1298
        %v3828 = vunpack.c.l.b16 %v1299
        %v3829 = vunpack.c.h.b16 %v1299
        %v3830 = vunpack.c.l.b16 %v1300
        %v3831 = vunpack.c.h.b16 %v1300
        %v3832 = vunpack.c.l.b16 %v1301
        %v3833 = vunpack.c.h.b16 %v1301
        %v3834 = vunpack.c.l.b16 %v1302
        %v3835 = vunpack.c.h.b16 %v1302
        %v3836 = vunpack.c.l.b16 %v1303
        %v3837 = vunpack.c.h.b16 %v1303
        %v3838 = vunpack.c.l.b16 %v1304
        %v3839 = vunpack.c.h.b16 %v1304
        %v3840 = vunpack.c.l.b16 %v1305
        %v3841 = vunpack.c.h.b16 %v1305
        %v3842 = vunpack.c.l.b16 %v1306
        %v3843 = vunpack.c.h.b16 %v1306
        %v3844 = vunpack.c.l.b16 %v1307
        %v3845 = vunpack.c.h.b16 %v1307
        %v3846 = vunpack.c.l.b16 %v1308
        %v3847 = vunpack.c.h.b16 %v1308
        %v3848 = vunpack.c.l.b16 %v1309
        %v3849 = vunpack.c.h.b16 %v1309
        %v3850 = vunpack.c.l.b16 %v1310
        %v3851 = vunpack.c.h.b16 %v1310
        %v3852 = vunpack.c.l.b16 %v1311
        %v3853 = vunpack.c.h.b16 %v1311
        %v3854 = vunpack.c.l.b16 %v1312
        %v3855 = vunpack.c.h.b16 %v1312
        %v3856 = vunpack.c.l.b16 %v1313
        %v3857 = vunpack.c.h.b16 %v1313
        %v3858 = vunpack.c.l.b16 %v1314
        %v3859 = vunpack.c.h.b16 %v1314
        %v3860 = vunpack.c.l.b16 %v1315
        %v3861 = vunpack.c.h.b16 %v1315
        %v3862 = vunpack.c.l.b16 %v1316
        %v3863 = vunpack.c.h.b16 %v1316
        %v3864 = vunpack.c.l.b16 %v1317
        %v3865 = vunpack.c.h.b16 %v1317
        %v3866 = vunpack.c.l.b16 %v1318
        %v3867 = vunpack.c.h.b16 %v1318
        %v3868 = vunpack.c.l.b16 %v1319
        %v3869 = vunpack.c.h.b16 %v1319
        %v3870 = vunpack.c.l.b16 %v1320
        %v3871 = vunpack.c.h.b16 %v1320
        %v3872 = vunpack.c.l.b16 %v1321
        %v3873 = vunpack.c.h.b16 %v1321
        %v3874 = vunpack.c.l.b16 %v1322
        %v3875 = vunpack.c.h.b16 %v1322
        %v3876 = vunpack.c.l.b16 %v1323
        %v3877 = vunpack.c.h.b16 %v1323
        %v3878 = vunpack.c.l.b16 %v1324
        %v3879 = vunpack.c.h.b16 %v1324
        %v3880 = vunpack.c.l.b16 %v1325
        %v3881 = vunpack.c.h.b16 %v1325
        %v3882 = vunpack.c.l.b16 %v1326
        %v3883 = vunpack.c.h.b16 %v1326
        %v3884 = vunpack.c.l.b16 %v1327
        %v3885 = vunpack.c.h.b16 %v1327
        %v3886 = vunpack.c.l.b16 %v1328
        %v3887 = vunpack.c.h.b16 %v1328
        %v3888 = vunpack.c.l.b16 %v1329
        %v3889 = vunpack.c.h.b16 %v1329
        %v3890 = vunpack.c.l.b16 %v1330
        %v3891 = vunpack.c.h.b16 %v1330
        %v3892 = vunpack.c.l.b16 %v1331
        %v3893 = vunpack.c.h.b16 %v1331
        %v3894 = vunpack.c.l.b16 %v1332
        %v3895 = vunpack.c.h.b16 %v1332
        %v3896 = vunpack.c.l.b16 %v1333
        %v3897 = vunpack.c.h.b16 %v1333
        %v3898 = vunpack.c.l.b16 %v1334
        %v3899 = vunpack.c.h.b16 %v1334
        %v3900 = vunpack.c.l.b16 %v1335
        %v3901 = vunpack.c.h.b16 %v1335
        %v3902 = vunpack.c.l.b16 %v1336
        %v3903 = vunpack.c.h.b16 %v1336
        %v3904 = vunpack.c.l.b16 %v1337
        %v3905 = vunpack.c.h.b16 %v1337
        %v3906 = vunpack.c.l.b16 %v1338
        %v3907 = vunpack.c.h.b16 %v1338
        %v3908 = vunpack.c.l.b16 %v1339
        %v3909 = vunpack.c.h.b16 %v1339
        %v3910 = vunpack.c.l.b16 %v1340
        %v3911 = vunpack.c.h.b16 %v1340
        %v3912 = vunpack.c.l.b16 %v1341
        %v3913 = vunpack.c.h.b16 %v1341
        %v3914 = vunpack.c.l.b16 %v1342
        %v3915 = vunpack.c.h.b16 %v1342
        %v3916 = vunpack.c.l.b16 %v1343
        %v3917 = vunpack.c.h.b16 %v1343
        %v3918 = vunpack.c.l.b16 %v1344
        %v3919 = vunpack.c.h.b16 %v1344
        %v3920 = vunpack.c.l.b16 %v1345
        %v3921 = vunpack.c.h.b16 %v1345
        %v3922 = vunpack.c.l.b16 %v1346
        %v3923 = vunpack.c.h.b16 %v1346
        %v3924 = vunpack.c.l.b16 %v1347
        %v3925 = vunpack.c.h.b16 %v1347
        %v3926 = vunpack.c.l.b16 %v1348
        %v3927 = vunpack.c.h.b16 %v1348
        %v3928 = vunpack.c.l.b16 %v1349
        %v3929 = vunpack.c.h.b16 %v1349
        %v3930 = vunpack.c.l.b16 %v1350
        %v3931 = vunpack.c.h.b16 %v1350
        %v3932 = vunpack.c.l.b16 %v1351
        %v3933 = vunpack.c.h.b16 %v1351
        %v3934 = vunpack.c.l.b16 %v1352
        %v3935 = vunpack.c.h.b16 %v1352
        %v3936 = vunpack.c.l.b16 %v1353
        %v3937 = vunpack.c.h.b16 %v1353
        %v3938 = vunpack.c.l.b16 %v1354
        %v3939 = vunpack.c.h.b16 %v1354
        %v3940 = vunpack.c.l.b16 %v1355
        %v3941 = vunpack.c.h.b16 %v1355
        %v3942 = vunpack.c.l.b16 %v1356
        %v3943 = vunpack.c.h.b16 %v1356
        %v3944 = vunpack.c.l.b16 %v1357
        %v3945 = vunpack.c.h.b16 %v1357
        %v3946 = vunpack.c.l.b16 %v1358
        %v3947 = vunpack.c.h.b16 %v1358
        %v3948 = vunpack.c.l.b16 %v1359
        %v3949 = vunpack.c.h.b16 %v1359
        %v3950 = vunpack.c.l.b16 %v1360
        %v3951 = vunpack.c.h.b16 %v1360
        %v3952 = vunpack.c.l.b16 %v1361
        %v3953 = vunpack.c.h.b16 %v1361
        %v3954 = vpack.c.b16 %v2230, %v2226
        %v3955 = vpack.c.b16 %v2231, %v2227
        %v3956 = vpack.c.b16 %v2232, %v2228
        %v3957 = vpack.c.b16 %v2233, %v2229
        %v3958 = vpack.c.b16 %v2238, %v2234
        %v3959 = vpack.c.b16 %v2239, %v2235
        %v3960 = vpack.c.b16 %v2240, %v2236
        %v3961 = vpack.c.b16 %v2241, %v2237
        %v3962 = vpack.c.b16 %v2246, %v2242
        %v3963 = vpack.c.b16 %v2247, %v2243
        %v3964 = vpack.c.b16 %v2248, %v2244
        %v3965 = vpack.c.b16 %v2249, %v2245
        %v3966 = vpack.c.b16 %v2254, %v2250
        %v3967 = vpack.c.b16 %v2255, %v2251
        %v3968 = vpack.c.b16 %v2256, %v2252
        %v3969 = vpack.c.b16 %v2257, %v2253
        %v3970 = vpack.c.b16 %v2262, %v2258
        %v3971 = vpack.c.b16 %v2263, %v2259
        %v3972 = vpack.c.b16 %v2264, %v2260
        %v3973 = vpack.c.b16 %v2265, %v2261
        %v3974 = vpack.c.b16 %v2270, %v2266
        %v3975 = vpack.c.b16 %v2271, %v2267
        %v3976 = vpack.c.b16 %v2272, %v2268
        %v3977 = vpack.c.b16 %v2273, %v2269
        %v3978 = vpack.c.b16 %v2278, %v2274
        %v3979 = vpack.c.b16 %v2279, %v2275
        %v3980 = vpack.c.b16 %v2280, %v2276
        %v3981 = vpack.c.b16 %v2281, %v2277
        %v3982 = vpack.c.b16 %v2286, %v2282
        %v3983 = vpack.c.b16 %v2287, %v2283
        %v3984 = vpack.c.b16 %v2288, %v2284
        %v3985 = vpack.c.b16 %v2289, %v2285
        %v3986 = vpack.c.b16 %v2294, %v2290
        %v3987 = vpack.c.b16 %v2295, %v2291
        %v3988 = vpack.c.b16 %v2296, %v2292
        %v3989 = vpack.c.b16 %v2297, %v2293
        %v3990 = vpack.c.b16 %v2302, %v2298
        %v3991 = vpack.c.b16 %v2303, %v2299
        %v3992 = vpack.c.b16 %v2304, %v2300
        %v3993 = vpack.c.b16 %v2305, %v2301
        %v3994 = vpack.c.b16 %v2310, %v2306
        %v3995 = vpack.c.b16 %v2311, %v2307
        %v3996 = vpack.c.b16 %v2312, %v2308
        %v3997 = vpack.c.b16 %v2313, %v2309
        %v3998 = vpack.c.b16 %v2318, %v2314
        %v3999 = vpack.c.b16 %v2319, %v2315
        %v4000 = vpack.c.b16 %v2320, %v2316
        %v4001 = vpack.c.b16 %v2321, %v2317
        %v4002 = vpack.c.b16 %v2326, %v2322
        %v4003 = vpack.c.b16 %v2327, %v2323
        %v4004 = vpack.c.b16 %v2328, %v2324
        %v4005 = vpack.c.b16 %v2329, %v2325
        %v4006 = vpack.c.b16 %v2334, %v2330
        %v4007 = vpack.c.b16 %v2335, %v2331
        %v4008 = vpack.c.b16 %v2336, %v2332
        %v4009 = vpack.c.b16 %v2337, %v2333
        %v4010 = vpack.c.b16 %v2342, %v2338
        %v4011 = vpack.c.b16 %v2343, %v2339
        %v4012 = vpack.c.b16 %v2344, %v2340
        %v4013 = vpack.c.b16 %v2345, %v2341
        %v4014 = vpack.c.b16 %v2350, %v2346
        %v4015 = vpack.c.b16 %v2351, %v2347
        %v4016 = vpack.c.b16 %v2352, %v2348
        %v4017 = vpack.c.b16 %v2353, %v2349
        %v4018 = vpack.c.b16 %v2358, %v2354
        %v4019 = vpack.c.b16 %v2359, %v2355
        %v4020 = vpack.c.b16 %v2360, %v2356
        %v4021 = vpack.c.b16 %v2361, %v2357
        %v4022 = vpack.c.b16 %v2366, %v2362
        %v4023 = vpack.c.b16 %v2367, %v2363
        %v4024 = vpack.c.b16 %v2368, %v2364
        %v4025 = vpack.c.b16 %v2369, %v2365
        %v4026 = vpack.c.b16 %v2374, %v2370
        %v4027 = vpack.c.b16 %v2375, %v2371
        %v4028 = vpack.c.b16 %v2376, %v2372
        %v4029 = vpack.c.b16 %v2377, %v2373
        %v4030 = vpack.c.b16 %v2382, %v2378
        %v4031 = vpack.c.b16 %v2383, %v2379
        %v4032 = vpack.c.b16 %v2384, %v2380
        %v4033 = vpack.c.b16 %v2385, %v2381
        %v4034 = vpack.c.b16 %v2390, %v2386
        %v4035 = vpack.c.b16 %v2391, %v2387
        %v4036 = vpack.c.b16 %v2392, %v2388
        %v4037 = vpack.c.b16 %v2393, %v2389
        %v4038 = vpack.c.b16 %v2398, %v2394
        %v4039 = vpack.c.b16 %v2399, %v2395
        %v4040 = vpack.c.b16 %v2400, %v2396
        %v4041 = vpack.c.b16 %v2401, %v2397
        %v4042 = vpack.c.b16 %v2406, %v2402
        %v4043 = vpack.c.b16 %v2407, %v2403
        %v4044 = vpack.c.b16 %v2408, %v2404
        %v4045 = vpack.c.b16 %v2409, %v2405
        %v4046 = vpack.c.b16 %v2414, %v2410
        %v4047 = vpack.c.b16 %v2415, %v2411
        %v4048 = vpack.c.b16 %v2416, %v2412
        %v4049 = vpack.c.b16 %v2417, %v2413
        %v4050 = vpack.c.b16 %v2422, %v2418
        %v4051 = vpack.c.b16 %v2423, %v2419
        %v4052 = vpack.c.b16 %v2424, %v2420
        %v4053 = vpack.c.b16 %v2425, %v2421
        %v4054 = vpack.c.b16 %v2430, %v2426
        %v4055 = vpack.c.b16 %v2431, %v2427
        %v4056 = vpack.c.b16 %v2432, %v2428
        %v4057 = vpack.c.b16 %v2433, %v2429
        %v4058 = vpack.c.b16 %v2438, %v2434
        %v4059 = vpack.c.b16 %v2439, %v2435
        %v4060 = vpack.c.b16 %v2440, %v2436
        %v4061 = vpack.c.b16 %v2441, %v2437
        %v4062 = vpack.c.b16 %v2446, %v2442
        %v4063 = vpack.c.b16 %v2447, %v2443
        %v4064 = vpack.c.b16 %v2448, %v2444
        %v4065 = vpack.c.b16 %v2449, %v2445
        %v4066 = vpack.c.b16 %v2454, %v2450
        %v4067 = vpack.c.b16 %v2455, %v2451
        %v4068 = vpack.c.b16 %v2456, %v2452
        %v4069 = vpack.c.b16 %v2457, %v2453
        %v4070 = vpack.c.b16 %v2462, %v2458
        %v4071 = vpack.c.b16 %v2463, %v2459
        %v4072 = vpack.c.b16 %v2464, %v2460
        %v4073 = vpack.c.b16 %v2465, %v2461
        %v4074 = vpack.c.b16 %v2470, %v2466
        %v4075 = vpack.c.b16 %v2471, %v2467
        %v4076 = vpack.c.b16 %v2472, %v2468
        %v4077 = vpack.c.b16 %v2473, %v2469
        %v4078 = vpack.c.b16 %v2478, %v2474
        %v4079 = vpack.c.b16 %v2479, %v2475
        %v4080 = vpack.c.b16 %v2480, %v2476
        %v4081 = vpack.c.b16 %v2481, %v2477
        %v4082 = vpack.c.b16 %v2486, %v2482
        %v4083 = vpack.c.b16 %v2487, %v2483
        %v4084 = vpack.c.b16 %v2488, %v2484
        %v4085 = vpack.c.b16 %v2489, %v2485
        %v4086 = vpack.c.b16 %v2494, %v2490
        %v4087 = vpack.c.b16 %v2495, %v2491
        %v4088 = vpack.c.b16 %v2496, %v2492
        %v4089 = vpack.c.b16 %v2497, %v2493
        %v4090 = vpack.c.b16 %v2502, %v2498
        %v4091 = vpack.c.b16 %v2503, %v2499
        %v4092 = vpack.c.b16 %v2504, %v2500
        %v4093 = vpack.c.b16 %v2505, %v2501
        %v4094 = vpack.c.b16 %v2510, %v2506
        %v4095 = vpack.c.b16 %v2511, %v2507
        %v4096 = vpack.c.b16 %v2512, %v2508
        %v4097 = vpack.c.b16 %v2513, %v2509
        %v4098 = vpack.c.b16 %v2518, %v2514
        %v4099 = vpack.c.b16 %v2519, %v2515
        %v4100 = vpack.c.b16 %v2520, %v2516
        %v4101 = vpack.c.b16 %v2521, %v2517
        %v4102 = vpack.c.b16 %v2526, %v2522
        %v4103 = vpack.c.b16 %v2527, %v2523
        %v4104 = vpack.c.b16 %v2528, %v2524
        %v4105 = vpack.c.b16 %v2529, %v2525
        %v4106 = vpack.c.b16 %v2534, %v2530
        %v4107 = vpack.c.b16 %v2535, %v2531
        %v4108 = vpack.c.b16 %v2536, %v2532
        %v4109 = vpack.c.b16 %v2537, %v2533
        %v4110 = vpack.c.b16 %v2542, %v2538
        %v4111 = vpack.c.b16 %v2543, %v2539
        %v4112 = vpack.c.b16 %v2544, %v2540
        %v4113 = vpack.c.b16 %v2545, %v2541
        %v4114 = vpack.c.b16 %v2550, %v2546
        %v4115 = vpack.c.b16 %v2551, %v2547
        %v4116 = vpack.c.b16 %v2552, %v2548
        %v4117 = vpack.c.b16 %v2553, %v2549
        %v4118 = vpack.c.b16 %v2558, %v2554
        %v4119 = vpack.c.b16 %v2559, %v2555
        %v4120 = vpack.c.b16 %v2560, %v2556
        %v4121 = vpack.c.b16 %v2561, %v2557
        %v4122 = vpack.c.b16 %v2566, %v2562
        %v4123 = vpack.c.b16 %v2567, %v2563
        %v4124 = vpack.c.b16 %v2568, %v2564
        %v4125 = vpack.c.b16 %v2569, %v2565
        %v4126 = vpack.c.b16 %v2574, %v2570
        %v4127 = vpack.c.b16 %v2575, %v2571
        %v4128 = vpack.c.b16 %v2576, %v2572
        %v4129 = vpack.c.b16 %v2577, %v2573
        %v4130 = vpack.c.b16 %v2582, %v2578
        %v4131 = vpack.c.b16 %v2583, %v2579
        %v4132 = vpack.c.b16 %v2584, %v2580
        %v4133 = vpack.c.b16 %v2585, %v2581
        %v4134 = vpack.c.b16 %v2590, %v2586
        %v4135 = vpack.c.b16 %v2591, %v2587
        %v4136 = vpack.c.b16 %v2592, %v2588
        %v4137 = vpack.c.b16 %v2593, %v2589
        %v4138 = vpack.c.b16 %v2598, %v2594
        %v4139 = vpack.c.b16 %v2599, %v2595
        %v4140 = vpack.c.b16 %v2600, %v2596
        %v4141 = vpack.c.b16 %v2601, %v2597
        %v4142 = vpack.c.b16 %v2606, %v2602
        %v4143 = vpack.c.b16 %v2607, %v2603
        %v4144 = vpack.c.b16 %v2608, %v2604
        %v4145 = vpack.c.b16 %v2609, %v2605
        %v4146 = vpack.c.b16 %v2614, %v2610
        %v4147 = vpack.c.b16 %v2615, %v2611
        %v4148 = vpack.c.b16 %v2616, %v2612
        %v4149 = vpack.c.b16 %v2617, %v2613
        %v4150 = vpack.c.b16 %v2622, %v2618
        %v4151 = vpack.c.b16 %v2623, %v2619
        %v4152 = vpack.c.b16 %v2624, %v2620
        %v4153 = vpack.c.b16 %v2625, %v2621
        %v4154 = vpack.c.b16 %v2630, %v2626
        %v4155 = vpack.c.b16 %v2631, %v2627
        %v4156 = vpack.c.b16 %v2632, %v2628
        %v4157 = vpack.c.b16 %v2633, %v2629
        %v4158 = vpack.c.b16 %v2638, %v2634
        %v4159 = vpack.c.b16 %v2639, %v2635
        %v4160 = vpack.c.b16 %v2640, %v2636
        %v4161 = vpack.c.b16 %v2641, %v2637
        %v4162 = vpack.c.b16 %v2646, %v2642
        %v4163 = vpack.c.b16 %v2647, %v2643
        %v4164 = vpack.c.b16 %v2648, %v2644
        %v4165 = vpack.c.b16 %v2649, %v2645
        %v4166 = vpack.c.b16 %v2654, %v2650
        %v4167 = vpack.c.b16 %v2655, %v2651
        %v4168 = vpack.c.b16 %v2656, %v2652
        %v4169 = vpack.c.b16 %v2657, %v2653
        %v4170 = vpack.c.b16 %v2662, %v2658
        %v4171 = vpack.c.b16 %v2663, %v2659
        %v4172 = vpack.c.b16 %v2664, %v2660
        %v4173 = vpack.c.b16 %v2665, %v2661
        %v4174 = vpack.c.b16 %v2670, %v2666
        %v4175 = vpack.c.b16 %v2671, %v2667
        %v4176 = vpack.c.b16 %v2672, %v2668
        %v4177 = vpack.c.b16 %v2673, %v2669
        %v4178 = vpack.c.b16 %v2678, %v2674
        %v4179 = vpack.c.b16 %v2679, %v2675
        %v4180 = vpack.c.b16 %v2680, %v2676
        %v4181 = vpack.c.b16 %v2681, %v2677
        %v4182 = vpack.c.b16 %v2686, %v2682
        %v4183 = vpack.c.b16 %v2687, %v2683
        %v4184 = vpack.c.b16 %v2688, %v2684
        %v4185 = vpack.c.b16 %v2689, %v2685
        %v4186 = vpack.c.b16 %v2694, %v2690
        %v4187 = vpack.c.b16 %v2695, %v2691
        %v4188 = vpack.c.b16 %v2696, %v2692
        %v4189 = vpack.c.b16 %v2697, %v2693
        %v4190 = vpack.c.b16 %v2702, %v2698
        %v4191 = vpack.c.b16 %v2703, %v2699
        %v4192 = vpack.c.b16 %v2704, %v2700
        %v4193 = vpack.c.b16 %v2705, %v2701
        %v4194 = vpack.c.b16 %v2710, %v2706
        %v4195 = vpack.c.b16 %v2711, %v2707
        %v4196 = vpack.c.b16 %v2712, %v2708
        %v4197 = vpack.c.b16 %v2713, %v2709
        %v4198 = vpack.c.b16 %v2718, %v2714
        %v4199 = vpack.c.b16 %v2719, %v2715
        %v4200 = vpack.c.b16 %v2720, %v2716
        %v4201 = vpack.c.b16 %v2721, %v2717
        %v4202 = vpack.c.b16 %v2726, %v2722
        %v4203 = vpack.c.b16 %v2727, %v2723
        %v4204 = vpack.c.b16 %v2728, %v2724
        %v4205 = vpack.c.b16 %v2729, %v2725
        %v4206 = vpack.c.b16 %v2734, %v2730
        %v4207 = vpack.c.b16 %v2735, %v2731
        %v4208 = vpack.c.b16 %v2736, %v2732
        %v4209 = vpack.c.b16 %v2737, %v2733
        %v4210 = vpack.c.b16 %v2742, %v2738
        %v4211 = vpack.c.b16 %v2743, %v2739
        %v4212 = vpack.c.b16 %v2744, %v2740
        %v4213 = vpack.c.b16 %v2745, %v2741
        %v4214 = vpack.c.b16 %v2750, %v2746
        %v4215 = vpack.c.b16 %v2751, %v2747
        %v4216 = vpack.c.b16 %v2752, %v2748
        %v4217 = vpack.c.b16 %v2753, %v2749
        %v4218 = vpack.c.b16 %v2758, %v2754
        %v4219 = vpack.c.b16 %v2759, %v2755
        %v4220 = vpack.c.b16 %v2760, %v2756
        %v4221 = vpack.c.b16 %v2761, %v2757
        %v4222 = vpack.c.b16 %v2766, %v2762
        %v4223 = vpack.c.b16 %v2767, %v2763
        %v4224 = vpack.c.b16 %v2768, %v2764
        %v4225 = vpack.c.b16 %v2769, %v2765
        %v4226 = vpack.c.b16 %v2774, %v2770
        %v4227 = vpack.c.b16 %v2775, %v2771
        %v4228 = vpack.c.b16 %v2776, %v2772
        %v4229 = vpack.c.b16 %v2777, %v2773
        %v4230 = vpack.c.b16 %v2782, %v2778
        %v4231 = vpack.c.b16 %v2783, %v2779
        %v4232 = vpack.c.b16 %v2784, %v2780
        %v4233 = vpack.c.b16 %v2785, %v2781
        %v4234 = vpack.c.b16 %v2790, %v2786
        %v4235 = vpack.c.b16 %v2791, %v2787
        %v4236 = vpack.c.b16 %v2792, %v2788
        %v4237 = vpack.c.b16 %v2793, %v2789
        %v4238 = vpack.c.b16 %v2798, %v2794
        %v4239 = vpack.c.b16 %v2799, %v2795
        %v4240 = vpack.c.b16 %v2800, %v2796
        %v4241 = vpack.c.b16 %v2801, %v2797
        %v4242 = vpack.c.b16 %v2806, %v2802
        %v4243 = vpack.c.b16 %v2807, %v2803
        %v4244 = vpack.c.b16 %v2808, %v2804
        %v4245 = vpack.c.b16 %v2809, %v2805
        %v4246 = vpack.c.b16 %v2814, %v2810
        %v4247 = vpack.c.b16 %v2815, %v2811
        %v4248 = vpack.c.b16 %v2816, %v2812
        %v4249 = vpack.c.b16 %v2817, %v2813
        %v4250 = vpack.c.b16 %v2822, %v2818
        %v4251 = vpack.c.b16 %v2823, %v2819
        %v4252 = vpack.c.b16 %v2824, %v2820
        %v4253 = vpack.c.b16 %v2825, %v2821
        %v4254 = vpack.c.b16 %v2830, %v2826
        %v4255 = vpack.c.b16 %v2831, %v2827
        %v4256 = vpack.c.b16 %v2832, %v2828
        %v4257 = vpack.c.b16 %v2833, %v2829
        %v4258 = vpack.c.b16 %v2838, %v2834
        %v4259 = vpack.c.b16 %v2839, %v2835
        %v4260 = vpack.c.b16 %v2840, %v2836
        %v4261 = vpack.c.b16 %v2841, %v2837
        %v4262 = vpack.c.b16 %v2846, %v2842
        %v4263 = vpack.c.b16 %v2847, %v2843
        %v4264 = vpack.c.b16 %v2848, %v2844
        %v4265 = vpack.c.b16 %v2849, %v2845
        %v4266 = vpack.c.b16 %v2854, %v2850
        %v4267 = vpack.c.b16 %v2855, %v2851
        %v4268 = vpack.c.b16 %v2856, %v2852
        %v4269 = vpack.c.b16 %v2857, %v2853
        %v4270 = vpack.c.b16 %v2862, %v2858
        %v4271 = vpack.c.b16 %v2863, %v2859
        %v4272 = vpack.c.b16 %v2864, %v2860
        %v4273 = vpack.c.b16 %v2865, %v2861
        %v4274 = vpack.c.b16 %v2870, %v2866
        %v4275 = vpack.c.b16 %v2871, %v2867
        %v4276 = vpack.c.b16 %v2872, %v2868
        %v4277 = vpack.c.b16 %v2873, %v2869
        %v4278 = vpack.c.b16 %v2878, %v2874
        %v4279 = vpack.c.b16 %v2879, %v2875
        %v4280 = vpack.c.b16 %v2880, %v2876
        %v4281 = vpack.c.b16 %v2881, %v2877
        %v4282 = vpack.c.b16 %v2886, %v2882
        %v4283 = vpack.c.b16 %v2887, %v2883
        %v4284 = vpack.c.b16 %v2888, %v2884
        %v4285 = vpack.c.b16 %v2889, %v2885
        %v4286 = vpack.c.b16 %v2894, %v2890
        %v4287 = vpack.c.b16 %v2895, %v2891
        %v4288 = vpack.c.b16 %v2896, %v2892
        %v4289 = vpack.c.b16 %v2897, %v2893
        %v4290 = vpack.c.b16 %v2902, %v2898
        %v4291 = vpack.c.b16 %v2903, %v2899
        %v4292 = vpack.c.b16 %v2904, %v2900
        %v4293 = vpack.c.b16 %v2905, %v2901
        %v4294 = vpack.c.b16 %v2910, %v2906
        %v4295 = vpack.c.b16 %v2911, %v2907
        %v4296 = vpack.c.b16 %v2912, %v2908
        %v4297 = vpack.c.b16 %v2913, %v2909
        %v4298 = vpack.c.b16 %v2918, %v2914
        %v4299 = vpack.c.b16 %v2919, %v2915
        %v4300 = vpack.c.b16 %v2920, %v2916
        %v4301 = vpack.c.b16 %v2921, %v2917
        %v4302 = vpack.c.b16 %v2926, %v2922
        %v4303 = vpack.c.b16 %v2927, %v2923
        %v4304 = vpack.c.b16 %v2928, %v2924
        %v4305 = vpack.c.b16 %v2929, %v2925
        %v4306 = vpack.c.b16 %v2934, %v2930
        %v4307 = vpack.c.b16 %v2935, %v2931
        %v4308 = vpack.c.b16 %v2936, %v2932
        %v4309 = vpack.c.b16 %v2937, %v2933
        %v4310 = vpack.c.b16 %v2942, %v2938
        %v4311 = vpack.c.b16 %v2943, %v2939
        %v4312 = vpack.c.b16 %v2944, %v2940
        %v4313 = vpack.c.b16 %v2945, %v2941
        %v4314 = vpack.c.b16 %v2950, %v2946
        %v4315 = vpack.c.b16 %v2951, %v2947
        %v4316 = vpack.c.b16 %v2952, %v2948
        %v4317 = vpack.c.b16 %v2953, %v2949
        %v4318 = vpack.c.b16 %v2958, %v2954
        %v4319 = vpack.c.b16 %v2959, %v2955
        %v4320 = vpack.c.b16 %v2960, %v2956
        %v4321 = vpack.c.b16 %v2961, %v2957
        %v4322 = vpack.c.b16 %v2966, %v2962
        %v4323 = vpack.c.b16 %v2967, %v2963
        %v4324 = vpack.c.b16 %v2968, %v2964
        %v4325 = vpack.c.b16 %v2969, %v2965
        %v4326 = vpack.c.b16 %v2974, %v2970
        %v4327 = vpack.c.b16 %v2975, %v2971
        %v4328 = vpack.c.b16 %v2976, %v2972
        %v4329 = vpack.c.b16 %v2977, %v2973
        %v4330 = vpack.c.b16 %v2982, %v2978
        %v4331 = vpack.c.b16 %v2983, %v2979
        %v4332 = vpack.c.b16 %v2984, %v2980
        %v4333 = vpack.c.b16 %v2985, %v2981
        %v4334 = vpack.c.b16 %v2990, %v2986
        %v4335 = vpack.c.b16 %v2991, %v2987
        %v4336 = vpack.c.b16 %v2992, %v2988
        %v4337 = vpack.c.b16 %v2993, %v2989
        %v4338 = vpack.c.b16 %v2998, %v2994
        %v4339 = vpack.c.b16 %v2999, %v2995
        %v4340 = vpack.c.b16 %v3000, %v2996
        %v4341 = vpack.c.b16 %v3001, %v2997
        %v4342 = vpack.c.b16 %v3006, %v3002
        %v4343 = vpack.c.b16 %v3007, %v3003
        %v4344 = vpack.c.b16 %v3008, %v3004
        %v4345 = vpack.c.b16 %v3009, %v3005
        %v4346 = vpack.c.b16 %v3014, %v3010
        %v4347 = vpack.c.b16 %v3015, %v3011
        %v4348 = vpack.c.b16 %v3016, %v3012
        %v4349 = vpack.c.b16 %v3017, %v3013
        %v4350 = vpack.c.b16 %v3022, %v3018
        %v4351 = vpack.c.b16 %v3023, %v3019
        %v4352 = vpack.c.b16 %v3024, %v3020
        %v4353 = vpack.c.b16 %v3025, %v3021
        %v4354 = vpack.c.b16 %v3030, %v3026
        %v4355 = vpack.c.b16 %v3031, %v3027
        %v4356 = vpack.c.b16 %v3032, %v3028
        %v4357 = vpack.c.b16 %v3033, %v3029
        %v4358 = vpack.c.b16 %v3038, %v3034
        %v4359 = vpack.c.b16 %v3039, %v3035
        %v4360 = vpack.c.b16 %v3040, %v3036
        %v4361 = vpack.c.b16 %v3041, %v3037
        %v4362 = vpack.c.b16 %v3046, %v3042
        %v4363 = vpack.c.b16 %v3047, %v3043
        %v4364 = vpack.c.b16 %v3048, %v3044
        %v4365 = vpack.c.b16 %v3049, %v3045
        %v4366 = vpack.c.b16 %v3054, %v3050
        %v4367 = vpack.c.b16 %v3055, %v3051
        %v4368 = vpack.c.b16 %v3056, %v3052
        %v4369 = vpack.c.b16 %v3057, %v3053
        %v4370 = vpack.c.b16 %v3062, %v3058
        %v4371 = vpack.c.b16 %v3063, %v3059
        %v4372 = vpack.c.b16 %v3064, %v3060
        %v4373 = vpack.c.b16 %v3065, %v3061
        %v4374 = vpack.c.b16 %v3070, %v3066
        %v4375 = vpack.c.b16 %v3071, %v3067
        %v4376 = vpack.c.b16 %v3072, %v3068
        %v4377 = vpack.c.b16 %v3073, %v3069
        %v4378 = vpack.c.b16 %v3078, %v3074
        %v4379 = vpack.c.b16 %v3079, %v3075
        %v4380 = vpack.c.b16 %v3080, %v3076
        %v4381 = vpack.c.b16 %v3081, %v3077
        %v4382 = vpack.c.b16 %v3086, %v3082
        %v4383 = vpack.c.b16 %v3087, %v3083
        %v4384 = vpack.c.b16 %v3088, %v3084
        %v4385 = vpack.c.b16 %v3089, %v3085
        %v4386 = vpack.c.b16 %v3094, %v3090
        %v4387 = vpack.c.b16 %v3095, %v3091
        %v4388 = vpack.c.b16 %v3096, %v3092
        %v4389 = vpack.c.b16 %v3097, %v3093
        %v4390 = vpack.c.b16 %v3102, %v3098
        %v4391 = vpack.c.b16 %v3103, %v3099
        %v4392 = vpack.c.b16 %v3104, %v3100
        %v4393 = vpack.c.b16 %v3105, %v3101
        %v4394 = vpack.c.b16 %v3110, %v3106
        %v4395 = vpack.c.b16 %v3111, %v3107
        %v4396 = vpack.c.b16 %v3112, %v3108
        %v4397 = vpack.c.b16 %v3113, %v3109
        %v4398 = vpack.c.b16 %v3118, %v3114
        %v4399 = vpack.c.b16 %v3119, %v3115
        %v4400 = vpack.c.b16 %v3120, %v3116
        %v4401 = vpack.c.b16 %v3121, %v3117
        %v4402 = vpack.c.b16 %v3126, %v3122
        %v4403 = vpack.c.b16 %v3127, %v3123
        %v4404 = vpack.c.b16 %v3128, %v3124
        %v4405 = vpack.c.b16 %v3129, %v3125
        %v4406 = vpack.c.b16 %v3134, %v3130
        %v4407 = vpack.c.b16 %v3135, %v3131
        %v4408 = vpack.c.b16 %v3136, %v3132
        %v4409 = vpack.c.b16 %v3137, %v3133
        %v4410 = vpack.c.b16 %v3142, %v3138
        %v4411 = vpack.c.b16 %v3143, %v3139
        %v4412 = vpack.c.b16 %v3144, %v3140
        %v4413 = vpack.c.b16 %v3145, %v3141
        %v4414 = vpack.c.b16 %v3150, %v3146
        %v4415 = vpack.c.b16 %v3151, %v3147
        %v4416 = vpack.c.b16 %v3152, %v3148
        %v4417 = vpack.c.b16 %v3153, %v3149
        %v4418 = vpack.c.b16 %v3158, %v3154
        %v4419 = vpack.c.b16 %v3159, %v3155
        %v4420 = vpack.c.b16 %v3160, %v3156
        %v4421 = vpack.c.b16 %v3161, %v3157
        %v4422 = vpack.c.b16 %v3166, %v3162
        %v4423 = vpack.c.b16 %v3167, %v3163
        %v4424 = vpack.c.b16 %v3168, %v3164
        %v4425 = vpack.c.b16 %v3169, %v3165
        %v4426 = vpack.c.b16 %v3174, %v3170
        %v4427 = vpack.c.b16 %v3175, %v3171
        %v4428 = vpack.c.b16 %v3176, %v3172
        %v4429 = vpack.c.b16 %v3177, %v3173
        %v4430 = vpack.c.b16 %v3182, %v3178
        %v4431 = vpack.c.b16 %v3183, %v3179
        %v4432 = vpack.c.b16 %v3184, %v3180
        %v4433 = vpack.c.b16 %v3185, %v3181
        %v4434 = vpack.c.b16 %v3190, %v3186
        %v4435 = vpack.c.b16 %v3191, %v3187
        %v4436 = vpack.c.b16 %v3192, %v3188
        %v4437 = vpack.c.b16 %v3193, %v3189
        %v4438 = vpack.c.b16 %v3198, %v3194
        %v4439 = vpack.c.b16 %v3199, %v3195
        %v4440 = vpack.c.b16 %v3200, %v3196
        %v4441 = vpack.c.b16 %v3201, %v3197
        %v4442 = vpack.c.b16 %v3206, %v3202
        %v4443 = vpack.c.b16 %v3207, %v3203
        %v4444 = vpack.c.b16 %v3208, %v3204
        %v4445 = vpack.c.b16 %v3209, %v3205
        %v4446 = vpack.c.b16 %v3214, %v3210
        %v4447 = vpack.c.b16 %v3215, %v3211
        %v4448 = vpack.c.b16 %v3216, %v3212
        %v4449 = vpack.c.b16 %v3217, %v3213
        %v4450 = vpack.c.b16 %v3222, %v3218
        %v4451 = vpack.c.b16 %v3223, %v3219
        %v4452 = vpack.c.b16 %v3224, %v3220
        %v4453 = vpack.c.b16 %v3225, %v3221
        %v4454 = vpack.c.b16 %v3230, %v3226
        %v4455 = vpack.c.b16 %v3231, %v3227
        %v4456 = vpack.c.b16 %v3232, %v3228
        %v4457 = vpack.c.b16 %v3233, %v3229
        %v4458 = vpack.c.b16 %v3238, %v3234
        %v4459 = vpack.c.b16 %v3239, %v3235
        %v4460 = vpack.c.b16 %v3240, %v3236
        %v4461 = vpack.c.b16 %v3241, %v3237
        %v4462 = vpack.c.b16 %v3246, %v3242
        %v4463 = vpack.c.b16 %v3247, %v3243
        %v4464 = vpack.c.b16 %v3248, %v3244
        %v4465 = vpack.c.b16 %v3249, %v3245
        %v4466 = vpack.c.b16 %v3254, %v3250
        %v4467 = vpack.c.b16 %v3255, %v3251
        %v4468 = vpack.c.b16 %v3256, %v3252
        %v4469 = vpack.c.b16 %v3257, %v3253
        %v4470 = vpack.c.b16 %v3262, %v3258
        %v4471 = vpack.c.b16 %v3263, %v3259
        %v4472 = vpack.c.b16 %v3264, %v3260
        %v4473 = vpack.c.b16 %v3265, %v3261
        %v4474 = vpack.c.b16 %v3270, %v3266
        %v4475 = vpack.c.b16 %v3271, %v3267
        %v4476 = vpack.c.b16 %v3272, %v3268
        %v4477 = vpack.c.b16 %v3273, %v3269
        %v4478 = vpack.c.b16 %v3278, %v3274
        %v4479 = vpack.c.b16 %v3279, %v3275
        %v4480 = vpack.c.b16 %v3280, %v3276
        %v4481 = vpack.c.b16 %v3281, %v3277
        %v4482 = vpack.c.b16 %v3286, %v3282
        %v4483 = vpack.c.b16 %v3287, %v3283
        %v4484 = vpack.c.b16 %v3288, %v3284
        %v4485 = vpack.c.b16 %v3289, %v3285
        %v4486 = vpack.c.b16 %v3294, %v3290
        %v4487 = vpack.c.b16 %v3295, %v3291
        %v4488 = vpack.c.b16 %v3296, %v3292
        %v4489 = vpack.c.b16 %v3297, %v3293
        %v4490 = vpack.c.b16 %v3302, %v3298
        %v4491 = vpack.c.b16 %v3303, %v3299
        %v4492 = vpack.c.b16 %v3304, %v3300
        %v4493 = vpack.c.b16 %v3305, %v3301
        %v4494 = vpack.c.b16 %v3310, %v3306
        %v4495 = vpack.c.b16 %v3311, %v3307
        %v4496 = vpack.c.b16 %v3312, %v3308
        %v4497 = vpack.c.b16 %v3313, %v3309
        %v4498 = vpack.c.b16 %v3318, %v3314
        %v4499 = vpack.c.b16 %v3319, %v3315
        %v4500 = vpack.c.b16 %v3320, %v3316
        %v4501 = vpack.c.b16 %v3321, %v3317
        %v4502 = vpack.c.b16 %v3326, %v3322
        %v4503 = vpack.c.b16 %v3327, %v3323
        %v4504 = vpack.c.b16 %v3328, %v3324
        %v4505 = vpack.c.b16 %v3329, %v3325
        %v4506 = vpack.c.b16 %v3334, %v3330
        %v4507 = vpack.c.b16 %v3335, %v3331
        %v4508 = vpack.c.b16 %v3336, %v3332
        %v4509 = vpack.c.b16 %v3337, %v3333
        %v4510 = vpack.c.b16 %v3342, %v3338
        %v4511 = vpack.c.b16 %v3343, %v3339
        %v4512 = vpack.c.b16 %v3344, %v3340
        %v4513 = vpack.c.b16 %v3345, %v3341
        %v4514 = vpack.c.b16 %v3350, %v3346
        %v4515 = vpack.c.b16 %v3351, %v3347
        %v4516 = vpack.c.b16 %v3352, %v3348
        %v4517 = vpack.c.b16 %v3353, %v3349
        %v4518 = vpack.c.b16 %v3358, %v3354
        %v4519 = vpack.c.b16 %v3359, %v3355
        %v4520 = vpack.c.b16 %v3360, %v3356
        %v4521 = vpack.c.b16 %v3361, %v3357
        %v4522 = vpack.c.b16 %v3366, %v3362
        %v4523 = vpack.c.b16 %v3367, %v3363
        %v4524 = vpack.c.b16 %v3368, %v3364
        %v4525 = vpack.c.b16 %v3369, %v3365
        %v4526 = vpack.c.b16 %v3374, %v3370
        %v4527 = vpack.c.b16 %v3375, %v3371
        %v4528 = vpack.c.b16 %v3376, %v3372
        %v4529 = vpack.c.b16 %v3377, %v3373
        %v4530 = vpack.c.b16 %v3382, %v3378
        %v4531 = vpack.c.b16 %v3383, %v3379
        %v4532 = vpack.c.b16 %v3384, %v3380
        %v4533 = vpack.c.b16 %v3385, %v3381
        %v4534 = vpack.c.b16 %v3390, %v3386
        %v4535 = vpack.c.b16 %v3391, %v3387
        %v4536 = vpack.c.b16 %v3392, %v3388
        %v4537 = vpack.c.b16 %v3393, %v3389
        %v4538 = vpack.c.b16 %v3398, %v3394
        %v4539 = vpack.c.b16 %v3399, %v3395
        %v4540 = vpack.c.b16 %v3400, %v3396
        %v4541 = vpack.c.b16 %v3401, %v3397
        %v4542 = vpack.c.b16 %v3406, %v3402
        %v4543 = vpack.c.b16 %v3407, %v3403
        %v4544 = vpack.c.b16 %v3408, %v3404
        %v4545 = vpack.c.b16 %v3409, %v3405
        %v4546 = vpack.c.b16 %v3414, %v3410
        %v4547 = vpack.c.b16 %v3415, %v3411
        %v4548 = vpack.c.b16 %v3416, %v3412
        %v4549 = vpack.c.b16 %v3417, %v3413
        %v4550 = vpack.c.b16 %v3422, %v3418
        %v4551 = vpack.c.b16 %v3423, %v3419
        %v4552 = vpack.c.b16 %v3424, %v3420
        %v4553 = vpack.c.b16 %v3425, %v3421
        %v4554 = vpack.c.b16 %v3430, %v3426
        %v4555 = vpack.c.b16 %v3431, %v3427
        %v4556 = vpack.c.b16 %v3432, %v3428
        %v4557 = vpack.c.b16 %v3433, %v3429
        %v4558 = vpack.c.b16 %v3438, %v3434
        %v4559 = vpack.c.b16 %v3439, %v3435
        %v4560 = vpack.c.b16 %v3440, %v3436
        %v4561 = vpack.c.b16 %v3441, %v3437
        %v4562 = vpack.c.b16 %v3446, %v3442
        %v4563 = vpack.c.b16 %v3447, %v3443
        %v4564 = vpack.c.b16 %v3448, %v3444
        %v4565 = vpack.c.b16 %v3449, %v3445
        %v4566 = vpack.c.b16 %v3454, %v3450
        %v4567 = vpack.c.b16 %v3455, %v3451
        %v4568 = vpack.c.b16 %v3456, %v3452
        %v4569 = vpack.c.b16 %v3457, %v3453
        %v4570 = vpack.c.b16 %v3462, %v3458
        %v4571 = vpack.c.b16 %v3463, %v3459
        %v4572 = vpack.c.b16 %v3464, %v3460
        %v4573 = vpack.c.b16 %v3465, %v3461
        %v4574 = vpack.c.b16 %v3470, %v3466
        %v4575 = vpack.c.b16 %v3471, %v3467
        %v4576 = vpack.c.b16 %v3472, %v3468
        %v4577 = vpack.c.b16 %v3473, %v3469
        %v4578 = vpack.c.b16 %v3478, %v3474
        %v4579 = vpack.c.b16 %v3479, %v3475
        %v4580 = vpack.c.b16 %v3480, %v3476
        %v4581 = vpack.c.b16 %v3481, %v3477
        %v4582 = vpack.c.b16 %v3486, %v3482
        %v4583 = vpack.c.b16 %v3487, %v3483
        %v4584 = vpack.c.b16 %v3488, %v3484
        %v4585 = vpack.c.b16 %v3489, %v3485
        %v4586 = vpack.c.b16 %v3494, %v3490
        %v4587 = vpack.c.b16 %v3495, %v3491
        %v4588 = vpack.c.b16 %v3496, %v3492
        %v4589 = vpack.c.b16 %v3497, %v3493
        %v4590 = vpack.c.b16 %v3502, %v3498
        %v4591 = vpack.c.b16 %v3503, %v3499
        %v4592 = vpack.c.b16 %v3504, %v3500
        %v4593 = vpack.c.b16 %v3505, %v3501
        %v4594 = vpack.c.b16 %v3510, %v3506
        %v4595 = vpack.c.b16 %v3511, %v3507
        %v4596 = vpack.c.b16 %v3512, %v3508
        %v4597 = vpack.c.b16 %v3513, %v3509
        %v4598 = vpack.c.b16 %v3518, %v3514
        %v4599 = vpack.c.b16 %v3519, %v3515
        %v4600 = vpack.c.b16 %v3520, %v3516
        %v4601 = vpack.c.b16 %v3521, %v3517
        %v4602 = vpack.c.b16 %v3526, %v3522
        %v4603 = vpack.c.b16 %v3527, %v3523
        %v4604 = vpack.c.b16 %v3528, %v3524
        %v4605 = vpack.c.b16 %v3529, %v3525
        %v4606 = vpack.c.b16 %v3534, %v3530
        %v4607 = vpack.c.b16 %v3535, %v3531
        %v4608 = vpack.c.b16 %v3536, %v3532
        %v4609 = vpack.c.b16 %v3537, %v3533
        %v4610 = vpack.c.b16 %v3542, %v3538
        %v4611 = vpack.c.b16 %v3543, %v3539
        %v4612 = vpack.c.b16 %v3544, %v3540
        %v4613 = vpack.c.b16 %v3545, %v3541
        %v4614 = vpack.c.b16 %v3550, %v3546
        %v4615 = vpack.c.b16 %v3551, %v3547
        %v4616 = vpack.c.b16 %v3552, %v3548
        %v4617 = vpack.c.b16 %v3553, %v3549
        %v4618 = vpack.c.b16 %v3558, %v3554
        %v4619 = vpack.c.b16 %v3559, %v3555
        %v4620 = vpack.c.b16 %v3560, %v3556
        %v4621 = vpack.c.b16 %v3561, %v3557
        %v4622 = vpack.c.b16 %v3566, %v3562
        %v4623 = vpack.c.b16 %v3567, %v3563
        %v4624 = vpack.c.b16 %v3568, %v3564
        %v4625 = vpack.c.b16 %v3569, %v3565
        %v4626 = vpack.c.b16 %v3574, %v3570
        %v4627 = vpack.c.b16 %v3575, %v3571
        %v4628 = vpack.c.b16 %v3576, %v3572
        %v4629 = vpack.c.b16 %v3577, %v3573
        %v4630 = vpack.c.b16 %v3582, %v3578
        %v4631 = vpack.c.b16 %v3583, %v3579
        %v4632 = vpack.c.b16 %v3584, %v3580
        %v4633 = vpack.c.b16 %v3585, %v3581
        %v4634 = vpack.c.b16 %v3590, %v3586
        %v4635 = vpack.c.b16 %v3591, %v3587
        %v4636 = vpack.c.b16 %v3592, %v3588
        %v4637 = vpack.c.b16 %v3593, %v3589
        %v4638 = vpack.c.b16 %v3598, %v3594
        %v4639 = vpack.c.b16 %v3599, %v3595
        %v4640 = vpack.c.b16 %v3600, %v3596
        %v4641 = vpack.c.b16 %v3601, %v3597
        %v4642 = vpack.c.b16 %v3606, %v3602
        %v4643 = vpack.c.b16 %v3607, %v3603
        %v4644 = vpack.c.b16 %v3608, %v3604
        %v4645 = vpack.c.b16 %v3609, %v3605
        %v4646 = vpack.c.b16 %v3614, %v3610
        %v4647 = vpack.c.b16 %v3615, %v3611
        %v4648 = vpack.c.b16 %v3616, %v3612
        %v4649 = vpack.c.b16 %v3617, %v3613
        %v4650 = vpack.c.b16 %v3622, %v3618
        %v4651 = vpack.c.b16 %v3623, %v3619
        %v4652 = vpack.c.b16 %v3624, %v3620
        %v4653 = vpack.c.b16 %v3625, %v3621
        %v4654 = vpack.c.b16 %v3630, %v3626
        %v4655 = vpack.c.b16 %v3631, %v3627
        %v4656 = vpack.c.b16 %v3632, %v3628
        %v4657 = vpack.c.b16 %v3633, %v3629
        %v4658 = vpack.c.b16 %v3638, %v3634
        %v4659 = vpack.c.b16 %v3639, %v3635
        %v4660 = vpack.c.b16 %v3640, %v3636
        %v4661 = vpack.c.b16 %v3641, %v3637
        %v4662 = vpack.c.b16 %v3646, %v3642
        %v4663 = vpack.c.b16 %v3647, %v3643
        %v4664 = vpack.c.b16 %v3648, %v3644
        %v4665 = vpack.c.b16 %v3649, %v3645
        %v4666 = vpack.c.b16 %v3654, %v3650
        %v4667 = vpack.c.b16 %v3655, %v3651
        %v4668 = vpack.c.b16 %v3656, %v3652
        %v4669 = vpack.c.b16 %v3657, %v3653
        %v4670 = vpack.c.b16 %v3662, %v3658
        %v4671 = vpack.c.b16 %v3663, %v3659
        %v4672 = vpack.c.b16 %v3664, %v3660
        %v4673 = vpack.c.b16 %v3665, %v3661
        %v4674 = vpack.c.b16 %v3670, %v3666
        %v4675 = vpack.c.b16 %v3671, %v3667
        %v4676 = vpack.c.b16 %v3672, %v3668
        %v4677 = vpack.c.b16 %v3673, %v3669
        %v4678 = vpack.c.b16 %v3678, %v3674
        %v4679 = vpack.c.b16 %v3679, %v3675
        %v4680 = vpack.c.b16 %v3680, %v3676
        %v4681 = vpack.c.b16 %v3681, %v3677
        %v4682 = vpack.c.b16 %v3686, %v3682
        %v4683 = vpack.c.b16 %v3687, %v3683
        %v4684 = vpack.c.b16 %v3688, %v3684
        %v4685 = vpack.c.b16 %v3689, %v3685
        %v4686 = vpack.c.b16 %v3694, %v3690
        %v4687 = vpack.c.b16 %v3695, %v3691
        %v4688 = vpack.c.b16 %v3696, %v3692
        %v4689 = vpack.c.b16 %v3697, %v3693
        %v4690 = vpack.c.b16 %v3702, %v3698
        %v4691 = vpack.c.b16 %v3703, %v3699
        %v4692 = vpack.c.b16 %v3704, %v3700
        %v4693 = vpack.c.b16 %v3705, %v3701
        %v4694 = vpack.c.b16 %v3710, %v3706
        %v4695 = vpack.c.b16 %v3711, %v3707
        %v4696 = vpack.c.b16 %v3712, %v3708
        %v4697 = vpack.c.b16 %v3713, %v3709
        %v4698 = vpack.c.b16 %v3718, %v3714
        %v4699 = vpack.c.b16 %v3719, %v3715
        %v4700 = vpack.c.b16 %v3720, %v3716
        %v4701 = vpack.c.b16 %v3721, %v3717
        %v4702 = vpack.c.b16 %v3726, %v3722
        %v4703 = vpack.c.b16 %v3727, %v3723
        %v4704 = vpack.c.b16 %v3728, %v3724
        %v4705 = vpack.c.b16 %v3729, %v3725
        %v4706 = vpack.c.b16 %v3734, %v3730
        %v4707 = vpack.c.b16 %v3735, %v3731
        %v4708 = vpack.c.b16 %v3736, %v3732
        %v4709 = vpack.c.b16 %v3737, %v3733
        %v4710 = vpack.c.b16 %v3742, %v3738
        %v4711 = vpack.c.b16 %v3743, %v3739
        %v4712 = vpack.c.b16 %v3744, %v3740
        %v4713 = vpack.c.b16 %v3745, %v3741
        %v4714 = vpack.c.b16 %v3750, %v3746
        %v4715 = vpack.c.b16 %v3751, %v3747
        %v4716 = vpack.c.b16 %v3752, %v3748
        %v4717 = vpack.c.b16 %v3753, %v3749
        %v4718 = vpack.c.b16 %v3758, %v3754
        %v4719 = vpack.c.b16 %v3759, %v3755
        %v4720 = vpack.c.b16 %v3760, %v3756
        %v4721 = vpack.c.b16 %v3761, %v3757
        %v4722 = vpack.c.b16 %v3766, %v3762
        %v4723 = vpack.c.b16 %v3767, %v3763
        %v4724 = vpack.c.b16 %v3768, %v3764
        %v4725 = vpack.c.b16 %v3769, %v3765
        %v4726 = vpack.c.b16 %v3774, %v3770
        %v4727 = vpack.c.b16 %v3775, %v3771
        %v4728 = vpack.c.b16 %v3776, %v3772
        %v4729 = vpack.c.b16 %v3777, %v3773
        %v4730 = vpack.c.b16 %v3782, %v3778
        %v4731 = vpack.c.b16 %v3783, %v3779
        %v4732 = vpack.c.b16 %v3784, %v3780
        %v4733 = vpack.c.b16 %v3785, %v3781
        %v4734 = vpack.c.b16 %v3790, %v3786
        %v4735 = vpack.c.b16 %v3791, %v3787
        %v4736 = vpack.c.b16 %v3792, %v3788
        %v4737 = vpack.c.b16 %v3793, %v3789
        %v4738 = vpack.c.b16 %v3798, %v3794
        %v4739 = vpack.c.b16 %v3799, %v3795
        %v4740 = vpack.c.b16 %v3800, %v3796
        %v4741 = vpack.c.b16 %v3801, %v3797
        %v4742 = vpack.c.b16 %v3806, %v3802
        %v4743 = vpack.c.b16 %v3807, %v3803
        %v4744 = vpack.c.b16 %v3808, %v3804
        %v4745 = vpack.c.b16 %v3809, %v3805
        %v4746 = vpack.c.b16 %v3814, %v3810
        %v4747 = vpack.c.b16 %v3815, %v3811
        %v4748 = vpack.c.b16 %v3816, %v3812
        %v4749 = vpack.c.b16 %v3817, %v3813
        %v4750 = vpack.c.b16 %v3822, %v3818
        %v4751 = vpack.c.b16 %v3823, %v3819
        %v4752 = vpack.c.b16 %v3824, %v3820
        %v4753 = vpack.c.b16 %v3825, %v3821
        %v4754 = vpack.c.b16 %v3830, %v3826
        %v4755 = vpack.c.b16 %v3831, %v3827
        %v4756 = vpack.c.b16 %v3832, %v3828
        %v4757 = vpack.c.b16 %v3833, %v3829
        %v4758 = vpack.c.b16 %v3838, %v3834
        %v4759 = vpack.c.b16 %v3839, %v3835
        %v4760 = vpack.c.b16 %v3840, %v3836
        %v4761 = vpack.c.b16 %v3841, %v3837
        %v4762 = vpack.c.b16 %v3846, %v3842
        %v4763 = vpack.c.b16 %v3847, %v3843
        %v4764 = vpack.c.b16 %v3848, %v3844
        %v4765 = vpack.c.b16 %v3849, %v3845
        %v4766 = vpack.c.b16 %v3854, %v3850
        %v4767 = vpack.c.b16 %v3855, %v3851
        %v4768 = vpack.c.b16 %v3856, %v3852
        %v4769 = vpack.c.b16 %v3857, %v3853
        %v4770 = vpack.c.b16 %v3862, %v3858
        %v4771 = vpack.c.b16 %v3863, %v3859
        %v4772 = vpack.c.b16 %v3864, %v3860
        %v4773 = vpack.c.b16 %v3865, %v3861
        %v4774 = vpack.c.b16 %v3870, %v3866
        %v4775 = vpack.c.b16 %v3871, %v3867
        %v4776 = vpack.c.b16 %v3872, %v3868
        %v4777 = vpack.c.b16 %v3873, %v3869
        %v4778 = vpack.c.b16 %v3878, %v3874
        %v4779 = vpack.c.b16 %v3879, %v3875
        %v4780 = vpack.c.b16 %v3880, %v3876
        %v4781 = vpack.c.b16 %v3881, %v3877
        %v4782 = vpack.c.b16 %v3886, %v3882
        %v4783 = vpack.c.b16 %v3887, %v3883
        %v4784 = vpack.c.b16 %v3888, %v3884
        %v4785 = vpack.c.b16 %v3889, %v3885
        %v4786 = vpack.c.b16 %v3894, %v3890
        %v4787 = vpack.c.b16 %v3895, %v3891
        %v4788 = vpack.c.b16 %v3896, %v3892
        %v4789 = vpack.c.b16 %v3897, %v3893
        %v4790 = vpack.c.b16 %v3902, %v3898
        %v4791 = vpack.c.b16 %v3903, %v3899
        %v4792 = vpack.c.b16 %v3904, %v3900
        %v4793 = vpack.c.b16 %v3905, %v3901
        %v4794 = vpack.c.b16 %v3910, %v3906
        %v4795 = vpack.c.b16 %v3911, %v3907
        %v4796 = vpack.c.b16 %v3912, %v3908
        %v4797 = vpack.c.b16 %v3913, %v3909
        %v4798 = vpack.c.b16 %v3918, %v3914
        %v4799 = vpack.c.b16 %v3919, %v3915
        %v4800 = vpack.c.b16 %v3920, %v3916
        %v4801 = vpack.c.b16 %v3921, %v3917
        %v4802 = vpack.c.b16 %v3926, %v3922
        %v4803 = vpack.c.b16 %v3927, %v3923
        %v4804 = vpack.c.b16 %v3928, %v3924
        %v4805 = vpack.c.b16 %v3929, %v3925
        %v4806 = vpack.c.b16 %v3934, %v3930
        %v4807 = vpack.c.b16 %v3935, %v3931
        %v4808 = vpack.c.b16 %v3936, %v3932
        %v4809 = vpack.c.b16 %v3937, %v3933
        %v4810 = vpack.c.b16 %v3942, %v3938
        %v4811 = vpack.c.b16 %v3943, %v3939
        %v4812 = vpack.c.b16 %v3944, %v3940
        %v4813 = vpack.c.b16 %v3945, %v3941
        %v4814 = vpack.c.b16 %v3950, %v3946
        %v4815 = vpack.c.b16 %v3951, %v3947
        %v4816 = vpack.c.b16 %v3952, %v3948
        %v4817 = vpack.c.b16 %v3953, %v3949
        %5682 = vmatpush.bf16.msra.mxu0 %v3982
        %5683 = vmatpush.bf16.msra.mxu0 %v3978
        %5684 = vmatpush.bf16.msra.mxu0 %v3974
        %5685 = vmatpush.bf16.msra.mxu0 %v3970
        %5686 = vmatpush.bf16.msra.mxu0 %v3966
        %5687 = vmatpush.bf16.msra.mxu0 %v3962
        %5688 = vmatpush.bf16.msra.mxu0 %v3958
        %5689 = vmatpush.bf16.msra.mxu0 %v3954
        %5690 = vmatmul.bf16.gmra.mxu0 %v471
        %v5691 = vpop.f32.mrf.mxu0
        %v5692 = vadd.f32 0.0, %v5691
        %v5693 = vpop.f32.mrf.mxu0
        %5694 = vdwg.mxu0
        %5695 = vmatpush.bf16.msra.mxu0 %v4014
        %5696 = vmatpush.bf16.msra.mxu0 %v4010
        %5697 = vmatpush.bf16.msra.mxu0 %v4006
        %5698 = vmatpush.bf16.msra.mxu0 %v4002
        %5699 = vmatpush.bf16.msra.mxu0 %v3998
        %5700 = vmatpush.bf16.msra.mxu0 %v3994
        %5701 = vmatpush.bf16.msra.mxu0 %v3990
        %5702 = vmatpush.bf16.msra.mxu0 %v3986
        %5703 = vmatmul.bf16.gmra.mxu0 %v472
        %v5704 = vpop.f32.mrf.mxu0
        %v5705 = vadd.f32 %v5692, %v5704
        %v5706 = vpop.f32.mrf.mxu0
        %5707 = vdwg.mxu0
        %5708 = vmatpush.bf16.msra.mxu0 %v4046
        %5709 = vmatpush.bf16.msra.mxu0 %v4042
        %5710 = vmatpush.bf16.msra.mxu0 %v4038
        %5711 = vmatpush.bf16.msra.mxu0 %v4034
        %5712 = vmatpush.bf16.msra.mxu0 %v4030
        %5713 = vmatpush.bf16.msra.mxu0 %v4026
        %5714 = vmatpush.bf16.msra.mxu0 %v4022
        %5715 = vmatpush.bf16.msra.mxu0 %v4018
        %5716 = vmatmul.bf16.gmra.mxu0 %v473
        %v5717 = vpop.f32.mrf.mxu0
        %v5718 = vadd.f32 %v5705, %v5717
        %v5719 = vpop.f32.mrf.mxu0
        %5720 = vdwg.mxu0
        %5721 = vmatpush.bf16.msra.mxu0 %v4078
        %5722 = vmatpush.bf16.msra.mxu0 %v4074
        %5723 = vmatpush.bf16.msra.mxu0 %v4070
        %5724 = vmatpush.bf16.msra.mxu0 %v4066
        %5725 = vmatpush.bf16.msra.mxu0 %v4062
        %5726 = vmatpush.bf16.msra.mxu0 %v4058
        %5727 = vmatpush.bf16.msra.mxu0 %v4054
        %5728 = vmatpush.bf16.msra.mxu0 %v4050
        %5729 = vmatmul.bf16.gmra.mxu0 %v474
        %v5730 = vpop.f32.mrf.mxu0
        %v5731 = vadd.f32 %v5718, %v5730
        %v5732 = vpop.f32.mrf.mxu0
        %5733 = vdwg.mxu0
        %5734 = vmatpush.bf16.msra.mxu0 %v4110
        %5735 = vmatpush.bf16.msra.mxu0 %v4106
        %5736 = vmatpush.bf16.msra.mxu0 %v4102
        %5737 = vmatpush.bf16.msra.mxu0 %v4098
        %5738 = vmatpush.bf16.msra.mxu0 %v4094
        %5739 = vmatpush.bf16.msra.mxu0 %v4090
        %5740 = vmatpush.bf16.msra.mxu0 %v4086
        %5741 = vmatpush.bf16.msra.mxu0 %v4082
        %5742 = vmatmul.bf16.gmra.mxu0 %v475
        %v5743 = vpop.f32.mrf.mxu0
        %v5744 = vadd.f32 %v5731, %v5743
        %v5745 = vpop.f32.mrf.mxu0
        %5746 = vdwg.mxu0
        %5747 = vmatpush.bf16.msra.mxu0 %v4142
        %5748 = vmatpush.bf16.msra.mxu0 %v4138
        %5749 = vmatpush.bf16.msra.mxu0 %v4134
        %5750 = vmatpush.bf16.msra.mxu0 %v4130
        %5751 = vmatpush.bf16.msra.mxu0 %v4126
        %5752 = vmatpush.bf16.msra.mxu0 %v4122
        %5753 = vmatpush.bf16.msra.mxu0 %v4118
        %5754 = vmatpush.bf16.msra.mxu0 %v4114
        %5755 = vmatmul.bf16.gmra.mxu0 %v476
        %v5756 = vpop.f32.mrf.mxu0
        %v5757 = vadd.f32 %v5744, %v5756
        %v5758 = vpop.f32.mrf.mxu0
        %5759 = vdwg.mxu0
        %5760 = vmatpush.bf16.msra.mxu0 %v4174
        %5761 = vmatpush.bf16.msra.mxu0 %v4170
        %5762 = vmatpush.bf16.msra.mxu0 %v4166
        %5763 = vmatpush.bf16.msra.mxu0 %v4162
        %5764 = vmatpush.bf16.msra.mxu0 %v4158
        %5765 = vmatpush.bf16.msra.mxu0 %v4154
        %5766 = vmatpush.bf16.msra.mxu0 %v4150
        %5767 = vmatpush.bf16.msra.mxu0 %v4146
        %5768 = vmatmul.bf16.gmra.mxu0 %v477
        %v5769 = vpop.f32.mrf.mxu0
        %v5770 = vadd.f32 %v5757, %v5769
        %v5771 = vpop.f32.mrf.mxu0
        %5772 = vdwg.mxu0
        %5773 = vmatpush.bf16.msra.mxu0 %v4206
        %5774 = vmatpush.bf16.msra.mxu0 %v4202
        %5775 = vmatpush.bf16.msra.mxu0 %v4198
        %5776 = vmatpush.bf16.msra.mxu0 %v4194
        %5777 = vmatpush.bf16.msra.mxu0 %v4190
        %5778 = vmatpush.bf16.msra.mxu0 %v4186
        %5779 = vmatpush.bf16.msra.mxu0 %v4182
        %5780 = vmatpush.bf16.msra.mxu0 %v4178
        %5781 = vmatmul.bf16.gmra.mxu0 %v478
        %v5782 = vpop.f32.mrf.mxu0
        %v5783 = vadd.f32 %v5770, %v5782
        %v5784 = vpop.f32.mrf.mxu0
        %5785 = vdwg.mxu0
        %5786 = vmatpush.bf16.msra.mxu0 %v4238
        %5787 = vmatpush.bf16.msra.mxu0 %v4234
        %5788 = vmatpush.bf16.msra.mxu0 %v4230
        %5789 = vmatpush.bf16.msra.mxu0 %v4226
        %5790 = vmatpush.bf16.msra.mxu0 %v4222
        %5791 = vmatpush.bf16.msra.mxu0 %v4218
        %5792 = vmatpush.bf16.msra.mxu0 %v4214
        %5793 = vmatpush.bf16.msra.mxu0 %v4210
        %5794 = vmatmul.bf16.gmra.mxu0 %v479
        %v5795 = vpop.f32.mrf.mxu0
        %v5796 = vadd.f32 %v5783, %v5795
        %v5797 = vpop.f32.mrf.mxu0
        %5798 = vdwg.mxu0
        %5799 = vmatpush.bf16.msra.mxu0 %v4270
        %5800 = vmatpush.bf16.msra.mxu0 %v4266
        %5801 = vmatpush.bf16.msra.mxu0 %v4262
        %5802 = vmatpush.bf16.msra.mxu0 %v4258
        %5803 = vmatpush.bf16.msra.mxu0 %v4254
        %5804 = vmatpush.bf16.msra.mxu0 %v4250
        %5805 = vmatpush.bf16.msra.mxu0 %v4246
        %5806 = vmatpush.bf16.msra.mxu0 %v4242
        %5807 = vmatmul.bf16.gmra.mxu0 %v480
        %v5808 = vpop.f32.mrf.mxu0
        %v5809 = vadd.f32 %v5796, %v5808
        %v5810 = vpop.f32.mrf.mxu0
        %5811 = vdwg.mxu0
        %5812 = vmatpush.bf16.msra.mxu0 %v4302
        %5813 = vmatpush.bf16.msra.mxu0 %v4298
        %5814 = vmatpush.bf16.msra.mxu0 %v4294
        %5815 = vmatpush.bf16.msra.mxu0 %v4290
        %5816 = vmatpush.bf16.msra.mxu0 %v4286
        %5817 = vmatpush.bf16.msra.mxu0 %v4282
        %5818 = vmatpush.bf16.msra.mxu0 %v4278
        %5819 = vmatpush.bf16.msra.mxu0 %v4274
        %5820 = vmatmul.bf16.gmra.mxu0 %v481
        %v5821 = vpop.f32.mrf.mxu0
        %v5822 = vadd.f32 %v5809, %v5821
        %v5823 = vpop.f32.mrf.mxu0
        %5824 = vdwg.mxu0
        %5825 = vmatpush.bf16.msra.mxu0 %v4334
        %5826 = vmatpush.bf16.msra.mxu0 %v4330
        %5827 = vmatpush.bf16.msra.mxu0 %v4326
        %5828 = vmatpush.bf16.msra.mxu0 %v4322
        %5829 = vmatpush.bf16.msra.mxu0 %v4318
        %5830 = vmatpush.bf16.msra.mxu0 %v4314
        %5831 = vmatpush.bf16.msra.mxu0 %v4310
        %5832 = vmatpush.bf16.msra.mxu0 %v4306
        %5833 = vmatmul.bf16.gmra.mxu0 %v482
        %v5834 = vpop.f32.mrf.mxu0
        %v5835 = vadd.f32 %v5822, %v5834
        %v5836 = vpop.f32.mrf.mxu0
        %5837 = vdwg.mxu0
        %5838 = vmatpush.bf16.msra.mxu0 %v4366
        %5839 = vmatpush.bf16.msra.mxu0 %v4362
        %5840 = vmatpush.bf16.msra.mxu0 %v4358
        %5841 = vmatpush.bf16.msra.mxu0 %v4354
        %5842 = vmatpush.bf16.msra.mxu0 %v4350
        %5843 = vmatpush.bf16.msra.mxu0 %v4346
        %5844 = vmatpush.bf16.msra.mxu0 %v4342
        %5845 = vmatpush.bf16.msra.mxu0 %v4338
        %5846 = vmatmul.bf16.gmra.mxu0 %v483
        %v5847 = vpop.f32.mrf.mxu0
        %v5848 = vadd.f32 %v5835, %v5847
        %v5849 = vpop.f32.mrf.mxu0
        %5850 = vdwg.mxu0
        %5851 = vmatpush.bf16.msra.mxu0 %v4398
        %5852 = vmatpush.bf16.msra.mxu0 %v4394
        %5853 = vmatpush.bf16.msra.mxu0 %v4390
        %5854 = vmatpush.bf16.msra.mxu0 %v4386
        %5855 = vmatpush.bf16.msra.mxu0 %v4382
        %5856 = vmatpush.bf16.msra.mxu0 %v4378
        %5857 = vmatpush.bf16.msra.mxu0 %v4374
        %5858 = vmatpush.bf16.msra.mxu0 %v4370
        %5859 = vmatmul.bf16.gmra.mxu0 %v484
        %v5860 = vpop.f32.mrf.mxu0
        %v5861 = vadd.f32 %v5848, %v5860
        %v5862 = vpop.f32.mrf.mxu0
        %5863 = vdwg.mxu0
        %5864 = vmatpush.bf16.msra.mxu0 %v4430
        %5865 = vmatpush.bf16.msra.mxu0 %v4426
        %5866 = vmatpush.bf16.msra.mxu0 %v4422
        %5867 = vmatpush.bf16.msra.mxu0 %v4418
        %5868 = vmatpush.bf16.msra.mxu0 %v4414
        %5869 = vmatpush.bf16.msra.mxu0 %v4410
        %5870 = vmatpush.bf16.msra.mxu0 %v4406
        %5871 = vmatpush.bf16.msra.mxu0 %v4402
        %5872 = vmatmul.bf16.gmra.mxu0 %v485
        %v5873 = vpop.f32.mrf.mxu0
        %v5874 = vadd.f32 %v5861, %v5873
        %v5875 = vpop.f32.mrf.mxu0
        %5876 = vdwg.mxu0
        %5877 = vmatpush.bf16.msra.mxu0 %v4462
        %5878 = vmatpush.bf16.msra.mxu0 %v4458
        %5879 = vmatpush.bf16.msra.mxu0 %v4454
        %5880 = vmatpush.bf16.msra.mxu0 %v4450
        %5881 = vmatpush.bf16.msra.mxu0 %v4446
        %5882 = vmatpush.bf16.msra.mxu0 %v4442
        %5883 = vmatpush.bf16.msra.mxu0 %v4438
        %5884 = vmatpush.bf16.msra.mxu0 %v4434
        %5885 = vmatmul.bf16.gmra.mxu0 %v486
        %v5886 = vpop.f32.mrf.mxu0
        %v5887 = vadd.f32 %v5874, %v5886
        %v5888 = vpop.f32.mrf.mxu0
        %5889 = vdwg.mxu0
        %5890 = vmatpush.bf16.msra.mxu0 %v4494
        %5891 = vmatpush.bf16.msra.mxu0 %v4490
        %5892 = vmatpush.bf16.msra.mxu0 %v4486
        %5893 = vmatpush.bf16.msra.mxu0 %v4482
        %5894 = vmatpush.bf16.msra.mxu0 %v4478
        %5895 = vmatpush.bf16.msra.mxu0 %v4474
        %5896 = vmatpush.bf16.msra.mxu0 %v4470
        %5897 = vmatpush.bf16.msra.mxu0 %v4466
        %5898 = vmatmul.bf16.gmra.mxu0 %v487
        %v5899 = vpop.f32.mrf.mxu0
        %v5900 = vadd.f32 %v5887, %v5899
        %v5901 = vpop.f32.mrf.mxu0
        %5902 = vdwg.mxu0
        %5903 = vmatpush.bf16.msra.mxu0 %v4526
        %5904 = vmatpush.bf16.msra.mxu0 %v4522
        %5905 = vmatpush.bf16.msra.mxu0 %v4518
        %5906 = vmatpush.bf16.msra.mxu0 %v4514
        %5907 = vmatpush.bf16.msra.mxu0 %v4510
        %5908 = vmatpush.bf16.msra.mxu0 %v4506
        %5909 = vmatpush.bf16.msra.mxu0 %v4502
        %5910 = vmatpush.bf16.msra.mxu0 %v4498
        %5911 = vmatmul.bf16.gmra.mxu0 %v488
        %v5912 = vpop.f32.mrf.mxu0
        %v5913 = vadd.f32 %v5900, %v5912
        %v5914 = vpop.f32.mrf.mxu0
        %5915 = vdwg.mxu0
        %5916 = vmatpush.bf16.msra.mxu0 %v4558
        %5917 = vmatpush.bf16.msra.mxu0 %v4554
        %5918 = vmatpush.bf16.msra.mxu0 %v4550
        %5919 = vmatpush.bf16.msra.mxu0 %v4546
        %5920 = vmatpush.bf16.msra.mxu0 %v4542
        %5921 = vmatpush.bf16.msra.mxu0 %v4538
        %5922 = vmatpush.bf16.msra.mxu0 %v4534
        %5923 = vmatpush.bf16.msra.mxu0 %v4530
        %5924 = vmatmul.bf16.gmra.mxu0 %v489
        %v5925 = vpop.f32.mrf.mxu0
        %v5926 = vadd.f32 %v5913, %v5925
        %v5927 = vpop.f32.mrf.mxu0
        %5928 = vdwg.mxu0
        %5929 = vmatpush.bf16.msra.mxu0 %v4590
        %5930 = vmatpush.bf16.msra.mxu0 %v4586
        %5931 = vmatpush.bf16.msra.mxu0 %v4582
        %5932 = vmatpush.bf16.msra.mxu0 %v4578
        %5933 = vmatpush.bf16.msra.mxu0 %v4574
        %5934 = vmatpush.bf16.msra.mxu0 %v4570
        %5935 = vmatpush.bf16.msra.mxu0 %v4566
        %5936 = vmatpush.bf16.msra.mxu0 %v4562
        %5937 = vmatmul.bf16.gmra.mxu0 %v490
        %v5938 = vpop.f32.mrf.mxu0
        %v5939 = vadd.f32 %v5926, %v5938
        %v5940 = vpop.f32.mrf.mxu0
        %5941 = vdwg.mxu0
        %5942 = vmatpush.bf16.msra.mxu0 %v4622
        %5943 = vmatpush.bf16.msra.mxu0 %v4618
        %5944 = vmatpush.bf16.msra.mxu0 %v4614
        %5945 = vmatpush.bf16.msra.mxu0 %v4610
        %5946 = vmatpush.bf16.msra.mxu0 %v4606
        %5947 = vmatpush.bf16.msra.mxu0 %v4602
        %5948 = vmatpush.bf16.msra.mxu0 %v4598
        %5949 = vmatpush.bf16.msra.mxu0 %v4594
        %5950 = vmatmul.bf16.gmra.mxu0 %v491
        %v5951 = vpop.f32.mrf.mxu0
        %v5952 = vadd.f32 %v5939, %v5951
        %v5953 = vpop.f32.mrf.mxu0
        %5954 = vdwg.mxu0
        %5955 = vmatpush.bf16.msra.mxu0 %v4654
        %5956 = vmatpush.bf16.msra.mxu0 %v4650
        %5957 = vmatpush.bf16.msra.mxu0 %v4646
        %5958 = vmatpush.bf16.msra.mxu0 %v4642
        %5959 = vmatpush.bf16.msra.mxu0 %v4638
        %5960 = vmatpush.bf16.msra.mxu0 %v4634
        %5961 = vmatpush.bf16.msra.mxu0 %v4630
        %5962 = vmatpush.bf16.msra.mxu0 %v4626
        %5963 = vmatmul.bf16.gmra.mxu0 %v492
        %v5964 = vpop.f32.mrf.mxu0
        %v5965 = vadd.f32 %v5952, %v5964
        %v5966 = vpop.f32.mrf.mxu0
        %5967 = vdwg.mxu0
        %5968 = vmatpush.bf16.msra.mxu0 %v4686
        %5969 = vmatpush.bf16.msra.mxu0 %v4682
        %5970 = vmatpush.bf16.msra.mxu0 %v4678
        %5971 = vmatpush.bf16.msra.mxu0 %v4674
        %5972 = vmatpush.bf16.msra.mxu0 %v4670
        %5973 = vmatpush.bf16.msra.mxu0 %v4666
        %5974 = vmatpush.bf16.msra.mxu0 %v4662
        %5975 = vmatpush.bf16.msra.mxu0 %v4658
        %5976 = vmatmul.bf16.gmra.mxu0 %v493
        %v5977 = vpop.f32.mrf.mxu0
        %v5978 = vadd.f32 %v5965, %v5977
        %v5979 = vpop.f32.mrf.mxu0
        %5980 = vdwg.mxu0
        %5981 = vmatpush.bf16.msra.mxu0 %v4718
        %5982 = vmatpush.bf16.msra.mxu0 %v4714
        %5983 = vmatpush.bf16.msra.mxu0 %v4710
        %5984 = vmatpush.bf16.msra.mxu0 %v4706
        %5985 = vmatpush.bf16.msra.mxu0 %v4702
        %5986 = vmatpush.bf16.msra.mxu0 %v4698
        %5987 = vmatpush.bf16.msra.mxu0 %v4694
        %5988 = vmatpush.bf16.msra.mxu0 %v4690
        %5989 = vmatmul.bf16.gmra.mxu0 %v494
        %v5990 = vpop.f32.mrf.mxu0
        %v5991 = vadd.f32 %v5978, %v5990
        %v5992 = vpop.f32.mrf.mxu0
        %5993 = vdwg.mxu0
        %5994 = vmatpush.bf16.msra.mxu0 %v4750
        %5995 = vmatpush.bf16.msra.mxu0 %v4746
        %5996 = vmatpush.bf16.msra.mxu0 %v4742
        %5997 = vmatpush.bf16.msra.mxu0 %v4738
        %5998 = vmatpush.bf16.msra.mxu0 %v4734
        %5999 = vmatpush.bf16.msra.mxu0 %v4730
        %6000 = vmatpush.bf16.msra.mxu0 %v4726
        %6001 = vmatpush.bf16.msra.mxu0 %v4722
        %6002 = vmatmul.bf16.gmra.mxu0 %v495
        %v6003 = vpop.f32.mrf.mxu0
        %v6004 = vadd.f32 %v5991, %v6003
        %v6005 = vpop.f32.mrf.mxu0
        %6006 = vdwg.mxu0
        %6007 = vmatpush.bf16.msra.mxu0 %v4782
        %6008 = vmatpush.bf16.msra.mxu0 %v4778
        %6009 = vmatpush.bf16.msra.mxu0 %v4774
        %6010 = vmatpush.bf16.msra.mxu0 %v4770
        %6011 = vmatpush.bf16.msra.mxu0 %v4766
        %6012 = vmatpush.bf16.msra.mxu0 %v4762
        %6013 = vmatpush.bf16.msra.mxu0 %v4758
        %6014 = vmatpush.bf16.msra.mxu0 %v4754
        %6015 = vmatmul.bf16.gmra.mxu0 %v496
        %v6016 = vpop.f32.mrf.mxu0
        %v6017 = vadd.f32 %v6004, %v6016
        %v6018 = vpop.f32.mrf.mxu0
        %6019 = vdwg.mxu0
        %6020 = vmatpush.bf16.msra.mxu0 %v4814
        %6021 = vmatpush.bf16.msra.mxu0 %v4810
        %6022 = vmatpush.bf16.msra.mxu0 %v4806
        %6023 = vmatpush.bf16.msra.mxu0 %v4802
        %6024 = vmatpush.bf16.msra.mxu0 %v4798
        %6025 = vmatpush.bf16.msra.mxu0 %v4794
        %6026 = vmatpush.bf16.msra.mxu0 %v4790
        %6027 = vmatpush.bf16.msra.mxu0 %v4786
        %6028 = vmatmul.bf16.gmra.mxu0 %v497
        %v6029 = vpop.f32.mrf.mxu0
        %v6030 = vadd.f32 %v6017, %v6029
        %v6031 = vpop.f32.mrf.mxu0
        %6032 = vdwg.mxu0
        %6033 = vmatpush.bf16.msra.mxu0 %v3983
        %6034 = vmatpush.bf16.msra.mxu0 %v3979
        %6035 = vmatpush.bf16.msra.mxu0 %v3975
        %6036 = vmatpush.bf16.msra.mxu0 %v3971
        %6037 = vmatpush.bf16.msra.mxu0 %v3967
        %6038 = vmatpush.bf16.msra.mxu0 %v3963
        %6039 = vmatpush.bf16.msra.mxu0 %v3959
        %6040 = vmatpush.bf16.msra.mxu0 %v3955
        %6041 = vmatmul.bf16.gmra.mxu0 %v471
        %v6042 = vpop.f32.mrf.mxu0
        %v6043 = vadd.f32 0.0, %v6042
        %v6044 = vpop.f32.mrf.mxu0
        %6045 = vdwg.mxu0
        %6046 = vmatpush.bf16.msra.mxu0 %v4015
        %6047 = vmatpush.bf16.msra.mxu0 %v4011
        %6048 = vmatpush.bf16.msra.mxu0 %v4007
        %6049 = vmatpush.bf16.msra.mxu0 %v4003
        %6050 = vmatpush.bf16.msra.mxu0 %v3999
        %6051 = vmatpush.bf16.msra.mxu0 %v3995
        %6052 = vmatpush.bf16.msra.mxu0 %v3991
        %6053 = vmatpush.bf16.msra.mxu0 %v3987
        %6054 = vmatmul.bf16.gmra.mxu0 %v472
        %v6055 = vpop.f32.mrf.mxu0
        %v6056 = vadd.f32 %v6043, %v6055
        %v6057 = vpop.f32.mrf.mxu0
        %6058 = vdwg.mxu0
        %6059 = vmatpush.bf16.msra.mxu0 %v4047
        %6060 = vmatpush.bf16.msra.mxu0 %v4043
        %6061 = vmatpush.bf16.msra.mxu0 %v4039
        %6062 = vmatpush.bf16.msra.mxu0 %v4035
        %6063 = vmatpush.bf16.msra.mxu0 %v4031
        %6064 = vmatpush.bf16.msra.mxu0 %v4027
        %6065 = vmatpush.bf16.msra.mxu0 %v4023
        %6066 = vmatpush.bf16.msra.mxu0 %v4019
        %6067 = vmatmul.bf16.gmra.mxu0 %v473
        %v6068 = vpop.f32.mrf.mxu0
        %v6069 = vadd.f32 %v6056, %v6068
        %v6070 = vpop.f32.mrf.mxu0
        %6071 = vdwg.mxu0
        %6072 = vmatpush.bf16.msra.mxu0 %v4079
        %6073 = vmatpush.bf16.msra.mxu0 %v4075
        %6074 = vmatpush.bf16.msra.mxu0 %v4071
        %6075 = vmatpush.bf16.msra.mxu0 %v4067
        %6076 = vmatpush.bf16.msra.mxu0 %v4063
        %6077 = vmatpush.bf16.msra.mxu0 %v4059
        %6078 = vmatpush.bf16.msra.mxu0 %v4055
        %6079 = vmatpush.bf16.msra.mxu0 %v4051
        %6080 = vmatmul.bf16.gmra.mxu0 %v474
        %v6081 = vpop.f32.mrf.mxu0
        %v6082 = vadd.f32 %v6069, %v6081
        %v6083 = vpop.f32.mrf.mxu0
        %6084 = vdwg.mxu0
        %6085 = vmatpush.bf16.msra.mxu0 %v4111
        %6086 = vmatpush.bf16.msra.mxu0 %v4107
        %6087 = vmatpush.bf16.msra.mxu0 %v4103
        %6088 = vmatpush.bf16.msra.mxu0 %v4099
        %6089 = vmatpush.bf16.msra.mxu0 %v4095
        %6090 = vmatpush.bf16.msra.mxu0 %v4091
        %6091 = vmatpush.bf16.msra.mxu0 %v4087
        %6092 = vmatpush.bf16.msra.mxu0 %v4083
        %6093 = vmatmul.bf16.gmra.mxu0 %v475
        %v6094 = vpop.f32.mrf.mxu0
        %v6095 = vadd.f32 %v6082, %v6094
        %v6096 = vpop.f32.mrf.mxu0
        %6097 = vdwg.mxu0
        %6098 = vmatpush.bf16.msra.mxu0 %v4143
        %6099 = vmatpush.bf16.msra.mxu0 %v4139
        %6100 = vmatpush.bf16.msra.mxu0 %v4135
        %6101 = vmatpush.bf16.msra.mxu0 %v4131
        %6102 = vmatpush.bf16.msra.mxu0 %v4127
        %6103 = vmatpush.bf16.msra.mxu0 %v4123
        %6104 = vmatpush.bf16.msra.mxu0 %v4119
        %6105 = vmatpush.bf16.msra.mxu0 %v4115
        %6106 = vmatmul.bf16.gmra.mxu0 %v476
        %v6107 = vpop.f32.mrf.mxu0
        %v6108 = vadd.f32 %v6095, %v6107
        %v6109 = vpop.f32.mrf.mxu0
        %6110 = vdwg.mxu0
        %6111 = vmatpush.bf16.msra.mxu0 %v4175
        %6112 = vmatpush.bf16.msra.mxu0 %v4171
        %6113 = vmatpush.bf16.msra.mxu0 %v4167
        %6114 = vmatpush.bf16.msra.mxu0 %v4163
        %6115 = vmatpush.bf16.msra.mxu0 %v4159
        %6116 = vmatpush.bf16.msra.mxu0 %v4155
        %6117 = vmatpush.bf16.msra.mxu0 %v4151
        %6118 = vmatpush.bf16.msra.mxu0 %v4147
        %6119 = vmatmul.bf16.gmra.mxu0 %v477
        %v6120 = vpop.f32.mrf.mxu0
        %v6121 = vadd.f32 %v6108, %v6120
        %v6122 = vpop.f32.mrf.mxu0
        %6123 = vdwg.mxu0
        %6124 = vmatpush.bf16.msra.mxu0 %v4207
        %6125 = vmatpush.bf16.msra.mxu0 %v4203
        %6126 = vmatpush.bf16.msra.mxu0 %v4199
        %6127 = vmatpush.bf16.msra.mxu0 %v4195
        %6128 = vmatpush.bf16.msra.mxu0 %v4191
        %6129 = vmatpush.bf16.msra.mxu0 %v4187
        %6130 = vmatpush.bf16.msra.mxu0 %v4183
        %6131 = vmatpush.bf16.msra.mxu0 %v4179
        %6132 = vmatmul.bf16.gmra.mxu0 %v478
        %v6133 = vpop.f32.mrf.mxu0
        %v6134 = vadd.f32 %v6121, %v6133
        %v6135 = vpop.f32.mrf.mxu0
        %6136 = vdwg.mxu0
        %6137 = vmatpush.bf16.msra.mxu0 %v4239
        %6138 = vmatpush.bf16.msra.mxu0 %v4235
        %6139 = vmatpush.bf16.msra.mxu0 %v4231
        %6140 = vmatpush.bf16.msra.mxu0 %v4227
        %6141 = vmatpush.bf16.msra.mxu0 %v4223
        %6142 = vmatpush.bf16.msra.mxu0 %v4219
        %6143 = vmatpush.bf16.msra.mxu0 %v4215
        %6144 = vmatpush.bf16.msra.mxu0 %v4211
        %6145 = vmatmul.bf16.gmra.mxu0 %v479
        %v6146 = vpop.f32.mrf.mxu0
        %v6147 = vadd.f32 %v6134, %v6146
        %v6148 = vpop.f32.mrf.mxu0
        %6149 = vdwg.mxu0
        %6150 = vmatpush.bf16.msra.mxu0 %v4271
        %6151 = vmatpush.bf16.msra.mxu0 %v4267
        %6152 = vmatpush.bf16.msra.mxu0 %v4263
        %6153 = vmatpush.bf16.msra.mxu0 %v4259
        %6154 = vmatpush.bf16.msra.mxu0 %v4255
        %6155 = vmatpush.bf16.msra.mxu0 %v4251
        %6156 = vmatpush.bf16.msra.mxu0 %v4247
        %6157 = vmatpush.bf16.msra.mxu0 %v4243
        %6158 = vmatmul.bf16.gmra.mxu0 %v480
        %v6159 = vpop.f32.mrf.mxu0
        %v6160 = vadd.f32 %v6147, %v6159
        %v6161 = vpop.f32.mrf.mxu0
        %6162 = vdwg.mxu0
        %6163 = vmatpush.bf16.msra.mxu0 %v4303
        %6164 = vmatpush.bf16.msra.mxu0 %v4299
        %6165 = vmatpush.bf16.msra.mxu0 %v4295
        %6166 = vmatpush.bf16.msra.mxu0 %v4291
        %6167 = vmatpush.bf16.msra.mxu0 %v4287
        %6168 = vmatpush.bf16.msra.mxu0 %v4283
        %6169 = vmatpush.bf16.msra.mxu0 %v4279
        %6170 = vmatpush.bf16.msra.mxu0 %v4275
        %6171 = vmatmul.bf16.gmra.mxu0 %v481
        %v6172 = vpop.f32.mrf.mxu0
        %v6173 = vadd.f32 %v6160, %v6172
        %v6174 = vpop.f32.mrf.mxu0
        %6175 = vdwg.mxu0
        %6176 = vmatpush.bf16.msra.mxu0 %v4335
        %6177 = vmatpush.bf16.msra.mxu0 %v4331
        %6178 = vmatpush.bf16.msra.mxu0 %v4327
        %6179 = vmatpush.bf16.msra.mxu0 %v4323
        %6180 = vmatpush.bf16.msra.mxu0 %v4319
        %6181 = vmatpush.bf16.msra.mxu0 %v4315
        %6182 = vmatpush.bf16.msra.mxu0 %v4311
        %6183 = vmatpush.bf16.msra.mxu0 %v4307
        %6184 = vmatmul.bf16.gmra.mxu0 %v482
        %v6185 = vpop.f32.mrf.mxu0
        %v6186 = vadd.f32 %v6173, %v6185
        %v6187 = vpop.f32.mrf.mxu0
        %6188 = vdwg.mxu0
        %6189 = vmatpush.bf16.msra.mxu0 %v4367
        %6190 = vmatpush.bf16.msra.mxu0 %v4363
        %6191 = vmatpush.bf16.msra.mxu0 %v4359
        %6192 = vmatpush.bf16.msra.mxu0 %v4355
        %6193 = vmatpush.bf16.msra.mxu0 %v4351
        %6194 = vmatpush.bf16.msra.mxu0 %v4347
        %6195 = vmatpush.bf16.msra.mxu0 %v4343
        %6196 = vmatpush.bf16.msra.mxu0 %v4339
        %6197 = vmatmul.bf16.gmra.mxu0 %v483
        %v6198 = vpop.f32.mrf.mxu0
        %v6199 = vadd.f32 %v6186, %v6198
        %v6200 = vpop.f32.mrf.mxu0
        %6201 = vdwg.mxu0
        %6202 = vmatpush.bf16.msra.mxu0 %v4399
        %6203 = vmatpush.bf16.msra.mxu0 %v4395
        %6204 = vmatpush.bf16.msra.mxu0 %v4391
        %6205 = vmatpush.bf16.msra.mxu0 %v4387
        %6206 = vmatpush.bf16.msra.mxu0 %v4383
        %6207 = vmatpush.bf16.msra.mxu0 %v4379
        %6208 = vmatpush.bf16.msra.mxu0 %v4375
        %6209 = vmatpush.bf16.msra.mxu0 %v4371
        %6210 = vmatmul.bf16.gmra.mxu0 %v484
        %v6211 = vpop.f32.mrf.mxu0
        %v6212 = vadd.f32 %v6199, %v6211
        %v6213 = vpop.f32.mrf.mxu0
        %6214 = vdwg.mxu0
        %6215 = vmatpush.bf16.msra.mxu0 %v4431
        %6216 = vmatpush.bf16.msra.mxu0 %v4427
        %6217 = vmatpush.bf16.msra.mxu0 %v4423
        %6218 = vmatpush.bf16.msra.mxu0 %v4419
        %6219 = vmatpush.bf16.msra.mxu0 %v4415
        %6220 = vmatpush.bf16.msra.mxu0 %v4411
        %6221 = vmatpush.bf16.msra.mxu0 %v4407
        %6222 = vmatpush.bf16.msra.mxu0 %v4403
        %6223 = vmatmul.bf16.gmra.mxu0 %v485
        %v6224 = vpop.f32.mrf.mxu0
        %v6225 = vadd.f32 %v6212, %v6224
        %v6226 = vpop.f32.mrf.mxu0
        %6227 = vdwg.mxu0
        %6228 = vmatpush.bf16.msra.mxu0 %v4463
        %6229 = vmatpush.bf16.msra.mxu0 %v4459
        %6230 = vmatpush.bf16.msra.mxu0 %v4455
        %6231 = vmatpush.bf16.msra.mxu0 %v4451
        %6232 = vmatpush.bf16.msra.mxu0 %v4447
        %6233 = vmatpush.bf16.msra.mxu0 %v4443
        %6234 = vmatpush.bf16.msra.mxu0 %v4439
        %6235 = vmatpush.bf16.msra.mxu0 %v4435
        %6236 = vmatmul.bf16.gmra.mxu0 %v486
        %v6237 = vpop.f32.mrf.mxu0
        %v6238 = vadd.f32 %v6225, %v6237
        %v6239 = vpop.f32.mrf.mxu0
        %6240 = vdwg.mxu0
        %6241 = vmatpush.bf16.msra.mxu0 %v4495
        %6242 = vmatpush.bf16.msra.mxu0 %v4491
        %6243 = vmatpush.bf16.msra.mxu0 %v4487
        %6244 = vmatpush.bf16.msra.mxu0 %v4483
        %6245 = vmatpush.bf16.msra.mxu0 %v4479
        %6246 = vmatpush.bf16.msra.mxu0 %v4475
        %6247 = vmatpush.bf16.msra.mxu0 %v4471
        %6248 = vmatpush.bf16.msra.mxu0 %v4467
        %6249 = vmatmul.bf16.gmra.mxu0 %v487
        %v6250 = vpop.f32.mrf.mxu0
        %v6251 = vadd.f32 %v6238, %v6250
        %v6252 = vpop.f32.mrf.mxu0
        %6253 = vdwg.mxu0
        %6254 = vmatpush.bf16.msra.mxu0 %v4527
        %6255 = vmatpush.bf16.msra.mxu0 %v4523
        %6256 = vmatpush.bf16.msra.mxu0 %v4519
        %6257 = vmatpush.bf16.msra.mxu0 %v4515
        %6258 = vmatpush.bf16.msra.mxu0 %v4511
        %6259 = vmatpush.bf16.msra.mxu0 %v4507
        %6260 = vmatpush.bf16.msra.mxu0 %v4503
        %6261 = vmatpush.bf16.msra.mxu0 %v4499
        %6262 = vmatmul.bf16.gmra.mxu0 %v488
        %v6263 = vpop.f32.mrf.mxu0
        %v6264 = vadd.f32 %v6251, %v6263
        %v6265 = vpop.f32.mrf.mxu0
        %6266 = vdwg.mxu0
        %6267 = vmatpush.bf16.msra.mxu0 %v4559
        %6268 = vmatpush.bf16.msra.mxu0 %v4555
        %6269 = vmatpush.bf16.msra.mxu0 %v4551
        %6270 = vmatpush.bf16.msra.mxu0 %v4547
        %6271 = vmatpush.bf16.msra.mxu0 %v4543
        %6272 = vmatpush.bf16.msra.mxu0 %v4539
        %6273 = vmatpush.bf16.msra.mxu0 %v4535
        %6274 = vmatpush.bf16.msra.mxu0 %v4531
        %6275 = vmatmul.bf16.gmra.mxu0 %v489
        %v6276 = vpop.f32.mrf.mxu0
        %v6277 = vadd.f32 %v6264, %v6276
        %v6278 = vpop.f32.mrf.mxu0
        %6279 = vdwg.mxu0
        %6280 = vmatpush.bf16.msra.mxu0 %v4591
        %6281 = vmatpush.bf16.msra.mxu0 %v4587
        %6282 = vmatpush.bf16.msra.mxu0 %v4583
        %6283 = vmatpush.bf16.msra.mxu0 %v4579
        %6284 = vmatpush.bf16.msra.mxu0 %v4575
        %6285 = vmatpush.bf16.msra.mxu0 %v4571
        %6286 = vmatpush.bf16.msra.mxu0 %v4567
        %6287 = vmatpush.bf16.msra.mxu0 %v4563
        %6288 = vmatmul.bf16.gmra.mxu0 %v490
        %v6289 = vpop.f32.mrf.mxu0
        %v6290 = vadd.f32 %v6277, %v6289
        %v6291 = vpop.f32.mrf.mxu0
        %6292 = vdwg.mxu0
        %6293 = vmatpush.bf16.msra.mxu0 %v4623
        %6294 = vmatpush.bf16.msra.mxu0 %v4619
        %6295 = vmatpush.bf16.msra.mxu0 %v4615
        %6296 = vmatpush.bf16.msra.mxu0 %v4611
        %6297 = vmatpush.bf16.msra.mxu0 %v4607
        %6298 = vmatpush.bf16.msra.mxu0 %v4603
        %6299 = vmatpush.bf16.msra.mxu0 %v4599
        %6300 = vmatpush.bf16.msra.mxu0 %v4595
        %6301 = vmatmul.bf16.gmra.mxu0 %v491
        %v6302 = vpop.f32.mrf.mxu0
        %v6303 = vadd.f32 %v6290, %v6302
        %v6304 = vpop.f32.mrf.mxu0
        %6305 = vdwg.mxu0
        %6306 = vmatpush.bf16.msra.mxu0 %v4655
        %6307 = vmatpush.bf16.msra.mxu0 %v4651
        %6308 = vmatpush.bf16.msra.mxu0 %v4647
        %6309 = vmatpush.bf16.msra.mxu0 %v4643
        %6310 = vmatpush.bf16.msra.mxu0 %v4639
        %6311 = vmatpush.bf16.msra.mxu0 %v4635
        %6312 = vmatpush.bf16.msra.mxu0 %v4631
        %6313 = vmatpush.bf16.msra.mxu0 %v4627
        %6314 = vmatmul.bf16.gmra.mxu0 %v492
        %v6315 = vpop.f32.mrf.mxu0
        %v6316 = vadd.f32 %v6303, %v6315
        %v6317 = vpop.f32.mrf.mxu0
        %6318 = vdwg.mxu0
        %6319 = vmatpush.bf16.msra.mxu0 %v4687
        %6320 = vmatpush.bf16.msra.mxu0 %v4683
        %6321 = vmatpush.bf16.msra.mxu0 %v4679
        %6322 = vmatpush.bf16.msra.mxu0 %v4675
        %6323 = vmatpush.bf16.msra.mxu0 %v4671
        %6324 = vmatpush.bf16.msra.mxu0 %v4667
        %6325 = vmatpush.bf16.msra.mxu0 %v4663
        %6326 = vmatpush.bf16.msra.mxu0 %v4659
        %6327 = vmatmul.bf16.gmra.mxu0 %v493
        %v6328 = vpop.f32.mrf.mxu0
        %v6329 = vadd.f32 %v6316, %v6328
        %v6330 = vpop.f32.mrf.mxu0
        %6331 = vdwg.mxu0
        %6332 = vmatpush.bf16.msra.mxu0 %v4719
        %6333 = vmatpush.bf16.msra.mxu0 %v4715
        %6334 = vmatpush.bf16.msra.mxu0 %v4711
        %6335 = vmatpush.bf16.msra.mxu0 %v4707
        %6336 = vmatpush.bf16.msra.mxu0 %v4703
        %6337 = vmatpush.bf16.msra.mxu0 %v4699
        %6338 = vmatpush.bf16.msra.mxu0 %v4695
        %6339 = vmatpush.bf16.msra.mxu0 %v4691
        %6340 = vmatmul.bf16.gmra.mxu0 %v494
        %v6341 = vpop.f32.mrf.mxu0
        %v6342 = vadd.f32 %v6329, %v6341
        %v6343 = vpop.f32.mrf.mxu0
        %6344 = vdwg.mxu0
        %6345 = vmatpush.bf16.msra.mxu0 %v4751
        %6346 = vmatpush.bf16.msra.mxu0 %v4747
        %6347 = vmatpush.bf16.msra.mxu0 %v4743
        %6348 = vmatpush.bf16.msra.mxu0 %v4739
        %6349 = vmatpush.bf16.msra.mxu0 %v4735
        %6350 = vmatpush.bf16.msra.mxu0 %v4731
        %6351 = vmatpush.bf16.msra.mxu0 %v4727
        %6352 = vmatpush.bf16.msra.mxu0 %v4723
        %6353 = vmatmul.bf16.gmra.mxu0 %v495
        %v6354 = vpop.f32.mrf.mxu0
        %v6355 = vadd.f32 %v6342, %v6354
        %v6356 = vpop.f32.mrf.mxu0
        %6357 = vdwg.mxu0
        %6358 = vmatpush.bf16.msra.mxu0 %v4783
        %6359 = vmatpush.bf16.msra.mxu0 %v4779
        %6360 = vmatpush.bf16.msra.mxu0 %v4775
        %6361 = vmatpush.bf16.msra.mxu0 %v4771
        %6362 = vmatpush.bf16.msra.mxu0 %v4767
        %6363 = vmatpush.bf16.msra.mxu0 %v4763
        %6364 = vmatpush.bf16.msra.mxu0 %v4759
        %6365 = vmatpush.bf16.msra.mxu0 %v4755
        %6366 = vmatmul.bf16.gmra.mxu0 %v496
        %v6367 = vpop.f32.mrf.mxu0
        %v6368 = vadd.f32 %v6355, %v6367
        %v6369 = vpop.f32.mrf.mxu0
        %6370 = vdwg.mxu0
        %6371 = vmatpush.bf16.msra.mxu0 %v4815
        %6372 = vmatpush.bf16.msra.mxu0 %v4811
        %6373 = vmatpush.bf16.msra.mxu0 %v4807
        %6374 = vmatpush.bf16.msra.mxu0 %v4803
        %6375 = vmatpush.bf16.msra.mxu0 %v4799
        %6376 = vmatpush.bf16.msra.mxu0 %v4795
        %6377 = vmatpush.bf16.msra.mxu0 %v4791
        %6378 = vmatpush.bf16.msra.mxu0 %v4787
        %6379 = vmatmul.bf16.gmra.mxu0 %v497
        %v6380 = vpop.f32.mrf.mxu0
        %v6381 = vadd.f32 %v6368, %v6380
        %v6382 = vpop.f32.mrf.mxu0
        %6383 = vdwg.mxu0
        %6384 = vmatpush.bf16.msra.mxu0 %v3984
        %6385 = vmatpush.bf16.msra.mxu0 %v3980
        %6386 = vmatpush.bf16.msra.mxu0 %v3976
        %6387 = vmatpush.bf16.msra.mxu0 %v3972
        %6388 = vmatpush.bf16.msra.mxu0 %v3968
        %6389 = vmatpush.bf16.msra.mxu0 %v3964
        %6390 = vmatpush.bf16.msra.mxu0 %v3960
        %6391 = vmatpush.bf16.msra.mxu0 %v3956
        %6392 = vmatmul.bf16.gmra.mxu0 %v471
        %v6393 = vpop.f32.mrf.mxu0
        %v6394 = vadd.f32 0.0, %v6393
        %v6395 = vpop.f32.mrf.mxu0
        %6396 = vdwg.mxu0
        %6397 = vmatpush.bf16.msra.mxu0 %v4016
        %6398 = vmatpush.bf16.msra.mxu0 %v4012
        %6399 = vmatpush.bf16.msra.mxu0 %v4008
        %6400 = vmatpush.bf16.msra.mxu0 %v4004
        %6401 = vmatpush.bf16.msra.mxu0 %v4000
        %6402 = vmatpush.bf16.msra.mxu0 %v3996
        %6403 = vmatpush.bf16.msra.mxu0 %v3992
        %6404 = vmatpush.bf16.msra.mxu0 %v3988
        %6405 = vmatmul.bf16.gmra.mxu0 %v472
        %v6406 = vpop.f32.mrf.mxu0
        %v6407 = vadd.f32 %v6394, %v6406
        %v6408 = vpop.f32.mrf.mxu0
        %6409 = vdwg.mxu0
        %6410 = vmatpush.bf16.msra.mxu0 %v4048
        %6411 = vmatpush.bf16.msra.mxu0 %v4044
        %6412 = vmatpush.bf16.msra.mxu0 %v4040
        %6413 = vmatpush.bf16.msra.mxu0 %v4036
        %6414 = vmatpush.bf16.msra.mxu0 %v4032
        %6415 = vmatpush.bf16.msra.mxu0 %v4028
        %6416 = vmatpush.bf16.msra.mxu0 %v4024
        %6417 = vmatpush.bf16.msra.mxu0 %v4020
        %6418 = vmatmul.bf16.gmra.mxu0 %v473
        %v6419 = vpop.f32.mrf.mxu0
        %v6420 = vadd.f32 %v6407, %v6419
        %v6421 = vpop.f32.mrf.mxu0
        %6422 = vdwg.mxu0
        %6423 = vmatpush.bf16.msra.mxu0 %v4080
        %6424 = vmatpush.bf16.msra.mxu0 %v4076
        %6425 = vmatpush.bf16.msra.mxu0 %v4072
        %6426 = vmatpush.bf16.msra.mxu0 %v4068
        %6427 = vmatpush.bf16.msra.mxu0 %v4064
        %6428 = vmatpush.bf16.msra.mxu0 %v4060
        %6429 = vmatpush.bf16.msra.mxu0 %v4056
        %6430 = vmatpush.bf16.msra.mxu0 %v4052
        %6431 = vmatmul.bf16.gmra.mxu0 %v474
        %v6432 = vpop.f32.mrf.mxu0
        %v6433 = vadd.f32 %v6420, %v6432
        %v6434 = vpop.f32.mrf.mxu0
        %6435 = vdwg.mxu0
        %6436 = vmatpush.bf16.msra.mxu0 %v4112
        %6437 = vmatpush.bf16.msra.mxu0 %v4108
        %6438 = vmatpush.bf16.msra.mxu0 %v4104
        %6439 = vmatpush.bf16.msra.mxu0 %v4100
        %6440 = vmatpush.bf16.msra.mxu0 %v4096
        %6441 = vmatpush.bf16.msra.mxu0 %v4092
        %6442 = vmatpush.bf16.msra.mxu0 %v4088
        %6443 = vmatpush.bf16.msra.mxu0 %v4084
        %6444 = vmatmul.bf16.gmra.mxu0 %v475
        %v6445 = vpop.f32.mrf.mxu0
        %v6446 = vadd.f32 %v6433, %v6445
        %v6447 = vpop.f32.mrf.mxu0
        %6448 = vdwg.mxu0
        %6449 = vmatpush.bf16.msra.mxu0 %v4144
        %6450 = vmatpush.bf16.msra.mxu0 %v4140
        %6451 = vmatpush.bf16.msra.mxu0 %v4136
        %6452 = vmatpush.bf16.msra.mxu0 %v4132
        %6453 = vmatpush.bf16.msra.mxu0 %v4128
        %6454 = vmatpush.bf16.msra.mxu0 %v4124
        %6455 = vmatpush.bf16.msra.mxu0 %v4120
        %6456 = vmatpush.bf16.msra.mxu0 %v4116
        %6457 = vmatmul.bf16.gmra.mxu0 %v476
        %v6458 = vpop.f32.mrf.mxu0
        %v6459 = vadd.f32 %v6446, %v6458
        %v6460 = vpop.f32.mrf.mxu0
        %6461 = vdwg.mxu0
        %6462 = vmatpush.bf16.msra.mxu0 %v4176
        %6463 = vmatpush.bf16.msra.mxu0 %v4172
        %6464 = vmatpush.bf16.msra.mxu0 %v4168
        %6465 = vmatpush.bf16.msra.mxu0 %v4164
        %6466 = vmatpush.bf16.msra.mxu0 %v4160
        %6467 = vmatpush.bf16.msra.mxu0 %v4156
        %6468 = vmatpush.bf16.msra.mxu0 %v4152
        %6469 = vmatpush.bf16.msra.mxu0 %v4148
        %6470 = vmatmul.bf16.gmra.mxu0 %v477
        %v6471 = vpop.f32.mrf.mxu0
        %v6472 = vadd.f32 %v6459, %v6471
        %v6473 = vpop.f32.mrf.mxu0
        %6474 = vdwg.mxu0
        %6475 = vmatpush.bf16.msra.mxu0 %v4208
        %6476 = vmatpush.bf16.msra.mxu0 %v4204
        %6477 = vmatpush.bf16.msra.mxu0 %v4200
        %6478 = vmatpush.bf16.msra.mxu0 %v4196
        %6479 = vmatpush.bf16.msra.mxu0 %v4192
        %6480 = vmatpush.bf16.msra.mxu0 %v4188
        %6481 = vmatpush.bf16.msra.mxu0 %v4184
        %6482 = vmatpush.bf16.msra.mxu0 %v4180
        %6483 = vmatmul.bf16.gmra.mxu0 %v478
        %v6484 = vpop.f32.mrf.mxu0
        %v6485 = vadd.f32 %v6472, %v6484
        %v6486 = vpop.f32.mrf.mxu0
        %6487 = vdwg.mxu0
        %6488 = vmatpush.bf16.msra.mxu0 %v4240
        %6489 = vmatpush.bf16.msra.mxu0 %v4236
        %6490 = vmatpush.bf16.msra.mxu0 %v4232
        %6491 = vmatpush.bf16.msra.mxu0 %v4228
        %6492 = vmatpush.bf16.msra.mxu0 %v4224
        %6493 = vmatpush.bf16.msra.mxu0 %v4220
        %6494 = vmatpush.bf16.msra.mxu0 %v4216
        %6495 = vmatpush.bf16.msra.mxu0 %v4212
        %6496 = vmatmul.bf16.gmra.mxu0 %v479
        %v6497 = vpop.f32.mrf.mxu0
        %v6498 = vadd.f32 %v6485, %v6497
        %v6499 = vpop.f32.mrf.mxu0
        %6500 = vdwg.mxu0
        %6501 = vmatpush.bf16.msra.mxu0 %v4272
        %6502 = vmatpush.bf16.msra.mxu0 %v4268
        %6503 = vmatpush.bf16.msra.mxu0 %v4264
        %6504 = vmatpush.bf16.msra.mxu0 %v4260
        %6505 = vmatpush.bf16.msra.mxu0 %v4256
        %6506 = vmatpush.bf16.msra.mxu0 %v4252
        %6507 = vmatpush.bf16.msra.mxu0 %v4248
        %6508 = vmatpush.bf16.msra.mxu0 %v4244
        %6509 = vmatmul.bf16.gmra.mxu0 %v480
        %v6510 = vpop.f32.mrf.mxu0
        %v6511 = vadd.f32 %v6498, %v6510
        %v6512 = vpop.f32.mrf.mxu0
        %6513 = vdwg.mxu0
        %6514 = vmatpush.bf16.msra.mxu0 %v4304
        %6515 = vmatpush.bf16.msra.mxu0 %v4300
        %6516 = vmatpush.bf16.msra.mxu0 %v4296
        %6517 = vmatpush.bf16.msra.mxu0 %v4292
        %6518 = vmatpush.bf16.msra.mxu0 %v4288
        %6519 = vmatpush.bf16.msra.mxu0 %v4284
        %6520 = vmatpush.bf16.msra.mxu0 %v4280
        %6521 = vmatpush.bf16.msra.mxu0 %v4276
        %6522 = vmatmul.bf16.gmra.mxu0 %v481
        %v6523 = vpop.f32.mrf.mxu0
        %v6524 = vadd.f32 %v6511, %v6523
        %v6525 = vpop.f32.mrf.mxu0
        %6526 = vdwg.mxu0
        %6527 = vmatpush.bf16.msra.mxu0 %v4336
        %6528 = vmatpush.bf16.msra.mxu0 %v4332
        %6529 = vmatpush.bf16.msra.mxu0 %v4328
        %6530 = vmatpush.bf16.msra.mxu0 %v4324
        %6531 = vmatpush.bf16.msra.mxu0 %v4320
        %6532 = vmatpush.bf16.msra.mxu0 %v4316
        %6533 = vmatpush.bf16.msra.mxu0 %v4312
        %6534 = vmatpush.bf16.msra.mxu0 %v4308
        %6535 = vmatmul.bf16.gmra.mxu0 %v482
        %v6536 = vpop.f32.mrf.mxu0
        %v6537 = vadd.f32 %v6524, %v6536
        %v6538 = vpop.f32.mrf.mxu0
        %6539 = vdwg.mxu0
        %6540 = vmatpush.bf16.msra.mxu0 %v4368
        %6541 = vmatpush.bf16.msra.mxu0 %v4364
        %6542 = vmatpush.bf16.msra.mxu0 %v4360
        %6543 = vmatpush.bf16.msra.mxu0 %v4356
        %6544 = vmatpush.bf16.msra.mxu0 %v4352
        %6545 = vmatpush.bf16.msra.mxu0 %v4348
        %6546 = vmatpush.bf16.msra.mxu0 %v4344
        %6547 = vmatpush.bf16.msra.mxu0 %v4340
        %6548 = vmatmul.bf16.gmra.mxu0 %v483
        %v6549 = vpop.f32.mrf.mxu0
        %v6550 = vadd.f32 %v6537, %v6549
        %v6551 = vpop.f32.mrf.mxu0
        %6552 = vdwg.mxu0
        %6553 = vmatpush.bf16.msra.mxu0 %v4400
        %6554 = vmatpush.bf16.msra.mxu0 %v4396
        %6555 = vmatpush.bf16.msra.mxu0 %v4392
        %6556 = vmatpush.bf16.msra.mxu0 %v4388
        %6557 = vmatpush.bf16.msra.mxu0 %v4384
        %6558 = vmatpush.bf16.msra.mxu0 %v4380
        %6559 = vmatpush.bf16.msra.mxu0 %v4376
        %6560 = vmatpush.bf16.msra.mxu0 %v4372
        %6561 = vmatmul.bf16.gmra.mxu0 %v484
        %v6562 = vpop.f32.mrf.mxu0
        %v6563 = vadd.f32 %v6550, %v6562
        %v6564 = vpop.f32.mrf.mxu0
        %6565 = vdwg.mxu0
        %6566 = vmatpush.bf16.msra.mxu0 %v4432
        %6567 = vmatpush.bf16.msra.mxu0 %v4428
        %6568 = vmatpush.bf16.msra.mxu0 %v4424
        %6569 = vmatpush.bf16.msra.mxu0 %v4420
        %6570 = vmatpush.bf16.msra.mxu0 %v4416
        %6571 = vmatpush.bf16.msra.mxu0 %v4412
        %6572 = vmatpush.bf16.msra.mxu0 %v4408
        %6573 = vmatpush.bf16.msra.mxu0 %v4404
        %6574 = vmatmul.bf16.gmra.mxu0 %v485
        %v6575 = vpop.f32.mrf.mxu0
        %v6576 = vadd.f32 %v6563, %v6575
        %v6577 = vpop.f32.mrf.mxu0
        %6578 = vdwg.mxu0
        %6579 = vmatpush.bf16.msra.mxu0 %v4464
        %6580 = vmatpush.bf16.msra.mxu0 %v4460
        %6581 = vmatpush.bf16.msra.mxu0 %v4456
        %6582 = vmatpush.bf16.msra.mxu0 %v4452
        %6583 = vmatpush.bf16.msra.mxu0 %v4448
        %6584 = vmatpush.bf16.msra.mxu0 %v4444
        %6585 = vmatpush.bf16.msra.mxu0 %v4440
        %6586 = vmatpush.bf16.msra.mxu0 %v4436
        %6587 = vmatmul.bf16.gmra.mxu0 %v486
        %v6588 = vpop.f32.mrf.mxu0
        %v6589 = vadd.f32 %v6576, %v6588
        %v6590 = vpop.f32.mrf.mxu0
        %6591 = vdwg.mxu0
        %6592 = vmatpush.bf16.msra.mxu0 %v4496
        %6593 = vmatpush.bf16.msra.mxu0 %v4492
        %6594 = vmatpush.bf16.msra.mxu0 %v4488
        %6595 = vmatpush.bf16.msra.mxu0 %v4484
        %6596 = vmatpush.bf16.msra.mxu0 %v4480
        %6597 = vmatpush.bf16.msra.mxu0 %v4476
        %6598 = vmatpush.bf16.msra.mxu0 %v4472
        %6599 = vmatpush.bf16.msra.mxu0 %v4468
        %6600 = vmatmul.bf16.gmra.mxu0 %v487
        %v6601 = vpop.f32.mrf.mxu0
        %v6602 = vadd.f32 %v6589, %v6601
        %v6603 = vpop.f32.mrf.mxu0
        %6604 = vdwg.mxu0
        %6605 = vmatpush.bf16.msra.mxu0 %v4528
        %6606 = vmatpush.bf16.msra.mxu0 %v4524
        %6607 = vmatpush.bf16.msra.mxu0 %v4520
        %6608 = vmatpush.bf16.msra.mxu0 %v4516
        %6609 = vmatpush.bf16.msra.mxu0 %v4512
        %6610 = vmatpush.bf16.msra.mxu0 %v4508
        %6611 = vmatpush.bf16.msra.mxu0 %v4504
        %6612 = vmatpush.bf16.msra.mxu0 %v4500
        %6613 = vmatmul.bf16.gmra.mxu0 %v488
        %v6614 = vpop.f32.mrf.mxu0
        %v6615 = vadd.f32 %v6602, %v6614
        %v6616 = vpop.f32.mrf.mxu0
        %6617 = vdwg.mxu0
        %6618 = vmatpush.bf16.msra.mxu0 %v4560
        %6619 = vmatpush.bf16.msra.mxu0 %v4556
        %6620 = vmatpush.bf16.msra.mxu0 %v4552
        %6621 = vmatpush.bf16.msra.mxu0 %v4548
        %6622 = vmatpush.bf16.msra.mxu0 %v4544
        %6623 = vmatpush.bf16.msra.mxu0 %v4540
        %6624 = vmatpush.bf16.msra.mxu0 %v4536
        %6625 = vmatpush.bf16.msra.mxu0 %v4532
        %6626 = vmatmul.bf16.gmra.mxu0 %v489
        %v6627 = vpop.f32.mrf.mxu0
        %v6628 = vadd.f32 %v6615, %v6627
        %v6629 = vpop.f32.mrf.mxu0
        %6630 = vdwg.mxu0
        %6631 = vmatpush.bf16.msra.mxu0 %v4592
        %6632 = vmatpush.bf16.msra.mxu0 %v4588
        %6633 = vmatpush.bf16.msra.mxu0 %v4584
        %6634 = vmatpush.bf16.msra.mxu0 %v4580
        %6635 = vmatpush.bf16.msra.mxu0 %v4576
        %6636 = vmatpush.bf16.msra.mxu0 %v4572
        %6637 = vmatpush.bf16.msra.mxu0 %v4568
        %6638 = vmatpush.bf16.msra.mxu0 %v4564
        %6639 = vmatmul.bf16.gmra.mxu0 %v490
        %v6640 = vpop.f32.mrf.mxu0
        %v6641 = vadd.f32 %v6628, %v6640
        %v6642 = vpop.f32.mrf.mxu0
        %6643 = vdwg.mxu0
        %6644 = vmatpush.bf16.msra.mxu0 %v4624
        %6645 = vmatpush.bf16.msra.mxu0 %v4620
        %6646 = vmatpush.bf16.msra.mxu0 %v4616
        %6647 = vmatpush.bf16.msra.mxu0 %v4612
        %6648 = vmatpush.bf16.msra.mxu0 %v4608
        %6649 = vmatpush.bf16.msra.mxu0 %v4604
        %6650 = vmatpush.bf16.msra.mxu0 %v4600
        %6651 = vmatpush.bf16.msra.mxu0 %v4596
        %6652 = vmatmul.bf16.gmra.mxu0 %v491
        %v6653 = vpop.f32.mrf.mxu0
        %v6654 = vadd.f32 %v6641, %v6653
        %v6655 = vpop.f32.mrf.mxu0
        %6656 = vdwg.mxu0
        %6657 = vmatpush.bf16.msra.mxu0 %v4656
        %6658 = vmatpush.bf16.msra.mxu0 %v4652
        %6659 = vmatpush.bf16.msra.mxu0 %v4648
        %6660 = vmatpush.bf16.msra.mxu0 %v4644
        %6661 = vmatpush.bf16.msra.mxu0 %v4640
        %6662 = vmatpush.bf16.msra.mxu0 %v4636
        %6663 = vmatpush.bf16.msra.mxu0 %v4632
        %6664 = vmatpush.bf16.msra.mxu0 %v4628
        %6665 = vmatmul.bf16.gmra.mxu0 %v492
        %v6666 = vpop.f32.mrf.mxu0
        %v6667 = vadd.f32 %v6654, %v6666
        %v6668 = vpop.f32.mrf.mxu0
        %6669 = vdwg.mxu0
        %6670 = vmatpush.bf16.msra.mxu0 %v4688
        %6671 = vmatpush.bf16.msra.mxu0 %v4684
        %6672 = vmatpush.bf16.msra.mxu0 %v4680
        %6673 = vmatpush.bf16.msra.mxu0 %v4676
        %6674 = vmatpush.bf16.msra.mxu0 %v4672
        %6675 = vmatpush.bf16.msra.mxu0 %v4668
        %6676 = vmatpush.bf16.msra.mxu0 %v4664
        %6677 = vmatpush.bf16.msra.mxu0 %v4660
        %6678 = vmatmul.bf16.gmra.mxu0 %v493
        %v6679 = vpop.f32.mrf.mxu0
        %v6680 = vadd.f32 %v6667, %v6679
        %v6681 = vpop.f32.mrf.mxu0
        %6682 = vdwg.mxu0
        %6683 = vmatpush.bf16.msra.mxu0 %v4720
        %6684 = vmatpush.bf16.msra.mxu0 %v4716
        %6685 = vmatpush.bf16.msra.mxu0 %v4712
        %6686 = vmatpush.bf16.msra.mxu0 %v4708
        %6687 = vmatpush.bf16.msra.mxu0 %v4704
        %6688 = vmatpush.bf16.msra.mxu0 %v4700
        %6689 = vmatpush.bf16.msra.mxu0 %v4696
        %6690 = vmatpush.bf16.msra.mxu0 %v4692
        %6691 = vmatmul.bf16.gmra.mxu0 %v494
        %v6692 = vpop.f32.mrf.mxu0
        %v6693 = vadd.f32 %v6680, %v6692
        %v6694 = vpop.f32.mrf.mxu0
        %6695 = vdwg.mxu0
        %6696 = vmatpush.bf16.msra.mxu0 %v4752
        %6697 = vmatpush.bf16.msra.mxu0 %v4748
        %6698 = vmatpush.bf16.msra.mxu0 %v4744
        %6699 = vmatpush.bf16.msra.mxu0 %v4740
        %6700 = vmatpush.bf16.msra.mxu0 %v4736
        %6701 = vmatpush.bf16.msra.mxu0 %v4732
        %6702 = vmatpush.bf16.msra.mxu0 %v4728
        %6703 = vmatpush.bf16.msra.mxu0 %v4724
        %6704 = vmatmul.bf16.gmra.mxu0 %v495
        %v6705 = vpop.f32.mrf.mxu0
        %v6706 = vadd.f32 %v6693, %v6705
        %v6707 = vpop.f32.mrf.mxu0
        %6708 = vdwg.mxu0
        %6709 = vmatpush.bf16.msra.mxu0 %v4784
        %6710 = vmatpush.bf16.msra.mxu0 %v4780
        %6711 = vmatpush.bf16.msra.mxu0 %v4776
        %6712 = vmatpush.bf16.msra.mxu0 %v4772
        %6713 = vmatpush.bf16.msra.mxu0 %v4768
        %6714 = vmatpush.bf16.msra.mxu0 %v4764
        %6715 = vmatpush.bf16.msra.mxu0 %v4760
        %6716 = vmatpush.bf16.msra.mxu0 %v4756
        %6717 = vmatmul.bf16.gmra.mxu0 %v496
        %v6718 = vpop.f32.mrf.mxu0
        %v6719 = vadd.f32 %v6706, %v6718
        %v6720 = vpop.f32.mrf.mxu0
        %6721 = vdwg.mxu0
        %6722 = vmatpush.bf16.msra.mxu0 %v4816
        %6723 = vmatpush.bf16.msra.mxu0 %v4812
        %6724 = vmatpush.bf16.msra.mxu0 %v4808
        %6725 = vmatpush.bf16.msra.mxu0 %v4804
        %6726 = vmatpush.bf16.msra.mxu0 %v4800
        %6727 = vmatpush.bf16.msra.mxu0 %v4796
        %6728 = vmatpush.bf16.msra.mxu0 %v4792
        %6729 = vmatpush.bf16.msra.mxu0 %v4788
        %6730 = vmatmul.bf16.gmra.mxu0 %v497
        %v6731 = vpop.f32.mrf.mxu0
        %v6732 = vadd.f32 %v6719, %v6731
        %v6733 = vpop.f32.mrf.mxu0
        %6734 = vdwg.mxu0
        %6735 = vmatpush.bf16.msra.mxu0 %v3985
        %6736 = vmatpush.bf16.msra.mxu0 %v3981
        %6737 = vmatpush.bf16.msra.mxu0 %v3977
        %6738 = vmatpush.bf16.msra.mxu0 %v3973
        %6739 = vmatpush.bf16.msra.mxu0 %v3969
        %6740 = vmatpush.bf16.msra.mxu0 %v3965
        %6741 = vmatpush.bf16.msra.mxu0 %v3961
        %6742 = vmatpush.bf16.msra.mxu0 %v3957
        %6743 = vmatmul.bf16.gmra.mxu0 %v471
        %v6744 = vpop.f32.mrf.mxu0
        %v6745 = vadd.f32 0.0, %v6744
        %v6746 = vpop.f32.mrf.mxu0
        %6747 = vdwg.mxu0
        %6748 = vmatpush.bf16.msra.mxu0 %v4017
        %6749 = vmatpush.bf16.msra.mxu0 %v4013
        %6750 = vmatpush.bf16.msra.mxu0 %v4009
        %6751 = vmatpush.bf16.msra.mxu0 %v4005
        %6752 = vmatpush.bf16.msra.mxu0 %v4001
        %6753 = vmatpush.bf16.msra.mxu0 %v3997
        %6754 = vmatpush.bf16.msra.mxu0 %v3993
        %6755 = vmatpush.bf16.msra.mxu0 %v3989
        %6756 = vmatmul.bf16.gmra.mxu0 %v472
        %v6757 = vpop.f32.mrf.mxu0
        %v6758 = vadd.f32 %v6745, %v6757
        %v6759 = vpop.f32.mrf.mxu0
        %6760 = vdwg.mxu0
        %6761 = vmatpush.bf16.msra.mxu0 %v4049
        %6762 = vmatpush.bf16.msra.mxu0 %v4045
        %6763 = vmatpush.bf16.msra.mxu0 %v4041
        %6764 = vmatpush.bf16.msra.mxu0 %v4037
        %6765 = vmatpush.bf16.msra.mxu0 %v4033
        %6766 = vmatpush.bf16.msra.mxu0 %v4029
        %6767 = vmatpush.bf16.msra.mxu0 %v4025
        %6768 = vmatpush.bf16.msra.mxu0 %v4021
        %6769 = vmatmul.bf16.gmra.mxu0 %v473
        %v6770 = vpop.f32.mrf.mxu0
        %v6771 = vadd.f32 %v6758, %v6770
        %v6772 = vpop.f32.mrf.mxu0
        %6773 = vdwg.mxu0
        %6774 = vmatpush.bf16.msra.mxu0 %v4081
        %6775 = vmatpush.bf16.msra.mxu0 %v4077
        %6776 = vmatpush.bf16.msra.mxu0 %v4073
        %6777 = vmatpush.bf16.msra.mxu0 %v4069
        %6778 = vmatpush.bf16.msra.mxu0 %v4065
        %6779 = vmatpush.bf16.msra.mxu0 %v4061
        %6780 = vmatpush.bf16.msra.mxu0 %v4057
        %6781 = vmatpush.bf16.msra.mxu0 %v4053
        %6782 = vmatmul.bf16.gmra.mxu0 %v474
        %v6783 = vpop.f32.mrf.mxu0
        %v6784 = vadd.f32 %v6771, %v6783
        %v6785 = vpop.f32.mrf.mxu0
        %6786 = vdwg.mxu0
        %6787 = vmatpush.bf16.msra.mxu0 %v4113
        %6788 = vmatpush.bf16.msra.mxu0 %v4109
        %6789 = vmatpush.bf16.msra.mxu0 %v4105
        %6790 = vmatpush.bf16.msra.mxu0 %v4101
        %6791 = vmatpush.bf16.msra.mxu0 %v4097
        %6792 = vmatpush.bf16.msra.mxu0 %v4093
        %6793 = vmatpush.bf16.msra.mxu0 %v4089
        %6794 = vmatpush.bf16.msra.mxu0 %v4085
        %6795 = vmatmul.bf16.gmra.mxu0 %v475
        %v6796 = vpop.f32.mrf.mxu0
        %v6797 = vadd.f32 %v6784, %v6796
        %v6798 = vpop.f32.mrf.mxu0
        %6799 = vdwg.mxu0
        %6800 = vmatpush.bf16.msra.mxu0 %v4145
        %6801 = vmatpush.bf16.msra.mxu0 %v4141
        %6802 = vmatpush.bf16.msra.mxu0 %v4137
        %6803 = vmatpush.bf16.msra.mxu0 %v4133
        %6804 = vmatpush.bf16.msra.mxu0 %v4129
        %6805 = vmatpush.bf16.msra.mxu0 %v4125
        %6806 = vmatpush.bf16.msra.mxu0 %v4121
        %6807 = vmatpush.bf16.msra.mxu0 %v4117
        %6808 = vmatmul.bf16.gmra.mxu0 %v476
        %v6809 = vpop.f32.mrf.mxu0
        %v6810 = vadd.f32 %v6797, %v6809
        %v6811 = vpop.f32.mrf.mxu0
        %6812 = vdwg.mxu0
        %6813 = vmatpush.bf16.msra.mxu0 %v4177
        %6814 = vmatpush.bf16.msra.mxu0 %v4173
        %6815 = vmatpush.bf16.msra.mxu0 %v4169
        %6816 = vmatpush.bf16.msra.mxu0 %v4165
        %6817 = vmatpush.bf16.msra.mxu0 %v4161
        %6818 = vmatpush.bf16.msra.mxu0 %v4157
        %6819 = vmatpush.bf16.msra.mxu0 %v4153
        %6820 = vmatpush.bf16.msra.mxu0 %v4149
        %6821 = vmatmul.bf16.gmra.mxu0 %v477
        %v6822 = vpop.f32.mrf.mxu0
        %v6823 = vadd.f32 %v6810, %v6822
        %v6824 = vpop.f32.mrf.mxu0
        %6825 = vdwg.mxu0
        %6826 = vmatpush.bf16.msra.mxu0 %v4209
        %6827 = vmatpush.bf16.msra.mxu0 %v4205
        %6828 = vmatpush.bf16.msra.mxu0 %v4201
        %6829 = vmatpush.bf16.msra.mxu0 %v4197
        %6830 = vmatpush.bf16.msra.mxu0 %v4193
        %6831 = vmatpush.bf16.msra.mxu0 %v4189
        %6832 = vmatpush.bf16.msra.mxu0 %v4185
        %6833 = vmatpush.bf16.msra.mxu0 %v4181
        %6834 = vmatmul.bf16.gmra.mxu0 %v478
        %v6835 = vpop.f32.mrf.mxu0
        %v6836 = vadd.f32 %v6823, %v6835
        %v6837 = vpop.f32.mrf.mxu0
        %6838 = vdwg.mxu0
        %6839 = vmatpush.bf16.msra.mxu0 %v4241
        %6840 = vmatpush.bf16.msra.mxu0 %v4237
        %6841 = vmatpush.bf16.msra.mxu0 %v4233
        %6842 = vmatpush.bf16.msra.mxu0 %v4229
        %6843 = vmatpush.bf16.msra.mxu0 %v4225
        %6844 = vmatpush.bf16.msra.mxu0 %v4221
        %6845 = vmatpush.bf16.msra.mxu0 %v4217
        %6846 = vmatpush.bf16.msra.mxu0 %v4213
        %6847 = vmatmul.bf16.gmra.mxu0 %v479
        %v6848 = vpop.f32.mrf.mxu0
        %v6849 = vadd.f32 %v6836, %v6848
        %v6850 = vpop.f32.mrf.mxu0
        %6851 = vdwg.mxu0
        %6852 = vmatpush.bf16.msra.mxu0 %v4273
        %6853 = vmatpush.bf16.msra.mxu0 %v4269
        %6854 = vmatpush.bf16.msra.mxu0 %v4265
        %6855 = vmatpush.bf16.msra.mxu0 %v4261
        %6856 = vmatpush.bf16.msra.mxu0 %v4257
        %6857 = vmatpush.bf16.msra.mxu0 %v4253
        %6858 = vmatpush.bf16.msra.mxu0 %v4249
        %6859 = vmatpush.bf16.msra.mxu0 %v4245
        %6860 = vmatmul.bf16.gmra.mxu0 %v480
        %v6861 = vpop.f32.mrf.mxu0
        %v6862 = vadd.f32 %v6849, %v6861
        %v6863 = vpop.f32.mrf.mxu0
        %6864 = vdwg.mxu0
        %6865 = vmatpush.bf16.msra.mxu0 %v4305
        %6866 = vmatpush.bf16.msra.mxu0 %v4301
        %6867 = vmatpush.bf16.msra.mxu0 %v4297
        %6868 = vmatpush.bf16.msra.mxu0 %v4293
        %6869 = vmatpush.bf16.msra.mxu0 %v4289
        %6870 = vmatpush.bf16.msra.mxu0 %v4285
        %6871 = vmatpush.bf16.msra.mxu0 %v4281
        %6872 = vmatpush.bf16.msra.mxu0 %v4277
        %6873 = vmatmul.bf16.gmra.mxu0 %v481
        %v6874 = vpop.f32.mrf.mxu0
        %v6875 = vadd.f32 %v6862, %v6874
        %v6876 = vpop.f32.mrf.mxu0
        %6877 = vdwg.mxu0
        %6878 = vmatpush.bf16.msra.mxu0 %v4337
        %6879 = vmatpush.bf16.msra.mxu0 %v4333
        %6880 = vmatpush.bf16.msra.mxu0 %v4329
        %6881 = vmatpush.bf16.msra.mxu0 %v4325
        %6882 = vmatpush.bf16.msra.mxu0 %v4321
        %6883 = vmatpush.bf16.msra.mxu0 %v4317
        %6884 = vmatpush.bf16.msra.mxu0 %v4313
        %6885 = vmatpush.bf16.msra.mxu0 %v4309
        %6886 = vmatmul.bf16.gmra.mxu0 %v482
        %v6887 = vpop.f32.mrf.mxu0
        %v6888 = vadd.f32 %v6875, %v6887
        %v6889 = vpop.f32.mrf.mxu0
        %6890 = vdwg.mxu0
        %6891 = vmatpush.bf16.msra.mxu0 %v4369
        %6892 = vmatpush.bf16.msra.mxu0 %v4365
        %6893 = vmatpush.bf16.msra.mxu0 %v4361
        %6894 = vmatpush.bf16.msra.mxu0 %v4357
        %6895 = vmatpush.bf16.msra.mxu0 %v4353
        %6896 = vmatpush.bf16.msra.mxu0 %v4349
        %6897 = vmatpush.bf16.msra.mxu0 %v4345
        %6898 = vmatpush.bf16.msra.mxu0 %v4341
        %6899 = vmatmul.bf16.gmra.mxu0 %v483
        %v6900 = vpop.f32.mrf.mxu0
        %v6901 = vadd.f32 %v6888, %v6900
        %v6902 = vpop.f32.mrf.mxu0
        %6903 = vdwg.mxu0
        %6904 = vmatpush.bf16.msra.mxu0 %v4401
        %6905 = vmatpush.bf16.msra.mxu0 %v4397
        %6906 = vmatpush.bf16.msra.mxu0 %v4393
        %6907 = vmatpush.bf16.msra.mxu0 %v4389
        %6908 = vmatpush.bf16.msra.mxu0 %v4385
        %6909 = vmatpush.bf16.msra.mxu0 %v4381
        %6910 = vmatpush.bf16.msra.mxu0 %v4377
        %6911 = vmatpush.bf16.msra.mxu0 %v4373
        %6912 = vmatmul.bf16.gmra.mxu0 %v484
        %v6913 = vpop.f32.mrf.mxu0
        %v6914 = vadd.f32 %v6901, %v6913
        %v6915 = vpop.f32.mrf.mxu0
        %6916 = vdwg.mxu0
        %6917 = vmatpush.bf16.msra.mxu0 %v4433
        %6918 = vmatpush.bf16.msra.mxu0 %v4429
        %6919 = vmatpush.bf16.msra.mxu0 %v4425
        %6920 = vmatpush.bf16.msra.mxu0 %v4421
        %6921 = vmatpush.bf16.msra.mxu0 %v4417
        %6922 = vmatpush.bf16.msra.mxu0 %v4413
        %6923 = vmatpush.bf16.msra.mxu0 %v4409
        %6924 = vmatpush.bf16.msra.mxu0 %v4405
        %6925 = vmatmul.bf16.gmra.mxu0 %v485
        %v6926 = vpop.f32.mrf.mxu0
        %v6927 = vadd.f32 %v6914, %v6926
        %v6928 = vpop.f32.mrf.mxu0
        %6929 = vdwg.mxu0
        %6930 = vmatpush.bf16.msra.mxu0 %v4465
        %6931 = vmatpush.bf16.msra.mxu0 %v4461
        %6932 = vmatpush.bf16.msra.mxu0 %v4457
        %6933 = vmatpush.bf16.msra.mxu0 %v4453
        %6934 = vmatpush.bf16.msra.mxu0 %v4449
        %6935 = vmatpush.bf16.msra.mxu0 %v4445
        %6936 = vmatpush.bf16.msra.mxu0 %v4441
        %6937 = vmatpush.bf16.msra.mxu0 %v4437
        %6938 = vmatmul.bf16.gmra.mxu0 %v486
        %v6939 = vpop.f32.mrf.mxu0
        %v6940 = vadd.f32 %v6927, %v6939
        %v6941 = vpop.f32.mrf.mxu0
        %6942 = vdwg.mxu0
        %6943 = vmatpush.bf16.msra.mxu0 %v4497
        %6944 = vmatpush.bf16.msra.mxu0 %v4493
        %6945 = vmatpush.bf16.msra.mxu0 %v4489
        %6946 = vmatpush.bf16.msra.mxu0 %v4485
        %6947 = vmatpush.bf16.msra.mxu0 %v4481
        %6948 = vmatpush.bf16.msra.mxu0 %v4477
        %6949 = vmatpush.bf16.msra.mxu0 %v4473
        %6950 = vmatpush.bf16.msra.mxu0 %v4469
        %6951 = vmatmul.bf16.gmra.mxu0 %v487
        %v6952 = vpop.f32.mrf.mxu0
        %v6953 = vadd.f32 %v6940, %v6952
        %v6954 = vpop.f32.mrf.mxu0
        %6955 = vdwg.mxu0
        %6956 = vmatpush.bf16.msra.mxu0 %v4529
        %6957 = vmatpush.bf16.msra.mxu0 %v4525
        %6958 = vmatpush.bf16.msra.mxu0 %v4521
        %6959 = vmatpush.bf16.msra.mxu0 %v4517
        %6960 = vmatpush.bf16.msra.mxu0 %v4513
        %6961 = vmatpush.bf16.msra.mxu0 %v4509
        %6962 = vmatpush.bf16.msra.mxu0 %v4505
        %6963 = vmatpush.bf16.msra.mxu0 %v4501
        %6964 = vmatmul.bf16.gmra.mxu0 %v488
        %v6965 = vpop.f32.mrf.mxu0
        %v6966 = vadd.f32 %v6953, %v6965
        %v6967 = vpop.f32.mrf.mxu0
        %6968 = vdwg.mxu0
        %6969 = vmatpush.bf16.msra.mxu0 %v4561
        %6970 = vmatpush.bf16.msra.mxu0 %v4557
        %6971 = vmatpush.bf16.msra.mxu0 %v4553
        %6972 = vmatpush.bf16.msra.mxu0 %v4549
        %6973 = vmatpush.bf16.msra.mxu0 %v4545
        %6974 = vmatpush.bf16.msra.mxu0 %v4541
        %6975 = vmatpush.bf16.msra.mxu0 %v4537
        %6976 = vmatpush.bf16.msra.mxu0 %v4533
        %6977 = vmatmul.bf16.gmra.mxu0 %v489
        %v6978 = vpop.f32.mrf.mxu0
        %v6979 = vadd.f32 %v6966, %v6978
        %v6980 = vpop.f32.mrf.mxu0
        %6981 = vdwg.mxu0
        %6982 = vmatpush.bf16.msra.mxu0 %v4593
        %6983 = vmatpush.bf16.msra.mxu0 %v4589
        %6984 = vmatpush.bf16.msra.mxu0 %v4585
        %6985 = vmatpush.bf16.msra.mxu0 %v4581
        %6986 = vmatpush.bf16.msra.mxu0 %v4577
        %6987 = vmatpush.bf16.msra.mxu0 %v4573
        %6988 = vmatpush.bf16.msra.mxu0 %v4569
        %6989 = vmatpush.bf16.msra.mxu0 %v4565
        %6990 = vmatmul.bf16.gmra.mxu0 %v490
        %v6991 = vpop.f32.mrf.mxu0
        %v6992 = vadd.f32 %v6979, %v6991
        %v6993 = vpop.f32.mrf.mxu0
        %6994 = vdwg.mxu0
        %6995 = vmatpush.bf16.msra.mxu0 %v4625
        %6996 = vmatpush.bf16.msra.mxu0 %v4621
        %6997 = vmatpush.bf16.msra.mxu0 %v4617
        %6998 = vmatpush.bf16.msra.mxu0 %v4613
        %6999 = vmatpush.bf16.msra.mxu0 %v4609
        %7000 = vmatpush.bf16.msra.mxu0 %v4605
        %7001 = vmatpush.bf16.msra.mxu0 %v4601
        %7002 = vmatpush.bf16.msra.mxu0 %v4597
        %7003 = vmatmul.bf16.gmra.mxu0 %v491
        %v7004 = vpop.f32.mrf.mxu0
        %v7005 = vadd.f32 %v6992, %v7004
        %v7006 = vpop.f32.mrf.mxu0
        %7007 = vdwg.mxu0
        %7008 = vmatpush.bf16.msra.mxu0 %v4657
        %7009 = vmatpush.bf16.msra.mxu0 %v4653
        %7010 = vmatpush.bf16.msra.mxu0 %v4649
        %7011 = vmatpush.bf16.msra.mxu0 %v4645
        %7012 = vmatpush.bf16.msra.mxu0 %v4641
        %7013 = vmatpush.bf16.msra.mxu0 %v4637
        %7014 = vmatpush.bf16.msra.mxu0 %v4633
        %7015 = vmatpush.bf16.msra.mxu0 %v4629
        %7016 = vmatmul.bf16.gmra.mxu0 %v492
        %v7017 = vpop.f32.mrf.mxu0
        %v7018 = vadd.f32 %v7005, %v7017
        %v7019 = vpop.f32.mrf.mxu0
        %7020 = vdwg.mxu0
        %7021 = vmatpush.bf16.msra.mxu0 %v4689
        %7022 = vmatpush.bf16.msra.mxu0 %v4685
        %7023 = vmatpush.bf16.msra.mxu0 %v4681
        %7024 = vmatpush.bf16.msra.mxu0 %v4677
        %7025 = vmatpush.bf16.msra.mxu0 %v4673
        %7026 = vmatpush.bf16.msra.mxu0 %v4669
        %7027 = vmatpush.bf16.msra.mxu0 %v4665
        %7028 = vmatpush.bf16.msra.mxu0 %v4661
        %7029 = vmatmul.bf16.gmra.mxu0 %v493
        %v7030 = vpop.f32.mrf.mxu0
        %v7031 = vadd.f32 %v7018, %v7030
        %v7032 = vpop.f32.mrf.mxu0
        %7033 = vdwg.mxu0
        %7034 = vmatpush.bf16.msra.mxu0 %v4721
        %7035 = vmatpush.bf16.msra.mxu0 %v4717
        %7036 = vmatpush.bf16.msra.mxu0 %v4713
        %7037 = vmatpush.bf16.msra.mxu0 %v4709
        %7038 = vmatpush.bf16.msra.mxu0 %v4705
        %7039 = vmatpush.bf16.msra.mxu0 %v4701
        %7040 = vmatpush.bf16.msra.mxu0 %v4697
        %7041 = vmatpush.bf16.msra.mxu0 %v4693
        %7042 = vmatmul.bf16.gmra.mxu0 %v494
        %v7043 = vpop.f32.mrf.mxu0
        %v7044 = vadd.f32 %v7031, %v7043
        %v7045 = vpop.f32.mrf.mxu0
        %7046 = vdwg.mxu0
        %7047 = vmatpush.bf16.msra.mxu0 %v4753
        %7048 = vmatpush.bf16.msra.mxu0 %v4749
        %7049 = vmatpush.bf16.msra.mxu0 %v4745
        %7050 = vmatpush.bf16.msra.mxu0 %v4741
        %7051 = vmatpush.bf16.msra.mxu0 %v4737
        %7052 = vmatpush.bf16.msra.mxu0 %v4733
        %7053 = vmatpush.bf16.msra.mxu0 %v4729
        %7054 = vmatpush.bf16.msra.mxu0 %v4725
        %7055 = vmatmul.bf16.gmra.mxu0 %v495
        %v7056 = vpop.f32.mrf.mxu0
        %v7057 = vadd.f32 %v7044, %v7056
        %v7058 = vpop.f32.mrf.mxu0
        %7059 = vdwg.mxu0
        %7060 = vmatpush.bf16.msra.mxu0 %v4785
        %7061 = vmatpush.bf16.msra.mxu0 %v4781
        %7062 = vmatpush.bf16.msra.mxu0 %v4777
        %7063 = vmatpush.bf16.msra.mxu0 %v4773
        %7064 = vmatpush.bf16.msra.mxu0 %v4769
        %7065 = vmatpush.bf16.msra.mxu0 %v4765
        %7066 = vmatpush.bf16.msra.mxu0 %v4761
        %7067 = vmatpush.bf16.msra.mxu0 %v4757
        %7068 = vmatmul.bf16.gmra.mxu0 %v496
        %v7069 = vpop.f32.mrf.mxu0
        %v7070 = vadd.f32 %v7057, %v7069
        %v7071 = vpop.f32.mrf.mxu0
        %7072 = vdwg.mxu0
        %7073 = vmatpush.bf16.msra.mxu0 %v4817
        %7074 = vmatpush.bf16.msra.mxu0 %v4813
        %7075 = vmatpush.bf16.msra.mxu0 %v4809
        %7076 = vmatpush.bf16.msra.mxu0 %v4805
        %7077 = vmatpush.bf16.msra.mxu0 %v4801
        %7078 = vmatpush.bf16.msra.mxu0 %v4797
        %7079 = vmatpush.bf16.msra.mxu0 %v4793
        %7080 = vmatpush.bf16.msra.mxu0 %v4789
        %7081 = vmatmul.bf16.gmra.mxu0 %v497
        %v7082 = vpop.f32.mrf.mxu0
        %v7083 = vadd.f32 %v7070, %v7082
        %v7084 = vpop.f32.mrf.mxu0
        %7085 = vdwg.mxu0
        %v7090 = vrot.slane %v6381, 6
        %v7091 = vrot.slane %v6732, 4
        %v7092 = vrot.slane %v7083, 2
        %vm7093 = vcmask 1041408
        %v7094 = vsel %vm7093, %v6030, %v7090
        %vm7095 = vcmask 1045508
        %v7096 = vsel %vm7095, %v7091, %v7092
        %vm7097 = vcmask 1043456
        %v7098 = vsel %vm7097, %v7094, %v7096
        %v7100 = vadd.f32 %v394, %v7098
        %7101 = vst [vmem:[#allocation2] sm:$0xff] %v7100
        %p7102 = scmp.eq.s32.totalorder %s26, 1
        // Predicated region
        $region73: #{tpu_custom_call.1} parent=47 // pred_check
          %p7103 = pneg %p7102
        $region74: #{tpu_custom_call.1} parent=47 // pred_check_branch
          %7105 = sbr.rel (%p7103) target = $region76
        $region75: #{tpu_custom_call.1} parent=47 // pred_region
          %v7106 = vld [vmem:[#allocation2] sm:$0xff]
          %v7107 = vmax.f32 %v7106, 0.0
          %v7108 = vld [vmem:[%s3] sm:$0xff]
          %v7109 = vld [vmem:[%s3 + $0x8] sm:$0xff]
          %v7110 = vld [vmem:[%s3 + $0x10] sm:$0xff]
          %v7111 = vld [vmem:[%s3 + $0x18] sm:$0xff]
          %v7112 = vld [vmem:[%s3 + $0x20] sm:$0xff]
          %v7113 = vld [vmem:[%s3 + $0x28] sm:$0xff]
          %v7114 = vld [vmem:[%s3 + $0x30] sm:$0xff]
          %v7115 = vld [vmem:[%s3 + $0x38] sm:$0xff]
          %v7116 = vld [vmem:[%s3 + $0x40] sm:$0xff]
          %v7117 = vld [vmem:[%s3 + $0x48] sm:$0xff]
          %v7118 = vld [vmem:[%s3 + $0x50] sm:$0xff]
          %v7119 = vld [vmem:[%s3 + $0x58] sm:$0xff]
          %v7120 = vld [vmem:[%s3 + $0x60] sm:$0xff]
          %v7121 = vld [vmem:[%s3 + $0x68] sm:$0xff]
          %v7122 = vld [vmem:[%s3 + $0x70] sm:$0xff]
          %v7123 = vld [vmem:[%s3 + $0x78] sm:$0xff]
          %v7124 = vld [vmem:[%s3 + $0x80] sm:$0xff]
          %v7125 = vld [vmem:[%s3 + $0x88] sm:$0xff]
          %v7126 = vld [vmem:[%s3 + $0x90] sm:$0xff]
          %v7127 = vld [vmem:[%s3 + $0x98] sm:$0xff]
          %v7128 = vld [vmem:[%s3 + $0xa0] sm:$0xff]
          %v7129 = vld [vmem:[%s3 + $0xa8] sm:$0xff]
          %v7130 = vld [vmem:[%s3 + $0xb0] sm:$0xff]
          %v7131 = vld [vmem:[%s3 + $0xb8] sm:$0xff]
          %v7132 = vld [vmem:[%s3 + $0xc0] sm:$0xff]
          %v7133 = vld [vmem:[%s3 + $0xc8] sm:$0xff]
          %v7134 = vld [vmem:[%s3 + $0xd0] sm:$0xff]
          %v7135 = vld [vmem:[%s3 + $0xd8] sm:$0xff]
          %v7136 = vld [vmem:[%s3 + $0xe0] sm:$0xff]
          %v7137 = vld [vmem:[%s3 + $0xe8] sm:$0xff]
          %v7138 = vld [vmem:[%s3 + $0xf0] sm:$0xff]
          %v7139 = vld [vmem:[%s3 + $0xf8] sm:$0xff]
          %v7140 = vld [vmem:[%s3 + $0x100] sm:$0xff]
          %v7141 = vld [vmem:[%s3 + $0x108] sm:$0xff]
          %v7142 = vld [vmem:[%s3 + $0x110] sm:$0xff]
          %v7143 = vld [vmem:[%s3 + $0x118] sm:$0xff]
          %v7144 = vld [vmem:[%s3 + $0x120] sm:$0xff]
          %v7145 = vld [vmem:[%s3 + $0x128] sm:$0xff]
          %v7146 = vld [vmem:[%s3 + $0x130] sm:$0xff]
          %v7147 = vld [vmem:[%s3 + $0x138] sm:$0xff]
          %v7148 = vld [vmem:[%s3 + $0x140] sm:$0xff]
          %v7149 = vld [vmem:[%s3 + $0x148] sm:$0xff]
          %v7150 = vld [vmem:[%s3 + $0x150] sm:$0xff]
          %v7151 = vld [vmem:[%s3 + $0x158] sm:$0xff]
          %v7152 = vld [vmem:[%s3 + $0x160] sm:$0xff]
          %v7153 = vld [vmem:[%s3 + $0x168] sm:$0xff]
          %v7154 = vld [vmem:[%s3 + $0x170] sm:$0xff]
          %v7155 = vld [vmem:[%s3 + $0x178] sm:$0xff]
          %v7156 = vld [vmem:[%s3 + $0x180] sm:$0xff]
          %v7157 = vld [vmem:[%s3 + $0x188] sm:$0xff]
          %v7158 = vld [vmem:[%s3 + $0x190] sm:$0xff]
          %v7159 = vld [vmem:[%s3 + $0x198] sm:$0xff]
          %v7160 = vld [vmem:[%s3 + $0x1a0] sm:$0xff]
          %v7161 = vld [vmem:[%s3 + $0x1a8] sm:$0xff]
          %v7162 = vld [vmem:[%s3 + $0x1b0] sm:$0xff]
          %v7163 = vld [vmem:[%s3 + $0x1b8] sm:$0xff]
          %v7164 = vld [vmem:[%s3 + $0x1c0] sm:$0xff]
          %v7165 = vld [vmem:[%s3 + $0x1c8] sm:$0xff]
          %v7166 = vld [vmem:[%s3 + $0x1d0] sm:$0xff]
          %v7167 = vld [vmem:[%s3 + $0x1d8] sm:$0xff]
          %v7168 = vld [vmem:[%s3 + $0x1e0] sm:$0xff]
          %v7169 = vld [vmem:[%s3 + $0x1e8] sm:$0xff]
          %v7170 = vld [vmem:[%s3 + $0x1f0] sm:$0xff]
          %v7171 = vld [vmem:[%s3 + $0x1f8] sm:$0xff]
          %v7172 = vld [vmem:[#allocation9] sm:$0x1]
          %v7174 = vperm.slane %v7172, 0
          %7177 = vst [vmem:[#allocation1] ss:$4 sm:$0xff] %v7107
          %v7178 = vld.sshfl [vmem:[#allocation1] sm:$0xff pattern:$0x73625140]
          %v7179 = vld.sshfl [vmem:[#allocation1 + $0x8] sm:$0xff pattern:$0x73625140]
          %v7180 = vld.sshfl [vmem:[#allocation1 + $0x10] sm:$0xff pattern:$0x73625140]
          %v7181 = vld.sshfl [vmem:[#allocation1 + $0x18] sm:$0xff pattern:$0x73625140]
          %7186 = vmatpush.msra.mxu0 %v7123
          %7187 = vmatpush.msra.mxu0 %v7122
          %7188 = vmatpush.msra.mxu0 %v7121
          %7189 = vmatpush.msra.mxu0 %v7120
          %7190 = vmatpush.msra.mxu0 %v7119
          %7191 = vmatpush.msra.mxu0 %v7118
          %7192 = vmatpush.msra.mxu0 %v7117
          %7193 = vmatpush.msra.mxu0 %v7116
          %7194 = vmatpush.msra.mxu0 %v7115
          %7195 = vmatpush.msra.mxu0 %v7114
          %7196 = vmatpush.msra.mxu0 %v7113
          %7197 = vmatpush.msra.mxu0 %v7112
          %7198 = vmatpush.msra.mxu0 %v7111
          %7199 = vmatpush.msra.mxu0 %v7110
          %7200 = vmatpush.msra.mxu0 %v7109
          %7201 = vmatpush.msra.mxu0 %v7108
          %7202 = vmatmul.f32.gmra.mxu0 %v7178
          %v7203 = vpop.f32.mrf.mxu0
          %v7204 = vadd.f32 %v7174, %v7203
          %7205 = vdwg.mxu0
          %7206 = vmatpush.msra.mxu0 %v7139
          %7207 = vmatpush.msra.mxu0 %v7138
          %7208 = vmatpush.msra.mxu0 %v7137
          %7209 = vmatpush.msra.mxu0 %v7136
          %7210 = vmatpush.msra.mxu0 %v7135
          %7211 = vmatpush.msra.mxu0 %v7134
          %7212 = vmatpush.msra.mxu0 %v7133
          %7213 = vmatpush.msra.mxu0 %v7132
          %7214 = vmatpush.msra.mxu0 %v7131
          %7215 = vmatpush.msra.mxu0 %v7130
          %7216 = vmatpush.msra.mxu0 %v7129
          %7217 = vmatpush.msra.mxu0 %v7128
          %7218 = vmatpush.msra.mxu0 %v7127
          %7219 = vmatpush.msra.mxu0 %v7126
          %7220 = vmatpush.msra.mxu0 %v7125
          %7221 = vmatpush.msra.mxu0 %v7124
          %7222 = vmatmul.f32.gmra.mxu0 %v7179
          %v7223 = vpop.f32.mrf.mxu0
          %v7224 = vadd.f32 %v7204, %v7223
          %7225 = vdwg.mxu0
          %7226 = vmatpush.msra.mxu0 %v7155
          %7227 = vmatpush.msra.mxu0 %v7154
          %7228 = vmatpush.msra.mxu0 %v7153
          %7229 = vmatpush.msra.mxu0 %v7152
          %7230 = vmatpush.msra.mxu0 %v7151
          %7231 = vmatpush.msra.mxu0 %v7150
          %7232 = vmatpush.msra.mxu0 %v7149
          %7233 = vmatpush.msra.mxu0 %v7148
          %7234 = vmatpush.msra.mxu0 %v7147
          %7235 = vmatpush.msra.mxu0 %v7146
          %7236 = vmatpush.msra.mxu0 %v7145
          %7237 = vmatpush.msra.mxu0 %v7144
          %7238 = vmatpush.msra.mxu0 %v7143
          %7239 = vmatpush.msra.mxu0 %v7142
          %7240 = vmatpush.msra.mxu0 %v7141
          %7241 = vmatpush.msra.mxu0 %v7140
          %7242 = vmatmul.f32.gmra.mxu0 %v7180
          %v7243 = vpop.f32.mrf.mxu0
          %v7244 = vadd.f32 %v7224, %v7243
          %7245 = vdwg.mxu0
          %7246 = vmatpush.msra.mxu0 %v7171
          %7247 = vmatpush.msra.mxu0 %v7170
          %7248 = vmatpush.msra.mxu0 %v7169
          %7249 = vmatpush.msra.mxu0 %v7168
          %7250 = vmatpush.msra.mxu0 %v7167
          %7251 = vmatpush.msra.mxu0 %v7166
          %7252 = vmatpush.msra.mxu0 %v7165
          %7253 = vmatpush.msra.mxu0 %v7164
          %7254 = vmatpush.msra.mxu0 %v7163
          %7255 = vmatpush.msra.mxu0 %v7162
          %7256 = vmatpush.msra.mxu0 %v7161
          %7257 = vmatpush.msra.mxu0 %v7160
          %7258 = vmatpush.msra.mxu0 %v7159
          %7259 = vmatpush.msra.mxu0 %v7158
          %7260 = vmatpush.msra.mxu0 %v7157
          %7261 = vmatpush.msra.mxu0 %v7156
          %7262 = vmatmul.f32.gmra.mxu0 %v7181
          %v7263 = vpop.f32.mrf.mxu0
          %v7264 = vadd.f32 %v7244, %v7263
          %7265 = vdwg.mxu0
          %v7266 = vmax.f32 %v7264, 0.0
          %v7267 = vld [vmem:[%s5] sm:$0xff]
          %v7268 = vld [vmem:[%s5 + $0x8] sm:$0xff]
          %v7269 = vld [vmem:[%s5 + $0x10] sm:$0xff]
          %v7270 = vld [vmem:[%s5 + $0x18] sm:$0xff]
          %v7271 = vld [vmem:[#allocation11] sm:$0x1]
          %v7273 = vperm.slane %v7271, 0
          %vm7275 = vcmask 261120
          %v7277 = vsel %vm7275, %v7266, 0
          %7279 = vmatpush.msra.mxu0 0.0
          %7280 = vmatpush.msra.mxu0 0.0
          %7281 = vmatpush.msra.mxu0 0.0
          %7282 = vmatpush.msra.mxu0 0.0
          %7283 = vmatpush.msra.mxu0 0.0
          %7284 = vmatpush.msra.mxu0 0.0
          %7285 = vmatpush.msra.mxu0 0.0
          %7286 = vmatpush.msra.mxu0 0.0
          %7287 = vmatpush.msra.mxu0 0.0
          %7288 = vmatpush.msra.mxu0 0.0
          %7289 = vmatpush.msra.mxu0 0.0
          %7290 = vmatpush.msra.mxu0 0.0
          %7291 = vmatpush.msra.mxu0 %v7270
          %7292 = vmatpush.msra.mxu0 %v7269
          %7293 = vmatpush.msra.mxu0 %v7268
          %7294 = vmatpush.msra.mxu0 %v7267
          %7295 = vmatmul.f32.gmra.mxu0 %v7277
          %v7296 = vpop.f32.mrf.mxu0
          %v7297 = vadd.f32 %v7273, %v7296
          %7298 = vdwg.mxu0
          %vm7299 = vcmask 50176
          %7300 = vst.msk [vmem:[#allocation12] sm:$0x3] %vm7299, %v7297
        $region76: #{tpu_custom_call.1} parent=47 // pred_fallthru
          _
        // Predicated region
        $region77: #{tpu_custom_call.1} parent=47 // pred_check
          %p7301 = pneg %p196
        $region78: #{tpu_custom_call.1} parent=47 // pred_check_branch
          %7303 = sbr.rel (%p7301) target = $region80
        $region79: #{tpu_custom_call.1} parent=47 // pred_region
          %7305 = vsyncadd [#allocation5], 0
          %s7307 = sshll.u32 [#allocation12], 4
          %s7308 = int_to_ptr.vmem [resolvable:$true] %s7307
          %s7309 = sshll.u32 %s7, 4
          %s7310 = int_to_ptr.hbm [resolvable:$true] %s7309
          %7312 = dma.vmem_to_hbm [thread:$0]  %s7308, 32, %s7310, [#allocation5]
        $region80: #{tpu_custom_call.1} parent=47 // pred_fallthru
          _
        // Predicated region
        $region81: #{tpu_custom_call.1} parent=47 // pred_check
          %p7313 = pneg %p196
        $region82: #{tpu_custom_call.1} parent=47 // pred_check_branch
          %7315 = sbr.rel (%p7313) target = $region84
        $region83: #{tpu_custom_call.1} parent=47 // pred_region
          %7317 = dma.done [#allocation5], 32
        $region84: #{tpu_custom_call.1} parent=47 // pred_fallthru
          _
      $region48: #{tpu_custom_call.1} parent=5 // pred_fallthru
        _
      %p7318 = scmp.le.s32.totalorder 2, %s21
      // Predicated region
      $region85: #{tpu_custom_call.1} parent=5 // pred_check
        %p7319 = pneg %p7318
      $region86: #{tpu_custom_call.1} parent=5 // pred_check_branch
        %7321 = sbr.rel (%p7319) target = $region88
      $region87: #{tpu_custom_call.1} parent=5 // pred_region
        %s7322 = ssub.s32 %s21, 2
      $region88: #{tpu_custom_call.1} parent=5 // pred_fallthru
        _
    $region6: #{tpu_custom_call.1} parent=1 // loop_footer
      %s25 = sadd.s32 1, %s21
    $region7: #{tpu_custom_call.1} parent=1 // loop_footer_branch
      %20 = sbr.rel target = $region3
    $region8: #{tpu_custom_call.1} parent=1 // loop_exit
      _
    %7323 = vsyncpa [#allocation4], 1
    %s7324 = scalar_lea.sflag [#allocation4], 1
    %7325 = vsyncpa %s7324, 1
    %7326 = vsyncpa [#allocation7], 1
    %s7327 = scalar_lea.sflag [#allocation7], 1
    %7328 = vsyncpa %s7327, 1
    %7329 = vsyncpa [#allocation10], 1
    %7330 = vsyncpa [#allocation5], 1
    %s7331 = scalar_lea.sflag [#allocation5], 1
    %7332 = vsyncpa %s7331, 1

</llo_original>
